<compile_context>
chip_gen: v7x
topology: tpu7x:2x2x1
jax: 0.10.0
libtpu: 0.0.40
codegen_flags: <defaults>
</compile_context>

<pallas_src>
import jax
import jax.numpy as jnp
from jax import lax
from jax.experimental import pallas as pl
from jax.experimental.pallas import tpu as pltpu

# ---- small, self-consistent ThinkingModelConfig ----
D_MODEL = 64
SEQ_LEN = 16
D_MLP = 128
D_HEAD = 16
N_HEADS = 4            # D_HEAD * N_HEADS == D_MODEL (required by MHA)
N_LAYERS = 2
D_NORMAL_VOCAB = 256
D_THOUGHT_VOCAB = 64
D_VOCAB_TOTAL = D_NORMAL_VOCAB + D_THOUGHT_VOCAB     # 320
D_VOCAB_PAD = 384       # 3 * 128 -> lane-dense logit store
LN_EPS = 1e-5


def _layernorm(x, g, b):
    # PyTorch nn.LayerNorm semantics: biased variance over last dim, eps=1e-5.
    mu = jnp.mean(x, axis=-1, keepdims=True)
    var = jnp.mean((x - mu) ** 2, axis=-1, keepdims=True)
    return (x - mu) * lax.rsqrt(var + LN_EPS) * g + b


# ------------------- fused forward kernel (one batch row per grid step) -----

def fused_forward_kernel(tok_ref, emb_ref, pos_ref,
                         wqkv_ref, bqkv_ref, wo_ref, bo_ref,
                         g1_ref, be1_ref, w1_ref, b1_ref,
                         w2_ref, b2_ref, g2_ref, be2_ref,
                         gf_ref, bef_ref, wu_ref, o_ref):
    S, D = SEQ_LEN, D_MODEL

    # --- embedding lookup via one-hot matmul (MXU-friendly gather) + pos add
    tok = tok_ref[0]                                            # (S, 1) int32
    vocab_iota = lax.broadcasted_iota(jnp.int32, (S, D_VOCAB_TOTAL), 1)
    one_hot = (vocab_iota == tok).astype(jnp.float32)           # (S, V)
    x = jnp.dot(one_hot, emb_ref[...],
                preferred_element_type=jnp.float32) + pos_ref[...]   # (S, D)

    # causal additive bias (large finite negative, not -inf)
    row = lax.broadcasted_iota(jnp.int32, (S, S), 0)
    col = lax.broadcasted_iota(jnp.int32, (S, S), 1)
    causal_bias = jnp.where(col > row, jnp.float32(-1e30), jnp.float32(0.0))

    scale = jnp.float32(1.0 / (D_HEAD ** 0.5))

    for l in range(N_LAYERS):                                   # static unroll
        # fused QKV projection (PyTorch in_proj, pre-transposed to (D, 3D))
        qkv = jnp.dot(x, wqkv_ref[l],
                      preferred_element_type=jnp.float32) + bqkv_ref[l]
        q = qkv[:, :D] * scale          # fold 1/sqrt(d_head) once, not per head
        k = qkv[:, D:2 * D]
        v = qkv[:, 2 * D:]

        wo = wo_ref[l]
        attn = jnp.zeros((S, D), jnp.float32)
        for h in range(N_HEADS):        # static unroll; no concat: fold into wo
            sl = slice(h * D_HEAD, (h + 1) * D_HEAD)
            s = lax.dot_general(q[:, sl], k[:, sl], (((1,), (1,)), ((), ())),
                                preferred_element_type=jnp.float32)
            s = s + causal_bias
            m = jnp.max(s, axis=-1, keepdims=True)
            p = jnp.exp(s - m)
            denom = jnp.sum(p, axis=-1, keepdims=True)
            p = p * pl.reciprocal(denom, approx=True)
            head_out = jnp.dot(p, v[:, sl], preferred_element_type=jnp.float32)
            attn = attn + jnp.dot(head_out, wo[sl, :],
                                  preferred_element_type=jnp.float32)
        attn = attn + bo_ref[l]

        x = _layernorm(x + attn, g1_ref[l], be1_ref[l])
        h1 = jnp.maximum(
            jnp.dot(x, w1_ref[l], preferred_element_type=jnp.float32)
            + b1_ref[l], 0.0)
        ff = jnp.dot(h1, w2_ref[l],
                     preferred_element_type=jnp.float32) + b2_ref[l]
        x = _layernorm(x + ff, g2_ref[l], be2_ref[l])

    # --- final layernorm + (bias-free) unembed, lane-dense padded output
    x = _layernorm(x, gf_ref[...], bef_ref[...])
    o_ref[0] = jnp.dot(x, wu_ref[...], preferred_element_type=jnp.float32)


# ------------------- pallas_call wrapper -------------------

def _full_spec(arr):
    n = arr.ndim
    return pl.BlockSpec(arr.shape, lambda b, _n=n: (0,) * _n)


def gpt2_thinking_forward(tokens, params):
    # tokens: (B, S) int32
    B, S = tokens.shape
    tok3 = tokens.reshape(B, S, 1).astype(jnp.int32)

    w_args = (params["embed"], params["pos_embed"],
              params["wqkv"], params["bqkv"], params["wo"], params["bo"],
              params["g1"], params["be1"], params["w1"], params["b1"],
              params["w2"], params["b2"], params["g2"], params["be2"],
              params["gf"], params["bef"], params["unembed_pad"])

    logits_pad = pl.pallas_call(
        fused_forward_kernel,
        out_shape=jax.ShapeDtypeStruct((B, S, D_VOCAB_PAD), jnp.float32),
        grid=(B,),
        in_specs=[pl.BlockSpec((1, S, 1), lambda b: (b, 0, 0))]
                 + [_full_spec(a) for a in w_args],
        out_specs=pl.BlockSpec((1, S, D_VOCAB_PAD), lambda b: (b, 0, 0)),
        compiler_params=pltpu.CompilerParams(dimension_semantics=("parallel",)),
    )(tok3, *w_args)
    return logits_pad[:, :, :D_VOCAB_TOTAL]


gpt2_thinking_forward_jit = jax.jit(gpt2_thinking_forward)


# ------------------- parameter init (deterministic) -------------------

def init_params(key):
    def nrm(k, shape):
        return 0.02 * jax.random.normal(k, shape, dtype=jnp.float32)

    keys = jax.random.split(key, 8)
    params = {
        "embed": nrm(keys[0], (D_VOCAB_TOTAL, D_MODEL)),
        "pos_embed": nrm(keys[1], (SEQ_LEN, D_MODEL)),
        # stacked per-layer weights, pre-transposed to (in, out)
        "wqkv": nrm(keys[2], (N_LAYERS, D_MODEL, 3 * D_MODEL)),
        "bqkv": jnp.zeros((N_LAYERS, 1, 3 * D_MODEL), jnp.float32),
        "wo":   nrm(keys[3], (N_LAYERS, D_MODEL, D_MODEL)),
        "bo":   jnp.zeros((N_LAYERS, 1, D_MODEL), jnp.float32),
        "g1":   jnp.ones((N_LAYERS, 1, D_MODEL), jnp.float32),
        "be1":  jnp.zeros((N_LAYERS, 1, D_MODEL), jnp.float32),
        "w1":   nrm(keys[4], (N_LAYERS, D_MODEL, D_MLP)),
        "b1":   jnp.zeros((N_LAYERS, 1, D_MLP), jnp.float32),
        "w2":   nrm(keys[5], (N_LAYERS, D_MLP, D_MODEL)),
        "b2":   jnp.zeros((N_LAYERS, 1, D_MODEL), jnp.float32),
        "g2":   jnp.ones((N_LAYERS, 1, D_MODEL), jnp.float32),
        "be2":  jnp.zeros((N_LAYERS, 1, D_MODEL), jnp.float32),
        # final layernorm
        "gf": jnp.ones((1, D_MODEL), jnp.float32),
        "bef": jnp.zeros((1, D_MODEL), jnp.float32),
    }
    # unembed (in, out), bias-free; pad out-cols to 384 for lane-dense stores
    wu = nrm(keys[6], (D_MODEL, D_VOCAB_TOTAL))
    params["unembed_pad"] = jnp.pad(
        wu, ((0, 0), (0, D_VOCAB_PAD - D_VOCAB_TOTAL)))
    return params


# TODO(synk): tokenizer encode/decode and the `yap` autoregressive sampling loop
# are host-side control flow with no Pallas equivalent; only forward() is here.

if __name__ == "__main__":
    key = jax.random.PRNGKey(0)
    pkey, tkey = jax.random.split(key)
    params = init_params(pkey)

    B = 2
    tokens = jax.random.randint(tkey, (B, SEQ_LEN), 0, D_VOCAB_TOTAL,
                                dtype=jnp.int32)

    logits = gpt2_thinking_forward_jit(tokens, params)
    logits = jax.block_until_ready(logits)

    assert logits.shape == (B, SEQ_LEN, D_VOCAB_TOTAL), logits.shape
    assert logits.dtype == jnp.float32
    assert bool(jnp.all(jnp.isfinite(logits)))
    print("KERNEL_OK")
</pallas_src>

<mosaic_0001>
module attributes {stable_mosaic.version = 11 : i64} {
  func.func @fused_forward_kernel(%arg0: i32, %arg1: memref<1x16x1xi32, #tpu.memory_space<vmem>>, %arg2: memref<320x64xf32, #tpu.memory_space<vmem>>, %arg3: memref<16x64xf32, #tpu.memory_space<vmem>>, %arg4: memref<2x64x192xf32, #tpu.memory_space<vmem>>, %arg5: memref<2x1x192xf32, #tpu.memory_space<vmem>>, %arg6: memref<2x64x64xf32, #tpu.memory_space<vmem>>, %arg7: memref<2x1x64xf32, #tpu.memory_space<vmem>>, %arg8: memref<2x1x64xf32, #tpu.memory_space<vmem>>, %arg9: memref<2x1x64xf32, #tpu.memory_space<vmem>>, %arg10: memref<2x64x128xf32, #tpu.memory_space<vmem>>, %arg11: memref<2x1x128xf32, #tpu.memory_space<vmem>>, %arg12: memref<2x128x64xf32, #tpu.memory_space<vmem>>, %arg13: memref<2x1x64xf32, #tpu.memory_space<vmem>>, %arg14: memref<2x1x64xf32, #tpu.memory_space<vmem>>, %arg15: memref<2x1x64xf32, #tpu.memory_space<vmem>>, %arg16: memref<1x64xf32, #tpu.memory_space<vmem>>, %arg17: memref<1x64xf32, #tpu.memory_space<vmem>>, %arg18: memref<64x384xf32, #tpu.memory_space<vmem>>, %arg19: memref<1x16x384xf32, #tpu.memory_space<vmem>>) attributes {dimension_semantics = [#tpu.dimension_semantics<parallel>], iteration_bounds = array<i64: 2>, scalar_prefetch = 0 : i64, scratch_operands = 0 : i64, tpu.core_type = #tpu.core_type<tc>, window_params = [{transform_indices = @transform_0, window_bounds = array<i64: 1, 16, 1>}, {pipeline_mode = #tpu.pipeline_mode<synchronous>, transform_indices = @transform_1, window_bounds = array<i64: 320, 64>}, {pipeline_mode = #tpu.pipeline_mode<synchronous>, transform_indices = @transform_2, window_bounds = array<i64: 16, 64>}, {pipeline_mode = #tpu.pipeline_mode<synchronous>, transform_indices = @transform_3, window_bounds = array<i64: 2, 64, 192>}, {pipeline_mode = #tpu.pipeline_mode<synchronous>, transform_indices = @transform_4, window_bounds = array<i64: 2, 1, 192>}, {pipeline_mode = #tpu.pipeline_mode<synchronous>, transform_indices = @transform_5, window_bounds = array<i64: 2, 64, 64>}, {pipeline_mode = #tpu.pipeline_mode<synchronous>, transform_indices = @transform_6, window_bounds = array<i64: 2, 1, 64>}, {pipeline_mode = #tpu.pipeline_mode<synchronous>, transform_indices = @transform_7, window_bounds = array<i64: 2, 1, 64>}, {pipeline_mode = #tpu.pipeline_mode<synchronous>, transform_indices = @transform_8, window_bounds = array<i64: 2, 1, 64>}, {pipeline_mode = #tpu.pipeline_mode<synchronous>, transform_indices = @transform_9, window_bounds = array<i64: 2, 64, 128>}, {pipeline_mode = #tpu.pipeline_mode<synchronous>, transform_indices = @transform_10, window_bounds = array<i64: 2, 1, 128>}, {pipeline_mode = #tpu.pipeline_mode<synchronous>, transform_indices = @transform_11, window_bounds = array<i64: 2, 128, 64>}, {pipeline_mode = #tpu.pipeline_mode<synchronous>, transform_indices = @transform_12, window_bounds = array<i64: 2, 1, 64>}, {pipeline_mode = #tpu.pipeline_mode<synchronous>, transform_indices = @transform_13, window_bounds = array<i64: 2, 1, 64>}, {pipeline_mode = #tpu.pipeline_mode<synchronous>, transform_indices = @transform_14, window_bounds = array<i64: 2, 1, 64>}, {pipeline_mode = #tpu.pipeline_mode<synchronous>, transform_indices = @transform_15, window_bounds = array<i64: 1, 64>}, {pipeline_mode = #tpu.pipeline_mode<synchronous>, transform_indices = @transform_16, window_bounds = array<i64: 1, 64>}, {pipeline_mode = #tpu.pipeline_mode<synchronous>, transform_indices = @transform_17, window_bounds = array<i64: 64, 384>}, {transform_indices = @transform_18, window_bounds = array<i64: 1, 16, 384>}]} {
    %c0 = arith.constant 0 : index
    %c0_0 = arith.constant 0 : index
    %c0_1 = arith.constant 0 : index
    %0 = vector.load %arg1[%c0, %c0_0, %c0_1] : memref<1x16x1xi32, #tpu.memory_space<vmem>>, vector<1x16x1xi32>
    %1 = vector.shape_cast %0 : vector<1x16x1xi32> to vector<16x1xi32>
    %2 = tpu.iota {dimensions = array<i32: 1>} : vector<16x320xi32>
    %3 = vector.broadcast %1 : vector<16x1xi32> to vector<16x320xi32>
    %4 = arith.cmpi eq, %2, %3 : vector<16x320xi32>
    %5 = arith.extui %4 : vector<16x320xi1> to vector<16x320xi32>
    %6 = arith.sitofp %5 : vector<16x320xi32> to vector<16x320xf32>
    %c0_2 = arith.constant 0 : index
    %c0_3 = arith.constant 0 : index
    %7 = vector.load %arg2[%c0_2, %c0_3] : memref<320x64xf32, #tpu.memory_space<vmem>>, vector<320x64xf32>
    %cst = arith.constant dense<0.000000e+00> : vector<16x64xf32>
    %8 = tpu.matmul %6, %7, %cst {dimension_numbers = #tpu.dot_dimension_numbers<[1], [0], [0], [1], [0, 0, 1, 1], [], []>} : vector<16x320xf32>, vector<320x64xf32>, vector<16x64xf32> -> vector<16x64xf32>
    %c0_4 = arith.constant 0 : index
    %c0_5 = arith.constant 0 : index
    %9 = vector.load %arg3[%c0_4, %c0_5] : memref<16x64xf32, #tpu.memory_space<vmem>>, vector<16x64xf32>
    %10 = arith.addf %8, %9 : vector<16x64xf32>
    %11 = tpu.iota {dimensions = array<i32: 0>} : vector<16x16xi32>
    %12 = tpu.iota {dimensions = array<i32: 1>} : vector<16x16xi32>
    %13 = arith.cmpi sgt, %12, %11 : vector<16x16xi32>
    %cst_6 = arith.constant -1.000000e+30 : f32
    %cst_7 = arith.constant 0.000000e+00 : f32
    %14 = vector.broadcast %cst_6 : f32 to vector<16x16xf32>
    %15 = vector.broadcast %cst_7 : f32 to vector<16x16xf32>
    %16 = arith.select %13, %14, %15 : vector<16x16xi1>, vector<16x16xf32>
    %c0_8 = arith.constant 0 : index
    %c0_9 = arith.constant 0 : index
    %c0_10 = arith.constant 0 : index
    %17 = vector.load %arg4[%c0_8, %c0_9, %c0_10] : memref<2x64x192xf32, #tpu.memory_space<vmem>>, vector<1x64x192xf32>
    %18 = vector.shape_cast %17 : vector<1x64x192xf32> to vector<64x192xf32>
    %cst_11 = arith.constant dense<0.000000e+00> : vector<16x192xf32>
    %19 = tpu.matmul %10, %18, %cst_11 {dimension_numbers = #tpu.dot_dimension_numbers<[1], [0], [0], [1], [0, 0, 1, 1], [], []>} : vector<16x64xf32>, vector<64x192xf32>, vector<16x192xf32> -> vector<16x192xf32>
    %c0_12 = arith.constant 0 : index
    %c0_13 = arith.constant 0 : index
    %c0_14 = arith.constant 0 : index
    %20 = vector.load %arg5[%c0_12, %c0_13, %c0_14] : memref<2x1x192xf32, #tpu.memory_space<vmem>>, vector<1x1x192xf32>
    %21 = vector.shape_cast %20 : vector<1x1x192xf32> to vector<1x192xf32>
    %22 = vector.broadcast %21 : vector<1x192xf32> to vector<16x192xf32>
    %23 = arith.addf %19, %22 : vector<16x192xf32>
    %24 = vector.extract_strided_slice %23 {offsets = [0, 0], sizes = [16, 64], strides = [1, 1]} : vector<16x192xf32> to vector<16x64xf32>
    %cst_15 = arith.constant 2.500000e-01 : f32
    %25 = vector.broadcast %cst_15 : f32 to vector<16x64xf32>
    %26 = arith.mulf %24, %25 : vector<16x64xf32>
    %27 = vector.extract_strided_slice %23 {offsets = [0, 64], sizes = [16, 64], strides = [1, 1]} : vector<16x192xf32> to vector<16x64xf32>
    %28 = vector.extract_strided_slice %23 {offsets = [0, 128], sizes = [16, 64], strides = [1, 1]} : vector<16x192xf32> to vector<16x64xf32>
    %c0_16 = arith.constant 0 : index
    %c0_17 = arith.constant 0 : index
    %c0_18 = arith.constant 0 : index
    %29 = vector.load %arg6[%c0_16, %c0_17, %c0_18] : memref<2x64x64xf32, #tpu.memory_space<vmem>>, vector<1x64x64xf32>
    %30 = vector.shape_cast %29 : vector<1x64x64xf32> to vector<64x64xf32>
    %cst_19 = arith.constant 0.000000e+00 : f32
    %31 = vector.broadcast %cst_19 : f32 to vector<16x64xf32>
    %32 = vector.extract_strided_slice %26 {offsets = [0, 0], sizes = [16, 16], strides = [1, 1]} : vector<16x64xf32> to vector<16x16xf32>
    %33 = vector.extract_strided_slice %27 {offsets = [0, 0], sizes = [16, 16], strides = [1, 1]} : vector<16x64xf32> to vector<16x16xf32>
    %cst_20 = arith.constant dense<0.000000e+00> : vector<16x16xf32>
    %34 = tpu.matmul %32, %33, %cst_20 {dimension_numbers = #tpu.dot_dimension_numbers<[1], [1], [0], [0], [0, 0, 1, 0], [], []>} : vector<16x16xf32>, vector<16x16xf32>, vector<16x16xf32> -> vector<16x16xf32>
    %35 = arith.addf %34, %16 : vector<16x16xf32>
    %cst_21 = arith.constant dense<0xFF800000> : vector<16xf32>
    %36 = vector.multi_reduction <maximumf>, %35, %cst_21 [1] : vector<16x16xf32> to vector<16xf32>
    %37 = vector.shape_cast %36 : vector<16xf32> to vector<16x1xf32>
    %38 = vector.broadcast %37 : vector<16x1xf32> to vector<16x16xf32>
    %39 = arith.subf %35, %38 : vector<16x16xf32>
    %40 = math.exp %39 : vector<16x16xf32>
    %cst_22 = arith.constant dense<0.000000e+00> : vector<16xf32>
    %41 = vector.multi_reduction <add>, %40, %cst_22 [1] : vector<16x16xf32> to vector<16xf32>
    %42 = vector.shape_cast %41 : vector<16xf32> to vector<16x1xf32>
    %43 = tpu.reciprocal %42 {approx = true} : vector<16x1xf32> -> vector<16x1xf32>
    %44 = vector.broadcast %43 : vector<16x1xf32> to vector<16x16xf32>
    %45 = arith.mulf %40, %44 : vector<16x16xf32>
    %46 = vector.extract_strided_slice %28 {offsets = [0, 0], sizes = [16, 16], strides = [1, 1]} : vector<16x64xf32> to vector<16x16xf32>
    %cst_23 = arith.constant dense<0.000000e+00> : vector<16x16xf32>
    %47 = tpu.matmul %45, %46, %cst_23 {dimension_numbers = #tpu.dot_dimension_numbers<[1], [0], [0], [1], [0, 0, 1, 1], [], []>} : vector<16x16xf32>, vector<16x16xf32>, vector<16x16xf32> -> vector<16x16xf32>
    %48 = vector.extract_strided_slice %30 {offsets = [0, 0], sizes = [16, 64], strides = [1, 1]} : vector<64x64xf32> to vector<16x64xf32>
    %cst_24 = arith.constant dense<0.000000e+00> : vector<16x64xf32>
    %49 = tpu.matmul %47, %48, %cst_24 {dimension_numbers = #tpu.dot_dimension_numbers<[1], [0], [0], [1], [0, 0, 1, 1], [], []>} : vector<16x16xf32>, vector<16x64xf32>, vector<16x64xf32> -> vector<16x64xf32>
    %50 = arith.addf %31, %49 : vector<16x64xf32>
    %51 = vector.extract_strided_slice %26 {offsets = [0, 16], sizes = [16, 16], strides = [1, 1]} : vector<16x64xf32> to vector<16x16xf32>
    %52 = vector.extract_strided_slice %27 {offsets = [0, 16], sizes = [16, 16], strides = [1, 1]} : vector<16x64xf32> to vector<16x16xf32>
    %cst_25 = arith.constant dense<0.000000e+00> : vector<16x16xf32>
    %53 = tpu.matmul %51, %52, %cst_25 {dimension_numbers = #tpu.dot_dimension_numbers<[1], [1], [0], [0], [0, 0, 1, 0], [], []>} : vector<16x16xf32>, vector<16x16xf32>, vector<16x16xf32> -> vector<16x16xf32>
    %54 = arith.addf %53, %16 : vector<16x16xf32>
    %cst_26 = arith.constant dense<0xFF800000> : vector<16xf32>
    %55 = vector.multi_reduction <maximumf>, %54, %cst_26 [1] : vector<16x16xf32> to vector<16xf32>
    %56 = vector.shape_cast %55 : vector<16xf32> to vector<16x1xf32>
    %57 = vector.broadcast %56 : vector<16x1xf32> to vector<16x16xf32>
    %58 = arith.subf %54, %57 : vector<16x16xf32>
    %59 = math.exp %58 : vector<16x16xf32>
    %cst_27 = arith.constant dense<0.000000e+00> : vector<16xf32>
    %60 = vector.multi_reduction <add>, %59, %cst_27 [1] : vector<16x16xf32> to vector<16xf32>
    %61 = vector.shape_cast %60 : vector<16xf32> to vector<16x1xf32>
    %62 = tpu.reciprocal %61 {approx = true} : vector<16x1xf32> -> vector<16x1xf32>
    %63 = vector.broadcast %62 : vector<16x1xf32> to vector<16x16xf32>
    %64 = arith.mulf %59, %63 : vector<16x16xf32>
    %65 = vector.extract_strided_slice %28 {offsets = [0, 16], sizes = [16, 16], strides = [1, 1]} : vector<16x64xf32> to vector<16x16xf32>
    %cst_28 = arith.constant dense<0.000000e+00> : vector<16x16xf32>
    %66 = tpu.matmul %64, %65, %cst_28 {dimension_numbers = #tpu.dot_dimension_numbers<[1], [0], [0], [1], [0, 0, 1, 1], [], []>} : vector<16x16xf32>, vector<16x16xf32>, vector<16x16xf32> -> vector<16x16xf32>
    %67 = vector.extract_strided_slice %30 {offsets = [16, 0], sizes = [16, 64], strides = [1, 1]} : vector<64x64xf32> to vector<16x64xf32>
    %cst_29 = arith.constant dense<0.000000e+00> : vector<16x64xf32>
    %68 = tpu.matmul %66, %67, %cst_29 {dimension_numbers = #tpu.dot_dimension_numbers<[1], [0], [0], [1], [0, 0, 1, 1], [], []>} : vector<16x16xf32>, vector<16x64xf32>, vector<16x64xf32> -> vector<16x64xf32>
    %69 = arith.addf %50, %68 : vector<16x64xf32>
    %70 = vector.extract_strided_slice %26 {offsets = [0, 32], sizes = [16, 16], strides = [1, 1]} : vector<16x64xf32> to vector<16x16xf32>
    %71 = vector.extract_strided_slice %27 {offsets = [0, 32], sizes = [16, 16], strides = [1, 1]} : vector<16x64xf32> to vector<16x16xf32>
    %cst_30 = arith.constant dense<0.000000e+00> : vector<16x16xf32>
    %72 = tpu.matmul %70, %71, %cst_30 {dimension_numbers = #tpu.dot_dimension_numbers<[1], [1], [0], [0], [0, 0, 1, 0], [], []>} : vector<16x16xf32>, vector<16x16xf32>, vector<16x16xf32> -> vector<16x16xf32>
    %73 = arith.addf %72, %16 : vector<16x16xf32>
    %cst_31 = arith.constant dense<0xFF800000> : vector<16xf32>
    %74 = vector.multi_reduction <maximumf>, %73, %cst_31 [1] : vector<16x16xf32> to vector<16xf32>
    %75 = vector.shape_cast %74 : vector<16xf32> to vector<16x1xf32>
    %76 = vector.broadcast %75 : vector<16x1xf32> to vector<16x16xf32>
    %77 = arith.subf %73, %76 : vector<16x16xf32>
    %78 = math.exp %77 : vector<16x16xf32>
    %cst_32 = arith.constant dense<0.000000e+00> : vector<16xf32>
    %79 = vector.multi_reduction <add>, %78, %cst_32 [1] : vector<16x16xf32> to vector<16xf32>
    %80 = vector.shape_cast %79 : vector<16xf32> to vector<16x1xf32>
    %81 = tpu.reciprocal %80 {approx = true} : vector<16x1xf32> -> vector<16x1xf32>
    %82 = vector.broadcast %81 : vector<16x1xf32> to vector<16x16xf32>
    %83 = arith.mulf %78, %82 : vector<16x16xf32>
    %84 = vector.extract_strided_slice %28 {offsets = [0, 32], sizes = [16, 16], strides = [1, 1]} : vector<16x64xf32> to vector<16x16xf32>
    %cst_33 = arith.constant dense<0.000000e+00> : vector<16x16xf32>
    %85 = tpu.matmul %83, %84, %cst_33 {dimension_numbers = #tpu.dot_dimension_numbers<[1], [0], [0], [1], [0, 0, 1, 1], [], []>} : vector<16x16xf32>, vector<16x16xf32>, vector<16x16xf32> -> vector<16x16xf32>
    %86 = vector.extract_strided_slice %30 {offsets = [32, 0], sizes = [16, 64], strides = [1, 1]} : vector<64x64xf32> to vector<16x64xf32>
    %cst_34 = arith.constant dense<0.000000e+00> : vector<16x64xf32>
    %87 = tpu.matmul %85, %86, %cst_34 {dimension_numbers = #tpu.dot_dimension_numbers<[1], [0], [0], [1], [0, 0, 1, 1], [], []>} : vector<16x16xf32>, vector<16x64xf32>, vector<16x64xf32> -> vector<16x64xf32>
    %88 = arith.addf %69, %87 : vector<16x64xf32>
    %89 = vector.extract_strided_slice %26 {offsets = [0, 48], sizes = [16, 16], strides = [1, 1]} : vector<16x64xf32> to vector<16x16xf32>
    %90 = vector.extract_strided_slice %27 {offsets = [0, 48], sizes = [16, 16], strides = [1, 1]} : vector<16x64xf32> to vector<16x16xf32>
    %cst_35 = arith.constant dense<0.000000e+00> : vector<16x16xf32>
    %91 = tpu.matmul %89, %90, %cst_35 {dimension_numbers = #tpu.dot_dimension_numbers<[1], [1], [0], [0], [0, 0, 1, 0], [], []>} : vector<16x16xf32>, vector<16x16xf32>, vector<16x16xf32> -> vector<16x16xf32>
    %92 = arith.addf %91, %16 : vector<16x16xf32>
    %cst_36 = arith.constant dense<0xFF800000> : vector<16xf32>
    %93 = vector.multi_reduction <maximumf>, %92, %cst_36 [1] : vector<16x16xf32> to vector<16xf32>
    %94 = vector.shape_cast %93 : vector<16xf32> to vector<16x1xf32>
    %95 = vector.broadcast %94 : vector<16x1xf32> to vector<16x16xf32>
    %96 = arith.subf %92, %95 : vector<16x16xf32>
    %97 = math.exp %96 : vector<16x16xf32>
    %cst_37 = arith.constant dense<0.000000e+00> : vector<16xf32>
    %98 = vector.multi_reduction <add>, %97, %cst_37 [1] : vector<16x16xf32> to vector<16xf32>
    %99 = vector.shape_cast %98 : vector<16xf32> to vector<16x1xf32>
    %100 = tpu.reciprocal %99 {approx = true} : vector<16x1xf32> -> vector<16x1xf32>
    %101 = vector.broadcast %100 : vector<16x1xf32> to vector<16x16xf32>
    %102 = arith.mulf %97, %101 : vector<16x16xf32>
    %103 = vector.extract_strided_slice %28 {offsets = [0, 48], sizes = [16, 16], strides = [1, 1]} : vector<16x64xf32> to vector<16x16xf32>
    %cst_38 = arith.constant dense<0.000000e+00> : vector<16x16xf32>
    %104 = tpu.matmul %102, %103, %cst_38 {dimension_numbers = #tpu.dot_dimension_numbers<[1], [0], [0], [1], [0, 0, 1, 1], [], []>} : vector<16x16xf32>, vector<16x16xf32>, vector<16x16xf32> -> vector<16x16xf32>
    %105 = vector.extract_strided_slice %30 {offsets = [48, 0], sizes = [16, 64], strides = [1, 1]} : vector<64x64xf32> to vector<16x64xf32>
    %cst_39 = arith.constant dense<0.000000e+00> : vector<16x64xf32>
    %106 = tpu.matmul %104, %105, %cst_39 {dimension_numbers = #tpu.dot_dimension_numbers<[1], [0], [0], [1], [0, 0, 1, 1], [], []>} : vector<16x16xf32>, vector<16x64xf32>, vector<16x64xf32> -> vector<16x64xf32>
    %107 = arith.addf %88, %106 : vector<16x64xf32>
    %c0_40 = arith.constant 0 : index
    %c0_41 = arith.constant 0 : index
    %c0_42 = arith.constant 0 : index
    %108 = vector.load %arg7[%c0_40, %c0_41, %c0_42] : memref<2x1x64xf32, #tpu.memory_space<vmem>>, vector<1x1x64xf32>
    %109 = vector.shape_cast %108 : vector<1x1x64xf32> to vector<1x64xf32>
    %110 = vector.broadcast %109 : vector<1x64xf32> to vector<16x64xf32>
    %111 = arith.addf %107, %110 : vector<16x64xf32>
    %112 = arith.addf %10, %111 : vector<16x64xf32>
    %c0_43 = arith.constant 0 : index
    %c0_44 = arith.constant 0 : index
    %c0_45 = arith.constant 0 : index
    %113 = vector.load %arg8[%c0_43, %c0_44, %c0_45] : memref<2x1x64xf32, #tpu.memory_space<vmem>>, vector<1x1x64xf32>
    %114 = vector.shape_cast %113 : vector<1x1x64xf32> to vector<1x64xf32>
    %c0_46 = arith.constant 0 : index
    %c0_47 = arith.constant 0 : index
    %c0_48 = arith.constant 0 : index
    %115 = vector.load %arg9[%c0_46, %c0_47, %c0_48] : memref<2x1x64xf32, #tpu.memory_space<vmem>>, vector<1x1x64xf32>
    %116 = vector.shape_cast %115 : vector<1x1x64xf32> to vector<1x64xf32>
    %cst_49 = arith.constant dense<0.000000e+00> : vector<16xf32>
    %117 = vector.multi_reduction <add>, %112, %cst_49 [1] : vector<16x64xf32> to vector<16xf32>
    %118 = vector.shape_cast %117 : vector<16xf32> to vector<16x1xf32>
    %cst_50 = arith.constant 6.400000e+01 : f32
    %119 = vector.broadcast %cst_50 : f32 to vector<16x1xf32>
    %120 = arith.divf %118, %119 : vector<16x1xf32>
    %121 = vector.broadcast %120 : vector<16x1xf32> to vector<16x64xf32>
    %122 = arith.subf %112, %121 : vector<16x64xf32>
    %123 = arith.mulf %122, %122 : vector<16x64xf32>
    %cst_51 = arith.constant dense<0.000000e+00> : vector<16xf32>
    %124 = vector.multi_reduction <add>, %123, %cst_51 [1] : vector<16x64xf32> to vector<16xf32>
    %125 = vector.shape_cast %124 : vector<16xf32> to vector<16x1xf32>
    %cst_52 = arith.constant 6.400000e+01 : f32
    %126 = vector.broadcast %cst_52 : f32 to vector<16x1xf32>
    %127 = arith.divf %125, %126 : vector<16x1xf32>
    %128 = vector.broadcast %120 : vector<16x1xf32> to vector<16x64xf32>
    %129 = arith.subf %112, %128 : vector<16x64xf32>
    %cst_53 = arith.constant 9.99999974E-6 : f32
    %130 = vector.broadcast %cst_53 : f32 to vector<16x1xf32>
    %131 = arith.addf %127, %130 : vector<16x1xf32>
    %132 = math.rsqrt %131 : vector<16x1xf32>
    %133 = vector.broadcast %132 : vector<16x1xf32> to vector<16x64xf32>
    %134 = arith.mulf %129, %133 : vector<16x64xf32>
    %135 = vector.broadcast %114 : vector<1x64xf32> to vector<16x64xf32>
    %136 = arith.mulf %134, %135 : vector<16x64xf32>
    %137 = vector.broadcast %116 : vector<1x64xf32> to vector<16x64xf32>
    %138 = arith.addf %136, %137 : vector<16x64xf32>
    %c0_54 = arith.constant 0 : index
    %c0_55 = arith.constant 0 : index
    %c0_56 = arith.constant 0 : index
    %139 = vector.load %arg10[%c0_54, %c0_55, %c0_56] : memref<2x64x128xf32, #tpu.memory_space<vmem>>, vector<1x64x128xf32>
    %140 = vector.shape_cast %139 : vector<1x64x128xf32> to vector<64x128xf32>
    %cst_57 = arith.constant dense<0.000000e+00> : vector<16x128xf32>
    %141 = tpu.matmul %138, %140, %cst_57 {dimension_numbers = #tpu.dot_dimension_numbers<[1], [0], [0], [1], [0, 0, 1, 1], [], []>} : vector<16x64xf32>, vector<64x128xf32>, vector<16x128xf32> -> vector<16x128xf32>
    %c0_58 = arith.constant 0 : index
    %c0_59 = arith.constant 0 : index
    %c0_60 = arith.constant 0 : index
    %142 = vector.load %arg11[%c0_58, %c0_59, %c0_60] : memref<2x1x128xf32, #tpu.memory_space<vmem>>, vector<1x1x128xf32>
    %143 = vector.shape_cast %142 : vector<1x1x128xf32> to vector<1x128xf32>
    %144 = vector.broadcast %143 : vector<1x128xf32> to vector<16x128xf32>
    %145 = arith.addf %141, %144 : vector<16x128xf32>
    %cst_61 = arith.constant 0.000000e+00 : f32
    %146 = vector.broadcast %cst_61 : f32 to vector<16x128xf32>
    %147 = arith.maximumf %145, %146 : vector<16x128xf32>
    %c0_62 = arith.constant 0 : index
    %c0_63 = arith.constant 0 : index
    %c0_64 = arith.constant 0 : index
    %148 = vector.load %arg12[%c0_62, %c0_63, %c0_64] : memref<2x128x64xf32, #tpu.memory_space<vmem>>, vector<1x128x64xf32>
    %149 = vector.shape_cast %148 : vector<1x128x64xf32> to vector<128x64xf32>
    %cst_65 = arith.constant dense<0.000000e+00> : vector<16x64xf32>
    %150 = tpu.matmul %147, %149, %cst_65 {dimension_numbers = #tpu.dot_dimension_numbers<[1], [0], [0], [1], [0, 0, 1, 1], [], []>} : vector<16x128xf32>, vector<128x64xf32>, vector<16x64xf32> -> vector<16x64xf32>
    %c0_66 = arith.constant 0 : index
    %c0_67 = arith.constant 0 : index
    %c0_68 = arith.constant 0 : index
    %151 = vector.load %arg13[%c0_66, %c0_67, %c0_68] : memref<2x1x64xf32, #tpu.memory_space<vmem>>, vector<1x1x64xf32>
    %152 = vector.shape_cast %151 : vector<1x1x64xf32> to vector<1x64xf32>
    %153 = vector.broadcast %152 : vector<1x64xf32> to vector<16x64xf32>
    %154 = arith.addf %150, %153 : vector<16x64xf32>
    %155 = arith.addf %138, %154 : vector<16x64xf32>
    %c0_69 = arith.constant 0 : index
    %c0_70 = arith.constant 0 : index
    %c0_71 = arith.constant 0 : index
    %156 = vector.load %arg14[%c0_69, %c0_70, %c0_71] : memref<2x1x64xf32, #tpu.memory_space<vmem>>, vector<1x1x64xf32>
    %157 = vector.shape_cast %156 : vector<1x1x64xf32> to vector<1x64xf32>
    %c0_72 = arith.constant 0 : index
    %c0_73 = arith.constant 0 : index
    %c0_74 = arith.constant 0 : index
    %158 = vector.load %arg15[%c0_72, %c0_73, %c0_74] : memref<2x1x64xf32, #tpu.memory_space<vmem>>, vector<1x1x64xf32>
    %159 = vector.shape_cast %158 : vector<1x1x64xf32> to vector<1x64xf32>
    %cst_75 = arith.constant dense<0.000000e+00> : vector<16xf32>
    %160 = vector.multi_reduction <add>, %155, %cst_75 [1] : vector<16x64xf32> to vector<16xf32>
    %161 = vector.shape_cast %160 : vector<16xf32> to vector<16x1xf32>
    %cst_76 = arith.constant 6.400000e+01 : f32
    %162 = vector.broadcast %cst_76 : f32 to vector<16x1xf32>
    %163 = arith.divf %161, %162 : vector<16x1xf32>
    %164 = vector.broadcast %163 : vector<16x1xf32> to vector<16x64xf32>
    %165 = arith.subf %155, %164 : vector<16x64xf32>
    %166 = arith.mulf %165, %165 : vector<16x64xf32>
    %cst_77 = arith.constant dense<0.000000e+00> : vector<16xf32>
    %167 = vector.multi_reduction <add>, %166, %cst_77 [1] : vector<16x64xf32> to vector<16xf32>
    %168 = vector.shape_cast %167 : vector<16xf32> to vector<16x1xf32>
    %cst_78 = arith.constant 6.400000e+01 : f32
    %169 = vector.broadcast %cst_78 : f32 to vector<16x1xf32>
    %170 = arith.divf %168, %169 : vector<16x1xf32>
    %171 = vector.broadcast %163 : vector<16x1xf32> to vector<16x64xf32>
    %172 = arith.subf %155, %171 : vector<16x64xf32>
    %cst_79 = arith.constant 9.99999974E-6 : f32
    %173 = vector.broadcast %cst_79 : f32 to vector<16x1xf32>
    %174 = arith.addf %170, %173 : vector<16x1xf32>
    %175 = math.rsqrt %174 : vector<16x1xf32>
    %176 = vector.broadcast %175 : vector<16x1xf32> to vector<16x64xf32>
    %177 = arith.mulf %172, %176 : vector<16x64xf32>
    %178 = vector.broadcast %157 : vector<1x64xf32> to vector<16x64xf32>
    %179 = arith.mulf %177, %178 : vector<16x64xf32>
    %180 = vector.broadcast %159 : vector<1x64xf32> to vector<16x64xf32>
    %181 = arith.addf %179, %180 : vector<16x64xf32>
    %c1 = arith.constant 1 : index
    %c0_80 = arith.constant 0 : index
    %c0_81 = arith.constant 0 : index
    %182 = vector.load %arg4[%c1, %c0_80, %c0_81] : memref<2x64x192xf32, #tpu.memory_space<vmem>>, vector<1x64x192xf32>
    %183 = vector.shape_cast %182 : vector<1x64x192xf32> to vector<64x192xf32>
    %cst_82 = arith.constant dense<0.000000e+00> : vector<16x192xf32>
    %184 = tpu.matmul %181, %183, %cst_82 {dimension_numbers = #tpu.dot_dimension_numbers<[1], [0], [0], [1], [0, 0, 1, 1], [], []>} : vector<16x64xf32>, vector<64x192xf32>, vector<16x192xf32> -> vector<16x192xf32>
    %c1_83 = arith.constant 1 : index
    %c0_84 = arith.constant 0 : index
    %c0_85 = arith.constant 0 : index
    %185 = vector.load %arg5[%c1_83, %c0_84, %c0_85] : memref<2x1x192xf32, #tpu.memory_space<vmem>>, vector<1x1x192xf32>
    %186 = vector.shape_cast %185 : vector<1x1x192xf32> to vector<1x192xf32>
    %187 = vector.broadcast %186 : vector<1x192xf32> to vector<16x192xf32>
    %188 = arith.addf %184, %187 : vector<16x192xf32>
    %189 = vector.extract_strided_slice %188 {offsets = [0, 0], sizes = [16, 64], strides = [1, 1]} : vector<16x192xf32> to vector<16x64xf32>
    %cst_86 = arith.constant 2.500000e-01 : f32
    %190 = vector.broadcast %cst_86 : f32 to vector<16x64xf32>
    %191 = arith.mulf %189, %190 : vector<16x64xf32>
    %192 = vector.extract_strided_slice %188 {offsets = [0, 64], sizes = [16, 64], strides = [1, 1]} : vector<16x192xf32> to vector<16x64xf32>
    %193 = vector.extract_strided_slice %188 {offsets = [0, 128], sizes = [16, 64], strides = [1, 1]} : vector<16x192xf32> to vector<16x64xf32>
    %c1_87 = arith.constant 1 : index
    %c0_88 = arith.constant 0 : index
    %c0_89 = arith.constant 0 : index
    %194 = vector.load %arg6[%c1_87, %c0_88, %c0_89] : memref<2x64x64xf32, #tpu.memory_space<vmem>>, vector<1x64x64xf32>
    %195 = vector.shape_cast %194 : vector<1x64x64xf32> to vector<64x64xf32>
    %cst_90 = arith.constant 0.000000e+00 : f32
    %196 = vector.broadcast %cst_90 : f32 to vector<16x64xf32>
    %197 = vector.extract_strided_slice %191 {offsets = [0, 0], sizes = [16, 16], strides = [1, 1]} : vector<16x64xf32> to vector<16x16xf32>
    %198 = vector.extract_strided_slice %192 {offsets = [0, 0], sizes = [16, 16], strides = [1, 1]} : vector<16x64xf32> to vector<16x16xf32>
    %cst_91 = arith.constant dense<0.000000e+00> : vector<16x16xf32>
    %199 = tpu.matmul %197, %198, %cst_91 {dimension_numbers = #tpu.dot_dimension_numbers<[1], [1], [0], [0], [0, 0, 1, 0], [], []>} : vector<16x16xf32>, vector<16x16xf32>, vector<16x16xf32> -> vector<16x16xf32>
    %200 = arith.addf %199, %16 : vector<16x16xf32>
    %cst_92 = arith.constant dense<0xFF800000> : vector<16xf32>
    %201 = vector.multi_reduction <maximumf>, %200, %cst_92 [1] : vector<16x16xf32> to vector<16xf32>
    %202 = vector.shape_cast %201 : vector<16xf32> to vector<16x1xf32>
    %203 = vector.broadcast %202 : vector<16x1xf32> to vector<16x16xf32>
    %204 = arith.subf %200, %203 : vector<16x16xf32>
    %205 = math.exp %204 : vector<16x16xf32>
    %cst_93 = arith.constant dense<0.000000e+00> : vector<16xf32>
    %206 = vector.multi_reduction <add>, %205, %cst_93 [1] : vector<16x16xf32> to vector<16xf32>
    %207 = vector.shape_cast %206 : vector<16xf32> to vector<16x1xf32>
    %208 = tpu.reciprocal %207 {approx = true} : vector<16x1xf32> -> vector<16x1xf32>
    %209 = vector.broadcast %208 : vector<16x1xf32> to vector<16x16xf32>
    %210 = arith.mulf %205, %209 : vector<16x16xf32>
    %211 = vector.extract_strided_slice %193 {offsets = [0, 0], sizes = [16, 16], strides = [1, 1]} : vector<16x64xf32> to vector<16x16xf32>
    %cst_94 = arith.constant dense<0.000000e+00> : vector<16x16xf32>
    %212 = tpu.matmul %210, %211, %cst_94 {dimension_numbers = #tpu.dot_dimension_numbers<[1], [0], [0], [1], [0, 0, 1, 1], [], []>} : vector<16x16xf32>, vector<16x16xf32>, vector<16x16xf32> -> vector<16x16xf32>
    %213 = vector.extract_strided_slice %195 {offsets = [0, 0], sizes = [16, 64], strides = [1, 1]} : vector<64x64xf32> to vector<16x64xf32>
    %cst_95 = arith.constant dense<0.000000e+00> : vector<16x64xf32>
    %214 = tpu.matmul %212, %213, %cst_95 {dimension_numbers = #tpu.dot_dimension_numbers<[1], [0], [0], [1], [0, 0, 1, 1], [], []>} : vector<16x16xf32>, vector<16x64xf32>, vector<16x64xf32> -> vector<16x64xf32>
    %215 = arith.addf %196, %214 : vector<16x64xf32>
    %216 = vector.extract_strided_slice %191 {offsets = [0, 16], sizes = [16, 16], strides = [1, 1]} : vector<16x64xf32> to vector<16x16xf32>
    %217 = vector.extract_strided_slice %192 {offsets = [0, 16], sizes = [16, 16], strides = [1, 1]} : vector<16x64xf32> to vector<16x16xf32>
    %cst_96 = arith.constant dense<0.000000e+00> : vector<16x16xf32>
    %218 = tpu.matmul %216, %217, %cst_96 {dimension_numbers = #tpu.dot_dimension_numbers<[1], [1], [0], [0], [0, 0, 1, 0], [], []>} : vector<16x16xf32>, vector<16x16xf32>, vector<16x16xf32> -> vector<16x16xf32>
    %219 = arith.addf %218, %16 : vector<16x16xf32>
    %cst_97 = arith.constant dense<0xFF800000> : vector<16xf32>
    %220 = vector.multi_reduction <maximumf>, %219, %cst_97 [1] : vector<16x16xf32> to vector<16xf32>
    %221 = vector.shape_cast %220 : vector<16xf32> to vector<16x1xf32>
    %222 = vector.broadcast %221 : vector<16x1xf32> to vector<16x16xf32>
    %223 = arith.subf %219, %222 : vector<16x16xf32>
    %224 = math.exp %223 : vector<16x16xf32>
    %cst_98 = arith.constant dense<0.000000e+00> : vector<16xf32>
    %225 = vector.multi_reduction <add>, %224, %cst_98 [1] : vector<16x16xf32> to vector<16xf32>
    %226 = vector.shape_cast %225 : vector<16xf32> to vector<16x1xf32>
    %227 = tpu.reciprocal %226 {approx = true} : vector<16x1xf32> -> vector<16x1xf32>
    %228 = vector.broadcast %227 : vector<16x1xf32> to vector<16x16xf32>
    %229 = arith.mulf %224, %228 : vector<16x16xf32>
    %230 = vector.extract_strided_slice %193 {offsets = [0, 16], sizes = [16, 16], strides = [1, 1]} : vector<16x64xf32> to vector<16x16xf32>
    %cst_99 = arith.constant dense<0.000000e+00> : vector<16x16xf32>
    %231 = tpu.matmul %229, %230, %cst_99 {dimension_numbers = #tpu.dot_dimension_numbers<[1], [0], [0], [1], [0, 0, 1, 1], [], []>} : vector<16x16xf32>, vector<16x16xf32>, vector<16x16xf32> -> vector<16x16xf32>
    %232 = vector.extract_strided_slice %195 {offsets = [16, 0], sizes = [16, 64], strides = [1, 1]} : vector<64x64xf32> to vector<16x64xf32>
    %cst_100 = arith.constant dense<0.000000e+00> : vector<16x64xf32>
    %233 = tpu.matmul %231, %232, %cst_100 {dimension_numbers = #tpu.dot_dimension_numbers<[1], [0], [0], [1], [0, 0, 1, 1], [], []>} : vector<16x16xf32>, vector<16x64xf32>, vector<16x64xf32> -> vector<16x64xf32>
    %234 = arith.addf %215, %233 : vector<16x64xf32>
    %235 = vector.extract_strided_slice %191 {offsets = [0, 32], sizes = [16, 16], strides = [1, 1]} : vector<16x64xf32> to vector<16x16xf32>
    %236 = vector.extract_strided_slice %192 {offsets = [0, 32], sizes = [16, 16], strides = [1, 1]} : vector<16x64xf32> to vector<16x16xf32>
    %cst_101 = arith.constant dense<0.000000e+00> : vector<16x16xf32>
    %237 = tpu.matmul %235, %236, %cst_101 {dimension_numbers = #tpu.dot_dimension_numbers<[1], [1], [0], [0], [0, 0, 1, 0], [], []>} : vector<16x16xf32>, vector<16x16xf32>, vector<16x16xf32> -> vector<16x16xf32>
    %238 = arith.addf %237, %16 : vector<16x16xf32>
    %cst_102 = arith.constant dense<0xFF800000> : vector<16xf32>
    %239 = vector.multi_reduction <maximumf>, %238, %cst_102 [1] : vector<16x16xf32> to vector<16xf32>
    %240 = vector.shape_cast %239 : vector<16xf32> to vector<16x1xf32>
    %241 = vector.broadcast %240 : vector<16x1xf32> to vector<16x16xf32>
    %242 = arith.subf %238, %241 : vector<16x16xf32>
    %243 = math.exp %242 : vector<16x16xf32>
    %cst_103 = arith.constant dense<0.000000e+00> : vector<16xf32>
    %244 = vector.multi_reduction <add>, %243, %cst_103 [1] : vector<16x16xf32> to vector<16xf32>
    %245 = vector.shape_cast %244 : vector<16xf32> to vector<16x1xf32>
    %246 = tpu.reciprocal %245 {approx = true} : vector<16x1xf32> -> vector<16x1xf32>
    %247 = vector.broadcast %246 : vector<16x1xf32> to vector<16x16xf32>
    %248 = arith.mulf %243, %247 : vector<16x16xf32>
    %249 = vector.extract_strided_slice %193 {offsets = [0, 32], sizes = [16, 16], strides = [1, 1]} : vector<16x64xf32> to vector<16x16xf32>
    %cst_104 = arith.constant dense<0.000000e+00> : vector<16x16xf32>
    %250 = tpu.matmul %248, %249, %cst_104 {dimension_numbers = #tpu.dot_dimension_numbers<[1], [0], [0], [1], [0, 0, 1, 1], [], []>} : vector<16x16xf32>, vector<16x16xf32>, vector<16x16xf32> -> vector<16x16xf32>
    %251 = vector.extract_strided_slice %195 {offsets = [32, 0], sizes = [16, 64], strides = [1, 1]} : vector<64x64xf32> to vector<16x64xf32>
    %cst_105 = arith.constant dense<0.000000e+00> : vector<16x64xf32>
    %252 = tpu.matmul %250, %251, %cst_105 {dimension_numbers = #tpu.dot_dimension_numbers<[1], [0], [0], [1], [0, 0, 1, 1], [], []>} : vector<16x16xf32>, vector<16x64xf32>, vector<16x64xf32> -> vector<16x64xf32>
    %253 = arith.addf %234, %252 : vector<16x64xf32>
    %254 = vector.extract_strided_slice %191 {offsets = [0, 48], sizes = [16, 16], strides = [1, 1]} : vector<16x64xf32> to vector<16x16xf32>
    %255 = vector.extract_strided_slice %192 {offsets = [0, 48], sizes = [16, 16], strides = [1, 1]} : vector<16x64xf32> to vector<16x16xf32>
    %cst_106 = arith.constant dense<0.000000e+00> : vector<16x16xf32>
    %256 = tpu.matmul %254, %255, %cst_106 {dimension_numbers = #tpu.dot_dimension_numbers<[1], [1], [0], [0], [0, 0, 1, 0], [], []>} : vector<16x16xf32>, vector<16x16xf32>, vector<16x16xf32> -> vector<16x16xf32>
    %257 = arith.addf %256, %16 : vector<16x16xf32>
    %cst_107 = arith.constant dense<0xFF800000> : vector<16xf32>
    %258 = vector.multi_reduction <maximumf>, %257, %cst_107 [1] : vector<16x16xf32> to vector<16xf32>
    %259 = vector.shape_cast %258 : vector<16xf32> to vector<16x1xf32>
    %260 = vector.broadcast %259 : vector<16x1xf32> to vector<16x16xf32>
    %261 = arith.subf %257, %260 : vector<16x16xf32>
    %262 = math.exp %261 : vector<16x16xf32>
    %cst_108 = arith.constant dense<0.000000e+00> : vector<16xf32>
    %263 = vector.multi_reduction <add>, %262, %cst_108 [1] : vector<16x16xf32> to vector<16xf32>
    %264 = vector.shape_cast %263 : vector<16xf32> to vector<16x1xf32>
    %265 = tpu.reciprocal %264 {approx = true} : vector<16x1xf32> -> vector<16x1xf32>
    %266 = vector.broadcast %265 : vector<16x1xf32> to vector<16x16xf32>
    %267 = arith.mulf %262, %266 : vector<16x16xf32>
    %268 = vector.extract_strided_slice %193 {offsets = [0, 48], sizes = [16, 16], strides = [1, 1]} : vector<16x64xf32> to vector<16x16xf32>
    %cst_109 = arith.constant dense<0.000000e+00> : vector<16x16xf32>
    %269 = tpu.matmul %267, %268, %cst_109 {dimension_numbers = #tpu.dot_dimension_numbers<[1], [0], [0], [1], [0, 0, 1, 1], [], []>} : vector<16x16xf32>, vector<16x16xf32>, vector<16x16xf32> -> vector<16x16xf32>
    %270 = vector.extract_strided_slice %195 {offsets = [48, 0], sizes = [16, 64], strides = [1, 1]} : vector<64x64xf32> to vector<16x64xf32>
    %cst_110 = arith.constant dense<0.000000e+00> : vector<16x64xf32>
    %271 = tpu.matmul %269, %270, %cst_110 {dimension_numbers = #tpu.dot_dimension_numbers<[1], [0], [0], [1], [0, 0, 1, 1], [], []>} : vector<16x16xf32>, vector<16x64xf32>, vector<16x64xf32> -> vector<16x64xf32>
    %272 = arith.addf %253, %271 : vector<16x64xf32>
    %c1_111 = arith.constant 1 : index
    %c0_112 = arith.constant 0 : index
    %c0_113 = arith.constant 0 : index
    %273 = vector.load %arg7[%c1_111, %c0_112, %c0_113] : memref<2x1x64xf32, #tpu.memory_space<vmem>>, vector<1x1x64xf32>
    %274 = vector.shape_cast %273 : vector<1x1x64xf32> to vector<1x64xf32>
    %275 = vector.broadcast %274 : vector<1x64xf32> to vector<16x64xf32>
    %276 = arith.addf %272, %275 : vector<16x64xf32>
    %277 = arith.addf %181, %276 : vector<16x64xf32>
    %c1_114 = arith.constant 1 : index
    %c0_115 = arith.constant 0 : index
    %c0_116 = arith.constant 0 : index
    %278 = vector.load %arg8[%c1_114, %c0_115, %c0_116] : memref<2x1x64xf32, #tpu.memory_space<vmem>>, vector<1x1x64xf32>
    %279 = vector.shape_cast %278 : vector<1x1x64xf32> to vector<1x64xf32>
    %c1_117 = arith.constant 1 : index
    %c0_118 = arith.constant 0 : index
    %c0_119 = arith.constant 0 : index
    %280 = vector.load %arg9[%c1_117, %c0_118, %c0_119] : memref<2x1x64xf32, #tpu.memory_space<vmem>>, vector<1x1x64xf32>
    %281 = vector.shape_cast %280 : vector<1x1x64xf32> to vector<1x64xf32>
    %cst_120 = arith.constant dense<0.000000e+00> : vector<16xf32>
    %282 = vector.multi_reduction <add>, %277, %cst_120 [1] : vector<16x64xf32> to vector<16xf32>
    %283 = vector.shape_cast %282 : vector<16xf32> to vector<16x1xf32>
    %cst_121 = arith.constant 6.400000e+01 : f32
    %284 = vector.broadcast %cst_121 : f32 to vector<16x1xf32>
    %285 = arith.divf %283, %284 : vector<16x1xf32>
    %286 = vector.broadcast %285 : vector<16x1xf32> to vector<16x64xf32>
    %287 = arith.subf %277, %286 : vector<16x64xf32>
    %288 = arith.mulf %287, %287 : vector<16x64xf32>
    %cst_122 = arith.constant dense<0.000000e+00> : vector<16xf32>
    %289 = vector.multi_reduction <add>, %288, %cst_122 [1] : vector<16x64xf32> to vector<16xf32>
    %290 = vector.shape_cast %289 : vector<16xf32> to vector<16x1xf32>
    %cst_123 = arith.constant 6.400000e+01 : f32
    %291 = vector.broadcast %cst_123 : f32 to vector<16x1xf32>
    %292 = arith.divf %290, %291 : vector<16x1xf32>
    %293 = vector.broadcast %285 : vector<16x1xf32> to vector<16x64xf32>
    %294 = arith.subf %277, %293 : vector<16x64xf32>
    %cst_124 = arith.constant 9.99999974E-6 : f32
    %295 = vector.broadcast %cst_124 : f32 to vector<16x1xf32>
    %296 = arith.addf %292, %295 : vector<16x1xf32>
    %297 = math.rsqrt %296 : vector<16x1xf32>
    %298 = vector.broadcast %297 : vector<16x1xf32> to vector<16x64xf32>
    %299 = arith.mulf %294, %298 : vector<16x64xf32>
    %300 = vector.broadcast %279 : vector<1x64xf32> to vector<16x64xf32>
    %301 = arith.mulf %299, %300 : vector<16x64xf32>
    %302 = vector.broadcast %281 : vector<1x64xf32> to vector<16x64xf32>
    %303 = arith.addf %301, %302 : vector<16x64xf32>
    %c1_125 = arith.constant 1 : index
    %c0_126 = arith.constant 0 : index
    %c0_127 = arith.constant 0 : index
    %304 = vector.load %arg10[%c1_125, %c0_126, %c0_127] : memref<2x64x128xf32, #tpu.memory_space<vmem>>, vector<1x64x128xf32>
    %305 = vector.shape_cast %304 : vector<1x64x128xf32> to vector<64x128xf32>
    %cst_128 = arith.constant dense<0.000000e+00> : vector<16x128xf32>
    %306 = tpu.matmul %303, %305, %cst_128 {dimension_numbers = #tpu.dot_dimension_numbers<[1], [0], [0], [1], [0, 0, 1, 1], [], []>} : vector<16x64xf32>, vector<64x128xf32>, vector<16x128xf32> -> vector<16x128xf32>
    %c1_129 = arith.constant 1 : index
    %c0_130 = arith.constant 0 : index
    %c0_131 = arith.constant 0 : index
    %307 = vector.load %arg11[%c1_129, %c0_130, %c0_131] : memref<2x1x128xf32, #tpu.memory_space<vmem>>, vector<1x1x128xf32>
    %308 = vector.shape_cast %307 : vector<1x1x128xf32> to vector<1x128xf32>
    %309 = vector.broadcast %308 : vector<1x128xf32> to vector<16x128xf32>
    %310 = arith.addf %306, %309 : vector<16x128xf32>
    %cst_132 = arith.constant 0.000000e+00 : f32
    %311 = vector.broadcast %cst_132 : f32 to vector<16x128xf32>
    %312 = arith.maximumf %310, %311 : vector<16x128xf32>
    %c1_133 = arith.constant 1 : index
    %c0_134 = arith.constant 0 : index
    %c0_135 = arith.constant 0 : index
    %313 = vector.load %arg12[%c1_133, %c0_134, %c0_135] : memref<2x128x64xf32, #tpu.memory_space<vmem>>, vector<1x128x64xf32>
    %314 = vector.shape_cast %313 : vector<1x128x64xf32> to vector<128x64xf32>
    %cst_136 = arith.constant dense<0.000000e+00> : vector<16x64xf32>
    %315 = tpu.matmul %312, %314, %cst_136 {dimension_numbers = #tpu.dot_dimension_numbers<[1], [0], [0], [1], [0, 0, 1, 1], [], []>} : vector<16x128xf32>, vector<128x64xf32>, vector<16x64xf32> -> vector<16x64xf32>
    %c1_137 = arith.constant 1 : index
    %c0_138 = arith.constant 0 : index
    %c0_139 = arith.constant 0 : index
    %316 = vector.load %arg13[%c1_137, %c0_138, %c0_139] : memref<2x1x64xf32, #tpu.memory_space<vmem>>, vector<1x1x64xf32>
    %317 = vector.shape_cast %316 : vector<1x1x64xf32> to vector<1x64xf32>
    %318 = vector.broadcast %317 : vector<1x64xf32> to vector<16x64xf32>
    %319 = arith.addf %315, %318 : vector<16x64xf32>
    %320 = arith.addf %303, %319 : vector<16x64xf32>
    %c1_140 = arith.constant 1 : index
    %c0_141 = arith.constant 0 : index
    %c0_142 = arith.constant 0 : index
    %321 = vector.load %arg14[%c1_140, %c0_141, %c0_142] : memref<2x1x64xf32, #tpu.memory_space<vmem>>, vector<1x1x64xf32>
    %322 = vector.shape_cast %321 : vector<1x1x64xf32> to vector<1x64xf32>
    %c1_143 = arith.constant 1 : index
    %c0_144 = arith.constant 0 : index
    %c0_145 = arith.constant 0 : index
    %323 = vector.load %arg15[%c1_143, %c0_144, %c0_145] : memref<2x1x64xf32, #tpu.memory_space<vmem>>, vector<1x1x64xf32>
    %324 = vector.shape_cast %323 : vector<1x1x64xf32> to vector<1x64xf32>
    %cst_146 = arith.constant dense<0.000000e+00> : vector<16xf32>
    %325 = vector.multi_reduction <add>, %320, %cst_146 [1] : vector<16x64xf32> to vector<16xf32>
    %326 = vector.shape_cast %325 : vector<16xf32> to vector<16x1xf32>
    %cst_147 = arith.constant 6.400000e+01 : f32
    %327 = vector.broadcast %cst_147 : f32 to vector<16x1xf32>
    %328 = arith.divf %326, %327 : vector<16x1xf32>
    %329 = vector.broadcast %328 : vector<16x1xf32> to vector<16x64xf32>
    %330 = arith.subf %320, %329 : vector<16x64xf32>
    %331 = arith.mulf %330, %330 : vector<16x64xf32>
    %cst_148 = arith.constant dense<0.000000e+00> : vector<16xf32>
    %332 = vector.multi_reduction <add>, %331, %cst_148 [1] : vector<16x64xf32> to vector<16xf32>
    %333 = vector.shape_cast %332 : vector<16xf32> to vector<16x1xf32>
    %cst_149 = arith.constant 6.400000e+01 : f32
    %334 = vector.broadcast %cst_149 : f32 to vector<16x1xf32>
    %335 = arith.divf %333, %334 : vector<16x1xf32>
    %336 = vector.broadcast %328 : vector<16x1xf32> to vector<16x64xf32>
    %337 = arith.subf %320, %336 : vector<16x64xf32>
    %cst_150 = arith.constant 9.99999974E-6 : f32
    %338 = vector.broadcast %cst_150 : f32 to vector<16x1xf32>
    %339 = arith.addf %335, %338 : vector<16x1xf32>
    %340 = math.rsqrt %339 : vector<16x1xf32>
    %341 = vector.broadcast %340 : vector<16x1xf32> to vector<16x64xf32>
    %342 = arith.mulf %337, %341 : vector<16x64xf32>
    %343 = vector.broadcast %322 : vector<1x64xf32> to vector<16x64xf32>
    %344 = arith.mulf %342, %343 : vector<16x64xf32>
    %345 = vector.broadcast %324 : vector<1x64xf32> to vector<16x64xf32>
    %346 = arith.addf %344, %345 : vector<16x64xf32>
    %c0_151 = arith.constant 0 : index
    %c0_152 = arith.constant 0 : index
    %347 = vector.load %arg16[%c0_151, %c0_152] : memref<1x64xf32, #tpu.memory_space<vmem>>, vector<1x64xf32>
    %c0_153 = arith.constant 0 : index
    %c0_154 = arith.constant 0 : index
    %348 = vector.load %arg17[%c0_153, %c0_154] : memref<1x64xf32, #tpu.memory_space<vmem>>, vector<1x64xf32>
    %cst_155 = arith.constant dense<0.000000e+00> : vector<16xf32>
    %349 = vector.multi_reduction <add>, %346, %cst_155 [1] : vector<16x64xf32> to vector<16xf32>
    %350 = vector.shape_cast %349 : vector<16xf32> to vector<16x1xf32>
    %cst_156 = arith.constant 6.400000e+01 : f32
    %351 = vector.broadcast %cst_156 : f32 to vector<16x1xf32>
    %352 = arith.divf %350, %351 : vector<16x1xf32>
    %353 = vector.broadcast %352 : vector<16x1xf32> to vector<16x64xf32>
    %354 = arith.subf %346, %353 : vector<16x64xf32>
    %355 = arith.mulf %354, %354 : vector<16x64xf32>
    %cst_157 = arith.constant dense<0.000000e+00> : vector<16xf32>
    %356 = vector.multi_reduction <add>, %355, %cst_157 [1] : vector<16x64xf32> to vector<16xf32>
    %357 = vector.shape_cast %356 : vector<16xf32> to vector<16x1xf32>
    %cst_158 = arith.constant 6.400000e+01 : f32
    %358 = vector.broadcast %cst_158 : f32 to vector<16x1xf32>
    %359 = arith.divf %357, %358 : vector<16x1xf32>
    %360 = vector.broadcast %352 : vector<16x1xf32> to vector<16x64xf32>
    %361 = arith.subf %346, %360 : vector<16x64xf32>
    %cst_159 = arith.constant 9.99999974E-6 : f32
    %362 = vector.broadcast %cst_159 : f32 to vector<16x1xf32>
    %363 = arith.addf %359, %362 : vector<16x1xf32>
    %364 = math.rsqrt %363 : vector<16x1xf32>
    %365 = vector.broadcast %364 : vector<16x1xf32> to vector<16x64xf32>
    %366 = arith.mulf %361, %365 : vector<16x64xf32>
    %367 = vector.broadcast %347 : vector<1x64xf32> to vector<16x64xf32>
    %368 = arith.mulf %366, %367 : vector<16x64xf32>
    %369 = vector.broadcast %348 : vector<1x64xf32> to vector<16x64xf32>
    %370 = arith.addf %368, %369 : vector<16x64xf32>
    %c0_160 = arith.constant 0 : index
    %c0_161 = arith.constant 0 : index
    %371 = vector.load %arg18[%c0_160, %c0_161] : memref<64x384xf32, #tpu.memory_space<vmem>>, vector<64x384xf32>
    %cst_162 = arith.constant dense<0.000000e+00> : vector<16x384xf32>
    %372 = tpu.matmul %370, %371, %cst_162 {dimension_numbers = #tpu.dot_dimension_numbers<[1], [0], [0], [1], [0, 0, 1, 1], [], []>} : vector<16x64xf32>, vector<64x384xf32>, vector<16x384xf32> -> vector<16x384xf32>
    %c0_163 = arith.constant 0 : index
    %c0_164 = arith.constant 0 : index
    %c0_165 = arith.constant 0 : index
    %373 = vector.load %arg19[%c0_163, %c0_164, %c0_165] : memref<1x16x384xf32, #tpu.memory_space<vmem>>, vector<1x16x384xf32>
    %374 = vector.shape_cast %373 : vector<1x16x384xf32> to vector<16x384xf32>
    %375 = vector.shape_cast %372 : vector<16x384xf32> to vector<1x16x384xf32>
    tpu.vector_store %arg19[%c0_163, %c0_164, %c0_165], %375 {strides = array<i32>} : memref<1x16x384xf32, #tpu.memory_space<vmem>>, vector<1x16x384xf32>,
    return
  }
  func.func @transform_0(%arg0: i32) -> (i32, i32, i32) {
    %c0_i32 = arith.constant 0 : i32
    %c0_i32_0 = arith.constant 0 : i32
    %c0_i32_1 = arith.constant 0 : i32
    return %arg0, %c0_i32, %c0_i32_0 : i32, i32, i32
  }
  func.func @transform_1(%arg0: i32) -> (i32, i32) {
    %c0_i32 = arith.constant 0 : i32
    %c0_i32_0 = arith.constant 0 : i32
    %c0_i32_1 = arith.constant 0 : i32
    return %c0_i32, %c0_i32_0 : i32, i32
  }
  func.func @transform_2(%arg0: i32) -> (i32, i32) {
    %c0_i32 = arith.constant 0 : i32
    %c0_i32_0 = arith.constant 0 : i32
    %c0_i32_1 = arith.constant 0 : i32
    return %c0_i32, %c0_i32_0 : i32, i32
  }
  func.func @transform_3(%arg0: i32) -> (i32, i32, i32) {
    %c0_i32 = arith.constant 0 : i32
    %c0_i32_0 = arith.constant 0 : i32
    %c0_i32_1 = arith.constant 0 : i32
    %c0_i32_2 = arith.constant 0 : i32
    return %c0_i32, %c0_i32_0, %c0_i32_1 : i32, i32, i32
  }
  func.func @transform_4(%arg0: i32) -> (i32, i32, i32) {
    %c0_i32 = arith.constant 0 : i32
    %c0_i32_0 = arith.constant 0 : i32
    %c0_i32_1 = arith.constant 0 : i32
    %c0_i32_2 = arith.constant 0 : i32
    return %c0_i32, %c0_i32_0, %c0_i32_1 : i32, i32, i32
  }
  func.func @transform_5(%arg0: i32) -> (i32, i32, i32) {
    %c0_i32 = arith.constant 0 : i32
    %c0_i32_0 = arith.constant 0 : i32
    %c0_i32_1 = arith.constant 0 : i32
    %c0_i32_2 = arith.constant 0 : i32
    return %c0_i32, %c0_i32_0, %c0_i32_1 : i32, i32, i32
  }
  func.func @transform_6(%arg0: i32) -> (i32, i32, i32) {
    %c0_i32 = arith.constant 0 : i32
    %c0_i32_0 = arith.constant 0 : i32
    %c0_i32_1 = arith.constant 0 : i32
    %c0_i32_2 = arith.constant 0 : i32
    return %c0_i32, %c0_i32_0, %c0_i32_1 : i32, i32, i32
  }
  func.func @transform_7(%arg0: i32) -> (i32, i32, i32) {
    %c0_i32 = arith.constant 0 : i32
    %c0_i32_0 = arith.constant 0 : i32
    %c0_i32_1 = arith.constant 0 : i32
    %c0_i32_2 = arith.constant 0 : i32
    return %c0_i32, %c0_i32_0, %c0_i32_1 : i32, i32, i32
  }
  func.func @transform_8(%arg0: i32) -> (i32, i32, i32) {
    %c0_i32 = arith.constant 0 : i32
    %c0_i32_0 = arith.constant 0 : i32
    %c0_i32_1 = arith.constant 0 : i32
    %c0_i32_2 = arith.constant 0 : i32
    return %c0_i32, %c0_i32_0, %c0_i32_1 : i32, i32, i32
  }
  func.func @transform_9(%arg0: i32) -> (i32, i32, i32) {
    %c0_i32 = arith.constant 0 : i32
    %c0_i32_0 = arith.constant 0 : i32
    %c0_i32_1 = arith.constant 0 : i32
    %c0_i32_2 = arith.constant 0 : i32
    return %c0_i32, %c0_i32_0, %c0_i32_1 : i32, i32, i32
  }
  func.func @transform_10(%arg0: i32) -> (i32, i32, i32) {
    %c0_i32 = arith.constant 0 : i32
    %c0_i32_0 = arith.constant 0 : i32
    %c0_i32_1 = arith.constant 0 : i32
    %c0_i32_2 = arith.constant 0 : i32
    return %c0_i32, %c0_i32_0, %c0_i32_1 : i32, i32, i32
  }
  func.func @transform_11(%arg0: i32) -> (i32, i32, i32) {
    %c0_i32 = arith.constant 0 : i32
    %c0_i32_0 = arith.constant 0 : i32
    %c0_i32_1 = arith.constant 0 : i32
    %c0_i32_2 = arith.constant 0 : i32
    return %c0_i32, %c0_i32_0, %c0_i32_1 : i32, i32, i32
  }
  func.func @transform_12(%arg0: i32) -> (i32, i32, i32) {
    %c0_i32 = arith.constant 0 : i32
    %c0_i32_0 = arith.constant 0 : i32
    %c0_i32_1 = arith.constant 0 : i32
    %c0_i32_2 = arith.constant 0 : i32
    return %c0_i32, %c0_i32_0, %c0_i32_1 : i32, i32, i32
  }
  func.func @transform_13(%arg0: i32) -> (i32, i32, i32) {
    %c0_i32 = arith.constant 0 : i32
    %c0_i32_0 = arith.constant 0 : i32
    %c0_i32_1 = arith.constant 0 : i32
    %c0_i32_2 = arith.constant 0 : i32
    return %c0_i32, %c0_i32_0, %c0_i32_1 : i32, i32, i32
  }
  func.func @transform_14(%arg0: i32) -> (i32, i32, i32) {
    %c0_i32 = arith.constant 0 : i32
    %c0_i32_0 = arith.constant 0 : i32
    %c0_i32_1 = arith.constant 0 : i32
    %c0_i32_2 = arith.constant 0 : i32
    return %c0_i32, %c0_i32_0, %c0_i32_1 : i32, i32, i32
  }
  func.func @transform_15(%arg0: i32) -> (i32, i32) {
    %c0_i32 = arith.constant 0 : i32
    %c0_i32_0 = arith.constant 0 : i32
    %c0_i32_1 = arith.constant 0 : i32
    return %c0_i32, %c0_i32_0 : i32, i32
  }
  func.func @transform_16(%arg0: i32) -> (i32, i32) {
    %c0_i32 = arith.constant 0 : i32
    %c0_i32_0 = arith.constant 0 : i32
    %c0_i32_1 = arith.constant 0 : i32
    return %c0_i32, %c0_i32_0 : i32, i32
  }
  func.func @transform_17(%arg0: i32) -> (i32, i32) {
    %c0_i32 = arith.constant 0 : i32
    %c0_i32_0 = arith.constant 0 : i32
    %c0_i32_1 = arith.constant 0 : i32
    return %c0_i32, %c0_i32_0 : i32, i32
  }
  func.func @transform_18(%arg0: i32) -> (i32, i32, i32) {
    %c0_i32 = arith.constant 0 : i32
    %c0_i32_0 = arith.constant 0 : i32
    %c0_i32_1 = arith.constant 0 : i32
    return %arg0, %c0_i32, %c0_i32_0 : i32, i32, i32
  }
}

</mosaic_0001>

<llo_original>
// kernel: gpt2_thinking_forward.1
$region0: #{gpt2_thinking_forward.1}
  #allocation0 [shape = 'u32[]', space=smem, size = 0x4, offset = 0x4, fixed_abs, tag = 'smem constant byte address 0x4 - core index']
  #allocation1 [shape = 'u32[144,128]{1,0:T(1,128)}', space=vmem, size = 0x12000, scoped, tag = 'internal scratch']
  %s0 = inlined_call_operand.vmem [shape: s32[2,16,1], index: 0, kind: input, shape index: {}]
  %s1 = inlined_call_operand.vmem [shape: f32[320,64], index: 1, kind: input, shape index: {}]
  %s2 = inlined_call_operand.vmem [shape: f32[16,64], index: 2, kind: input, shape index: {}]
  %s3 = inlined_call_operand.vmem [shape: f32[2,64,192], index: 3, kind: input, shape index: {}]
  %s4 = inlined_call_operand.vmem [shape: f32[2,1,192], index: 4, kind: input, shape index: {}]
  %s5 = inlined_call_operand.vmem [shape: f32[2,64,64], index: 5, kind: input, shape index: {}]
  %s6 = inlined_call_operand.vmem [shape: f32[2,1,64], index: 6, kind: input, shape index: {}]
  %s7 = inlined_call_operand.vmem [shape: f32[2,1,64], index: 7, kind: input, shape index: {}]
  %s8 = inlined_call_operand.vmem [shape: f32[2,1,64], index: 8, kind: input, shape index: {}]
  %s9 = inlined_call_operand.vmem [shape: f32[2,64,128], index: 9, kind: input, shape index: {}]
  %s10 = inlined_call_operand.vmem [shape: f32[2,1,128], index: 10, kind: input, shape index: {}]
  %s11 = inlined_call_operand.vmem [shape: f32[2,128,64], index: 11, kind: input, shape index: {}]
  %s12 = inlined_call_operand.vmem [shape: f32[2,1,64], index: 12, kind: input, shape index: {}]
  %s13 = inlined_call_operand.vmem [shape: f32[2,1,64], index: 13, kind: input, shape index: {}]
  %s14 = inlined_call_operand.vmem [shape: f32[2,1,64], index: 14, kind: input, shape index: {}]
  %s15 = inlined_call_operand.vmem [shape: f32[1,64], index: 15, kind: input, shape index: {}]
  %s16 = inlined_call_operand.vmem [shape: f32[1,64], index: 16, kind: input, shape index: {}]
  %s17 = inlined_call_operand.vmem [shape: f32[64,384], index: 17, kind: input, shape index: {}]
  %s18 = inlined_call_operand.hbm [shape: f32[2,16,384], index: 18, kind: output, shape index: {}]
  %s19 = sld [smem:[#allocation0]]
  $region105: #{gpt2_thinking_forward.1} parent=0
    _
  %s21 = ssub.s32 1, %s19
  %s22 = scalar_select 0, %s21, %s19
  $region1: #{gpt2_thinking_forward.1} parent=0
    #allocation2 [shape = 'u8[49152]{0}', space=vmem, size = 0xc000, scoped, tag = 'output window, operand 0']
    #allocation3 [shape = 's32[2]{0}', space=sflag, size = 0x8, scoped, tag = 'scoped memory for gpt2_thinking_forward.1']
    %23 = vsyncpa [#allocation3], 0
    %s24 = scalar_lea.sflag [#allocation3], 1
    %25 = vsyncpa %s24, 0
    loop: start=0, step=1, limit=4
    $region2: #{gpt2_thinking_forward.1} parent=1 // loop_pre_header
      _
    $region3: #{gpt2_thinking_forward.1} parent=1 // loop_header
      %s27 = sphi 0, %s31
      %p28 = scmp.ge.s32.totalorder %s27, 4
      %s37 = sphi 0, %s39
      %s40 = sphi 0, %s37
      %s41 = sphi 0, %s40
      %s57 = sphi 0, %s41
      %s61 = sphi 0, %s61
      %s63 = sphi 0, %s61
      %s64 = sphi 0, %s63
      %s78 = sphi 0, %s64
      %s82 = sphi 0, %s82
      %s84 = sphi 0, %s82
      %s85 = sphi 0, %s84
      %s99 = sphi 0, %s85
      %s103 = sphi 0, %s103
      %s105 = sphi 0, %s103
      %s106 = sphi 0, %s105
      %s120 = sphi 0, %s106
      %s124 = sphi 0, %s124
      %s126 = sphi 0, %s124
      %s127 = sphi 0, %s126
      %s141 = sphi 0, %s127
      %s145 = sphi 0, %s145
      %s147 = sphi 0, %s145
      %s148 = sphi 0, %s147
      %s162 = sphi 0, %s148
      %s166 = sphi 0, %s166
      %s168 = sphi 0, %s166
      %s169 = sphi 0, %s168
      %s183 = sphi 0, %s169
      %s187 = sphi 0, %s187
      %s189 = sphi 0, %s187
      %s190 = sphi 0, %s189
      %s204 = sphi 0, %s190
      %s208 = sphi 0, %s208
      %s210 = sphi 0, %s208
      %s211 = sphi 0, %s210
      %s225 = sphi 0, %s211
      %s229 = sphi 0, %s229
      %s231 = sphi 0, %s229
      %s232 = sphi 0, %s231
      %s246 = sphi 0, %s232
      %s250 = sphi 0, %s250
      %s252 = sphi 0, %s250
      %s253 = sphi 0, %s252
      %s267 = sphi 0, %s253
      %s271 = sphi 0, %s271
      %s273 = sphi 0, %s271
      %s274 = sphi 0, %s273
      %s288 = sphi 0, %s274
      %s292 = sphi 0, %s292
      %s294 = sphi 0, %s292
      %s295 = sphi 0, %s294
      %s309 = sphi 0, %s295
      %s313 = sphi 0, %s313
      %s315 = sphi 0, %s313
      %s316 = sphi 0, %s315
      %s330 = sphi 0, %s316
      %s334 = sphi 0, %s334
      %s336 = sphi 0, %s334
      %s337 = sphi 0, %s336
      %s351 = sphi 0, %s337
      %s355 = sphi 0, %s355
      %s357 = sphi 0, %s355
      %s358 = sphi 0, %s357
      %s372 = sphi 0, %s358
      %s376 = sphi 0, %s376
      %s378 = sphi 0, %s376
      %s379 = sphi 0, %s378
      %s393 = sphi 0, %s379
      %s397 = sphi 0, %s397
      %s399 = sphi 0, %s397
      %s400 = sphi 0, %s399
      %s414 = sphi 0, %s400
      %s420 = sphi 0, %s422
      %s423 = sphi 0, %s420
      %s424 = sphi 0, %s423
      %s440 = sphi 0, %s424
    $region4: #{gpt2_thinking_forward.1} parent=1 // loop_header_branch
      %30 = sbr.rel (%p28) target = $region8
    $region5: #{gpt2_thinking_forward.1} parent=1 // loop_body
      %s32 = ssub.s32 %s27, 1
      %s33 = ssub.s32 %s27, 2
      %s34 = sadd.s32 %s27, 1
      %s35 = ssub.s32 %s27, %s34
      %p36 = scmp.eq.s32.totalorder %s35, 0
      %s38 = sadd.s32 %s37, 1
      %s39 = scalar_select %p36, %s37, %s38
      %p42 = pneg %p36
      %p43 = scmp.eq.s32.totalorder %s27, 1
      %p44 = por %p42, %p43
      %p45 = scmp.ne.s32.totalorder %s37, %s40
      %p46 = scmp.eq.s32.totalorder %s27, 0
      %p47 = por %p45, %p46
      %p48 = scmp.ne.s32.totalorder %s37, %s40
      %p49 = scmp.eq.s32.totalorder %s32, 1
      %p50 = por %p48, %p49
      %p51 = scmp.ne.s32.totalorder %s40, %s41
      %p52 = scmp.eq.s32.totalorder %s32, 0
      %p53 = por %p51, %p52
      %p54 = scmp.ne.s32.totalorder %s40, %s41
      %p55 = scmp.eq.s32.totalorder %s33, 1
      %p56 = por %p54, %p55
      %p58 = scmp.ne.s32.totalorder %s41, %s57
      %p59 = scmp.eq.s32.totalorder %s33, 0
      %p60 = por %p58, %p59
      %s62 = sadd.s32 %s61, 1
      %p65 = scmp.eq.s32.totalorder %s27, 1
      %p66 = scmp.ne.s32.totalorder %s61, %s63
      %p67 = scmp.eq.s32.totalorder %s27, 0
      %p68 = por %p66, %p67
      %p69 = scmp.ne.s32.totalorder %s61, %s63
      %p70 = scmp.eq.s32.totalorder %s32, 1
      %p71 = por %p69, %p70
      %p72 = scmp.ne.s32.totalorder %s63, %s64
      %p73 = scmp.eq.s32.totalorder %s32, 0
      %p74 = por %p72, %p73
      %p75 = scmp.ne.s32.totalorder %s63, %s64
      %p76 = scmp.eq.s32.totalorder %s33, 1
      %p77 = por %p75, %p76
      %p79 = scmp.ne.s32.totalorder %s64, %s78
      %p80 = scmp.eq.s32.totalorder %s33, 0
      %p81 = por %p79, %p80
      %s83 = sadd.s32 %s82, 1
      %p86 = scmp.eq.s32.totalorder %s27, 1
      %p87 = scmp.ne.s32.totalorder %s82, %s84
      %p88 = scmp.eq.s32.totalorder %s27, 0
      %p89 = por %p87, %p88
      %p90 = scmp.ne.s32.totalorder %s82, %s84
      %p91 = scmp.eq.s32.totalorder %s32, 1
      %p92 = por %p90, %p91
      %p93 = scmp.ne.s32.totalorder %s84, %s85
      %p94 = scmp.eq.s32.totalorder %s32, 0
      %p95 = por %p93, %p94
      %p96 = scmp.ne.s32.totalorder %s84, %s85
      %p97 = scmp.eq.s32.totalorder %s33, 1
      %p98 = por %p96, %p97
      %p100 = scmp.ne.s32.totalorder %s85, %s99
      %p101 = scmp.eq.s32.totalorder %s33, 0
      %p102 = por %p100, %p101
      %s104 = sadd.s32 %s103, 1
      %p107 = scmp.eq.s32.totalorder %s27, 1
      %p108 = scmp.ne.s32.totalorder %s103, %s105
      %p109 = scmp.eq.s32.totalorder %s27, 0
      %p110 = por %p108, %p109
      %p111 = scmp.ne.s32.totalorder %s103, %s105
      %p112 = scmp.eq.s32.totalorder %s32, 1
      %p113 = por %p111, %p112
      %p114 = scmp.ne.s32.totalorder %s105, %s106
      %p115 = scmp.eq.s32.totalorder %s32, 0
      %p116 = por %p114, %p115
      %p117 = scmp.ne.s32.totalorder %s105, %s106
      %p118 = scmp.eq.s32.totalorder %s33, 1
      %p119 = por %p117, %p118
      %p121 = scmp.ne.s32.totalorder %s106, %s120
      %p122 = scmp.eq.s32.totalorder %s33, 0
      %p123 = por %p121, %p122
      %s125 = sadd.s32 %s124, 1
      %p128 = scmp.eq.s32.totalorder %s27, 1
      %p129 = scmp.ne.s32.totalorder %s124, %s126
      %p130 = scmp.eq.s32.totalorder %s27, 0
      %p131 = por %p129, %p130
      %p132 = scmp.ne.s32.totalorder %s124, %s126
      %p133 = scmp.eq.s32.totalorder %s32, 1
      %p134 = por %p132, %p133
      %p135 = scmp.ne.s32.totalorder %s126, %s127
      %p136 = scmp.eq.s32.totalorder %s32, 0
      %p137 = por %p135, %p136
      %p138 = scmp.ne.s32.totalorder %s126, %s127
      %p139 = scmp.eq.s32.totalorder %s33, 1
      %p140 = por %p138, %p139
      %p142 = scmp.ne.s32.totalorder %s127, %s141
      %p143 = scmp.eq.s32.totalorder %s33, 0
      %p144 = por %p142, %p143
      %s146 = sadd.s32 %s145, 1
      %p149 = scmp.eq.s32.totalorder %s27, 1
      %p150 = scmp.ne.s32.totalorder %s145, %s147
      %p151 = scmp.eq.s32.totalorder %s27, 0
      %p152 = por %p150, %p151
      %p153 = scmp.ne.s32.totalorder %s145, %s147
      %p154 = scmp.eq.s32.totalorder %s32, 1
      %p155 = por %p153, %p154
      %p156 = scmp.ne.s32.totalorder %s147, %s148
      %p157 = scmp.eq.s32.totalorder %s32, 0
      %p158 = por %p156, %p157
      %p159 = scmp.ne.s32.totalorder %s147, %s148
      %p160 = scmp.eq.s32.totalorder %s33, 1
      %p161 = por %p159, %p160
      %p163 = scmp.ne.s32.totalorder %s148, %s162
      %p164 = scmp.eq.s32.totalorder %s33, 0
      %p165 = por %p163, %p164
      %s167 = sadd.s32 %s166, 1
      %p170 = scmp.eq.s32.totalorder %s27, 1
      %p171 = scmp.ne.s32.totalorder %s166, %s168
      %p172 = scmp.eq.s32.totalorder %s27, 0
      %p173 = por %p171, %p172
      %p174 = scmp.ne.s32.totalorder %s166, %s168
      %p175 = scmp.eq.s32.totalorder %s32, 1
      %p176 = por %p174, %p175
      %p177 = scmp.ne.s32.totalorder %s168, %s169
      %p178 = scmp.eq.s32.totalorder %s32, 0
      %p179 = por %p177, %p178
      %p180 = scmp.ne.s32.totalorder %s168, %s169
      %p181 = scmp.eq.s32.totalorder %s33, 1
      %p182 = por %p180, %p181
      %p184 = scmp.ne.s32.totalorder %s169, %s183
      %p185 = scmp.eq.s32.totalorder %s33, 0
      %p186 = por %p184, %p185
      %s188 = sadd.s32 %s187, 1
      %p191 = scmp.eq.s32.totalorder %s27, 1
      %p192 = scmp.ne.s32.totalorder %s187, %s189
      %p193 = scmp.eq.s32.totalorder %s27, 0
      %p194 = por %p192, %p193
      %p195 = scmp.ne.s32.totalorder %s187, %s189
      %p196 = scmp.eq.s32.totalorder %s32, 1
      %p197 = por %p195, %p196
      %p198 = scmp.ne.s32.totalorder %s189, %s190
      %p199 = scmp.eq.s32.totalorder %s32, 0
      %p200 = por %p198, %p199
      %p201 = scmp.ne.s32.totalorder %s189, %s190
      %p202 = scmp.eq.s32.totalorder %s33, 1
      %p203 = por %p201, %p202
      %p205 = scmp.ne.s32.totalorder %s190, %s204
      %p206 = scmp.eq.s32.totalorder %s33, 0
      %p207 = por %p205, %p206
      %s209 = sadd.s32 %s208, 1
      %p212 = scmp.eq.s32.totalorder %s27, 1
      %p213 = scmp.ne.s32.totalorder %s208, %s210
      %p214 = scmp.eq.s32.totalorder %s27, 0
      %p215 = por %p213, %p214
      %p216 = scmp.ne.s32.totalorder %s208, %s210
      %p217 = scmp.eq.s32.totalorder %s32, 1
      %p218 = por %p216, %p217
      %p219 = scmp.ne.s32.totalorder %s210, %s211
      %p220 = scmp.eq.s32.totalorder %s32, 0
      %p221 = por %p219, %p220
      %p222 = scmp.ne.s32.totalorder %s210, %s211
      %p223 = scmp.eq.s32.totalorder %s33, 1
      %p224 = por %p222, %p223
      %p226 = scmp.ne.s32.totalorder %s211, %s225
      %p227 = scmp.eq.s32.totalorder %s33, 0
      %p228 = por %p226, %p227
      %s230 = sadd.s32 %s229, 1
      %p233 = scmp.eq.s32.totalorder %s27, 1
      %p234 = scmp.ne.s32.totalorder %s229, %s231
      %p235 = scmp.eq.s32.totalorder %s27, 0
      %p236 = por %p234, %p235
      %p237 = scmp.ne.s32.totalorder %s229, %s231
      %p238 = scmp.eq.s32.totalorder %s32, 1
      %p239 = por %p237, %p238
      %p240 = scmp.ne.s32.totalorder %s231, %s232
      %p241 = scmp.eq.s32.totalorder %s32, 0
      %p242 = por %p240, %p241
      %p243 = scmp.ne.s32.totalorder %s231, %s232
      %p244 = scmp.eq.s32.totalorder %s33, 1
      %p245 = por %p243, %p244
      %p247 = scmp.ne.s32.totalorder %s232, %s246
      %p248 = scmp.eq.s32.totalorder %s33, 0
      %p249 = por %p247, %p248
      %s251 = sadd.s32 %s250, 1
      %p254 = scmp.eq.s32.totalorder %s27, 1
      %p255 = scmp.ne.s32.totalorder %s250, %s252
      %p256 = scmp.eq.s32.totalorder %s27, 0
      %p257 = por %p255, %p256
      %p258 = scmp.ne.s32.totalorder %s250, %s252
      %p259 = scmp.eq.s32.totalorder %s32, 1
      %p260 = por %p258, %p259
      %p261 = scmp.ne.s32.totalorder %s252, %s253
      %p262 = scmp.eq.s32.totalorder %s32, 0
      %p263 = por %p261, %p262
      %p264 = scmp.ne.s32.totalorder %s252, %s253
      %p265 = scmp.eq.s32.totalorder %s33, 1
      %p266 = por %p264, %p265
      %p268 = scmp.ne.s32.totalorder %s253, %s267
      %p269 = scmp.eq.s32.totalorder %s33, 0
      %p270 = por %p268, %p269
      %s272 = sadd.s32 %s271, 1
      %p275 = scmp.eq.s32.totalorder %s27, 1
      %p276 = scmp.ne.s32.totalorder %s271, %s273
      %p277 = scmp.eq.s32.totalorder %s27, 0
      %p278 = por %p276, %p277
      %p279 = scmp.ne.s32.totalorder %s271, %s273
      %p280 = scmp.eq.s32.totalorder %s32, 1
      %p281 = por %p279, %p280
      %p282 = scmp.ne.s32.totalorder %s273, %s274
      %p283 = scmp.eq.s32.totalorder %s32, 0
      %p284 = por %p282, %p283
      %p285 = scmp.ne.s32.totalorder %s273, %s274
      %p286 = scmp.eq.s32.totalorder %s33, 1
      %p287 = por %p285, %p286
      %p289 = scmp.ne.s32.totalorder %s274, %s288
      %p290 = scmp.eq.s32.totalorder %s33, 0
      %p291 = por %p289, %p290
      %s293 = sadd.s32 %s292, 1
      %p296 = scmp.eq.s32.totalorder %s27, 1
      %p297 = scmp.ne.s32.totalorder %s292, %s294
      %p298 = scmp.eq.s32.totalorder %s27, 0
      %p299 = por %p297, %p298
      %p300 = scmp.ne.s32.totalorder %s292, %s294
      %p301 = scmp.eq.s32.totalorder %s32, 1
      %p302 = por %p300, %p301
      %p303 = scmp.ne.s32.totalorder %s294, %s295
      %p304 = scmp.eq.s32.totalorder %s32, 0
      %p305 = por %p303, %p304
      %p306 = scmp.ne.s32.totalorder %s294, %s295
      %p307 = scmp.eq.s32.totalorder %s33, 1
      %p308 = por %p306, %p307
      %p310 = scmp.ne.s32.totalorder %s295, %s309
      %p311 = scmp.eq.s32.totalorder %s33, 0
      %p312 = por %p310, %p311
      %s314 = sadd.s32 %s313, 1
      %p317 = scmp.eq.s32.totalorder %s27, 1
      %p318 = scmp.ne.s32.totalorder %s313, %s315
      %p319 = scmp.eq.s32.totalorder %s27, 0
      %p320 = por %p318, %p319
      %p321 = scmp.ne.s32.totalorder %s313, %s315
      %p322 = scmp.eq.s32.totalorder %s32, 1
      %p323 = por %p321, %p322
      %p324 = scmp.ne.s32.totalorder %s315, %s316
      %p325 = scmp.eq.s32.totalorder %s32, 0
      %p326 = por %p324, %p325
      %p327 = scmp.ne.s32.totalorder %s315, %s316
      %p328 = scmp.eq.s32.totalorder %s33, 1
      %p329 = por %p327, %p328
      %p331 = scmp.ne.s32.totalorder %s316, %s330
      %p332 = scmp.eq.s32.totalorder %s33, 0
      %p333 = por %p331, %p332
      %s335 = sadd.s32 %s334, 1
      %p338 = scmp.eq.s32.totalorder %s27, 1
      %p339 = scmp.ne.s32.totalorder %s334, %s336
      %p340 = scmp.eq.s32.totalorder %s27, 0
      %p341 = por %p339, %p340
      %p342 = scmp.ne.s32.totalorder %s334, %s336
      %p343 = scmp.eq.s32.totalorder %s32, 1
      %p344 = por %p342, %p343
      %p345 = scmp.ne.s32.totalorder %s336, %s337
      %p346 = scmp.eq.s32.totalorder %s32, 0
      %p347 = por %p345, %p346
      %p348 = scmp.ne.s32.totalorder %s336, %s337
      %p349 = scmp.eq.s32.totalorder %s33, 1
      %p350 = por %p348, %p349
      %p352 = scmp.ne.s32.totalorder %s337, %s351
      %p353 = scmp.eq.s32.totalorder %s33, 0
      %p354 = por %p352, %p353
      %s356 = sadd.s32 %s355, 1
      %p359 = scmp.eq.s32.totalorder %s27, 1
      %p360 = scmp.ne.s32.totalorder %s355, %s357
      %p361 = scmp.eq.s32.totalorder %s27, 0
      %p362 = por %p360, %p361
      %p363 = scmp.ne.s32.totalorder %s355, %s357
      %p364 = scmp.eq.s32.totalorder %s32, 1
      %p365 = por %p363, %p364
      %p366 = scmp.ne.s32.totalorder %s357, %s358
      %p367 = scmp.eq.s32.totalorder %s32, 0
      %p368 = por %p366, %p367
      %p369 = scmp.ne.s32.totalorder %s357, %s358
      %p370 = scmp.eq.s32.totalorder %s33, 1
      %p371 = por %p369, %p370
      %p373 = scmp.ne.s32.totalorder %s358, %s372
      %p374 = scmp.eq.s32.totalorder %s33, 0
      %p375 = por %p373, %p374
      %s377 = sadd.s32 %s376, 1
      %p380 = scmp.eq.s32.totalorder %s27, 1
      %p381 = scmp.ne.s32.totalorder %s376, %s378
      %p382 = scmp.eq.s32.totalorder %s27, 0
      %p383 = por %p381, %p382
      %p384 = scmp.ne.s32.totalorder %s376, %s378
      %p385 = scmp.eq.s32.totalorder %s32, 1
      %p386 = por %p384, %p385
      %p387 = scmp.ne.s32.totalorder %s378, %s379
      %p388 = scmp.eq.s32.totalorder %s32, 0
      %p389 = por %p387, %p388
      %p390 = scmp.ne.s32.totalorder %s378, %s379
      %p391 = scmp.eq.s32.totalorder %s33, 1
      %p392 = por %p390, %p391
      %p394 = scmp.ne.s32.totalorder %s379, %s393
      %p395 = scmp.eq.s32.totalorder %s33, 0
      %p396 = por %p394, %p395
      %s398 = sadd.s32 %s397, 1
      %p401 = scmp.eq.s32.totalorder %s27, 1
      %p402 = scmp.ne.s32.totalorder %s397, %s399
      %p403 = scmp.eq.s32.totalorder %s27, 0
      %p404 = por %p402, %p403
      %p405 = scmp.ne.s32.totalorder %s397, %s399
      %p406 = scmp.eq.s32.totalorder %s32, 1
      %p407 = por %p405, %p406
      %p408 = scmp.ne.s32.totalorder %s399, %s400
      %p409 = scmp.eq.s32.totalorder %s32, 0
      %p410 = por %p408, %p409
      %p411 = scmp.ne.s32.totalorder %s399, %s400
      %p412 = scmp.eq.s32.totalorder %s33, 1
      %p413 = por %p411, %p412
      %p415 = scmp.ne.s32.totalorder %s400, %s414
      %p416 = scmp.eq.s32.totalorder %s33, 0
      %p417 = por %p415, %p416
      %s418 = ssub.s32 %s27, %s34
      %p419 = scmp.eq.s32.totalorder %s418, 0
      %s421 = sadd.s32 %s420, 1
      %s422 = scalar_select %p419, %s420, %s421
      %p425 = pneg %p419
      %p426 = scmp.eq.s32.totalorder %s27, 1
      %p427 = por %p425, %p426
      %p428 = scmp.ne.s32.totalorder %s420, %s423
      %p429 = scmp.eq.s32.totalorder %s27, 0
      %p430 = por %p428, %p429
      %p431 = scmp.ne.s32.totalorder %s420, %s423
      %p432 = scmp.eq.s32.totalorder %s32, 1
      %p433 = por %p431, %p432
      %p434 = scmp.ne.s32.totalorder %s423, %s424
      %p435 = scmp.eq.s32.totalorder %s32, 0
      %p436 = por %p434, %p435
      %p437 = scmp.ne.s32.totalorder %s423, %s424
      %p438 = scmp.eq.s32.totalorder %s33, 1
      %p439 = por %p437, %p438
      %p441 = scmp.ne.s32.totalorder %s424, %s440
      %p442 = scmp.eq.s32.totalorder %s33, 0
      %p443 = por %p441, %p442
      %p444 = scmp.le.s32.totalorder 1, %s27
      %p445 = scmp.lt.s32.totalorder %s27, 3
      %p446 = pnand %p444, %p445
      %p447 = pneg %p446
      // Predicated region
      $region9: #{gpt2_thinking_forward.1} parent=5 // pred_check
        _
      $region10: #{gpt2_thinking_forward.1} parent=5 // pred_check_branch
        %449 = sbr.rel (%p446) target = $region12
      $region11: #{gpt2_thinking_forward.1} parent=5 // pred_region
        %s450 = ssub.s32 %s27, 1
        // Predicated region
        $region13: #{gpt2_thinking_forward.1} parent=11 // pred_check
          %p451 = pneg %p74
        $region14: #{gpt2_thinking_forward.1} parent=11 // pred_check_branch
          %453 = sbr.rel (%p451) target = $region16
        $region15: #{gpt2_thinking_forward.1} parent=11 // pred_region
          _
        $region16: #{gpt2_thinking_forward.1} parent=11 // pred_fallthru
          _
        // Predicated region
        $region17: #{gpt2_thinking_forward.1} parent=11 // pred_check
          %p454 = pneg %p95
        $region18: #{gpt2_thinking_forward.1} parent=11 // pred_check_branch
          %456 = sbr.rel (%p454) target = $region20
        $region19: #{gpt2_thinking_forward.1} parent=11 // pred_region
          _
        $region20: #{gpt2_thinking_forward.1} parent=11 // pred_fallthru
          _
        // Predicated region
        $region21: #{gpt2_thinking_forward.1} parent=11 // pred_check
          %p457 = pneg %p116
        $region22: #{gpt2_thinking_forward.1} parent=11 // pred_check_branch
          %459 = sbr.rel (%p457) target = $region24
        $region23: #{gpt2_thinking_forward.1} parent=11 // pred_region
          _
        $region24: #{gpt2_thinking_forward.1} parent=11 // pred_fallthru
          _
        // Predicated region
        $region25: #{gpt2_thinking_forward.1} parent=11 // pred_check
          %p460 = pneg %p137
        $region26: #{gpt2_thinking_forward.1} parent=11 // pred_check_branch
          %462 = sbr.rel (%p460) target = $region28
        $region27: #{gpt2_thinking_forward.1} parent=11 // pred_region
          _
        $region28: #{gpt2_thinking_forward.1} parent=11 // pred_fallthru
          _
        // Predicated region
        $region29: #{gpt2_thinking_forward.1} parent=11 // pred_check
          %p463 = pneg %p158
        $region30: #{gpt2_thinking_forward.1} parent=11 // pred_check_branch
          %465 = sbr.rel (%p463) target = $region32
        $region31: #{gpt2_thinking_forward.1} parent=11 // pred_region
          _
        $region32: #{gpt2_thinking_forward.1} parent=11 // pred_fallthru
          _
        // Predicated region
        $region33: #{gpt2_thinking_forward.1} parent=11 // pred_check
          %p466 = pneg %p179
        $region34: #{gpt2_thinking_forward.1} parent=11 // pred_check_branch
          %468 = sbr.rel (%p466) target = $region36
        $region35: #{gpt2_thinking_forward.1} parent=11 // pred_region
          _
        $region36: #{gpt2_thinking_forward.1} parent=11 // pred_fallthru
          _
        // Predicated region
        $region37: #{gpt2_thinking_forward.1} parent=11 // pred_check
          %p469 = pneg %p200
        $region38: #{gpt2_thinking_forward.1} parent=11 // pred_check_branch
          %471 = sbr.rel (%p469) target = $region40
        $region39: #{gpt2_thinking_forward.1} parent=11 // pred_region
          _
        $region40: #{gpt2_thinking_forward.1} parent=11 // pred_fallthru
          _
        // Predicated region
        $region41: #{gpt2_thinking_forward.1} parent=11 // pred_check
          %p472 = pneg %p221
        $region42: #{gpt2_thinking_forward.1} parent=11 // pred_check_branch
          %474 = sbr.rel (%p472) target = $region44
        $region43: #{gpt2_thinking_forward.1} parent=11 // pred_region
          _
        $region44: #{gpt2_thinking_forward.1} parent=11 // pred_fallthru
          _
        // Predicated region
        $region45: #{gpt2_thinking_forward.1} parent=11 // pred_check
          %p475 = pneg %p242
        $region46: #{gpt2_thinking_forward.1} parent=11 // pred_check_branch
          %477 = sbr.rel (%p475) target = $region48
        $region47: #{gpt2_thinking_forward.1} parent=11 // pred_region
          _
        $region48: #{gpt2_thinking_forward.1} parent=11 // pred_fallthru
          _
        // Predicated region
        $region49: #{gpt2_thinking_forward.1} parent=11 // pred_check
          %p478 = pneg %p263
        $region50: #{gpt2_thinking_forward.1} parent=11 // pred_check_branch
          %480 = sbr.rel (%p478) target = $region52
        $region51: #{gpt2_thinking_forward.1} parent=11 // pred_region
          _
        $region52: #{gpt2_thinking_forward.1} parent=11 // pred_fallthru
          _
        // Predicated region
        $region53: #{gpt2_thinking_forward.1} parent=11 // pred_check
          %p481 = pneg %p284
        $region54: #{gpt2_thinking_forward.1} parent=11 // pred_check_branch
          %483 = sbr.rel (%p481) target = $region56
        $region55: #{gpt2_thinking_forward.1} parent=11 // pred_region
          _
        $region56: #{gpt2_thinking_forward.1} parent=11 // pred_fallthru
          _
        // Predicated region
        $region57: #{gpt2_thinking_forward.1} parent=11 // pred_check
          %p484 = pneg %p305
        $region58: #{gpt2_thinking_forward.1} parent=11 // pred_check_branch
          %486 = sbr.rel (%p484) target = $region60
        $region59: #{gpt2_thinking_forward.1} parent=11 // pred_region
          _
        $region60: #{gpt2_thinking_forward.1} parent=11 // pred_fallthru
          _
        // Predicated region
        $region61: #{gpt2_thinking_forward.1} parent=11 // pred_check
          %p487 = pneg %p326
        $region62: #{gpt2_thinking_forward.1} parent=11 // pred_check_branch
          %489 = sbr.rel (%p487) target = $region64
        $region63: #{gpt2_thinking_forward.1} parent=11 // pred_region
          _
        $region64: #{gpt2_thinking_forward.1} parent=11 // pred_fallthru
          _
        // Predicated region
        $region65: #{gpt2_thinking_forward.1} parent=11 // pred_check
          %p490 = pneg %p347
        $region66: #{gpt2_thinking_forward.1} parent=11 // pred_check_branch
          %492 = sbr.rel (%p490) target = $region68
        $region67: #{gpt2_thinking_forward.1} parent=11 // pred_region
          _
        $region68: #{gpt2_thinking_forward.1} parent=11 // pred_fallthru
          _
        // Predicated region
        $region69: #{gpt2_thinking_forward.1} parent=11 // pred_check
          %p493 = pneg %p368
        $region70: #{gpt2_thinking_forward.1} parent=11 // pred_check_branch
          %495 = sbr.rel (%p493) target = $region72
        $region71: #{gpt2_thinking_forward.1} parent=11 // pred_region
          _
        $region72: #{gpt2_thinking_forward.1} parent=11 // pred_fallthru
          _
        // Predicated region
        $region73: #{gpt2_thinking_forward.1} parent=11 // pred_check
          %p496 = pneg %p389
        $region74: #{gpt2_thinking_forward.1} parent=11 // pred_check_branch
          %498 = sbr.rel (%p496) target = $region76
        $region75: #{gpt2_thinking_forward.1} parent=11 // pred_region
          _
        $region76: #{gpt2_thinking_forward.1} parent=11 // pred_fallthru
          _
        // Predicated region
        $region77: #{gpt2_thinking_forward.1} parent=11 // pred_check
          %p499 = pneg %p410
        $region78: #{gpt2_thinking_forward.1} parent=11 // pred_check_branch
          %501 = sbr.rel (%p499) target = $region80
        $region79: #{gpt2_thinking_forward.1} parent=11 // pred_region
          _
        $region80: #{gpt2_thinking_forward.1} parent=11 // pred_fallthru
          _
      $region12: #{gpt2_thinking_forward.1} parent=5 // pred_fallthru
        _
      %p502 = scmp.lt.s32.totalorder %s27, 2
      // Predicated region
      $region81: #{gpt2_thinking_forward.1} parent=5 // pred_check
        %p503 = pneg %p502
      $region82: #{gpt2_thinking_forward.1} parent=5 // pred_check_branch
        %505 = sbr.rel (%p503) target = $region84
      $region83: #{gpt2_thinking_forward.1} parent=5 // pred_region
        // Predicated region
        $region85: #{gpt2_thinking_forward.1} parent=83 // pred_check
          %p506 = pneg %p47
        $region86: #{gpt2_thinking_forward.1} parent=83 // pred_check_branch
          %508 = sbr.rel (%p506) target = $region88
        $region87: #{gpt2_thinking_forward.1} parent=83 // pred_region
          %p509 = scmp.lt.s32.totalorder %s27, 1
          %s510 = scalar_select %p509, %s27, 1
          %s511 = smul.addr %s510, 2
          %s512 = smul.addr %s511, 8
          %s513 = scalar_lea.vmem %s0, %s512
        $region88: #{gpt2_thinking_forward.1} parent=83 // pred_fallthru
          _
      $region84: #{gpt2_thinking_forward.1} parent=5 // pred_fallthru
        _
      %p514 = scmp.le.s32.totalorder 1, %s27
      %p515 = scmp.lt.s32.totalorder %s27, 3
      %p516 = pnand %p514, %p515
      %p517 = pneg %p516
      // Predicated region
      $region89: #{gpt2_thinking_forward.1} parent=5 // pred_check
        _
      $region90: #{gpt2_thinking_forward.1} parent=5 // pred_check_branch
        %519 = sbr.rel (%p516) target = $region92
      $region91: #{gpt2_thinking_forward.1} parent=5 // pred_region
        %s520 = ssub.s32 %s27, 1
        %p521 = scmp.lt.s32.totalorder %s32, 1
        %s522 = scalar_select %p521, %s32, 1
        %s523 = smul.addr %s522, 2
        %s524 = smul.addr %s523, 8
        %s525 = scalar_lea.vmem %s0, %s524
        %p526 = pneg %p53
        %p527 = pneg %p50
        %p528 = pneg %p74
        %p529 = pneg %p71
        %p530 = pneg %p95
        %p531 = pneg %p92
        %p532 = pneg %p116
        %p533 = pneg %p113
        %p534 = pneg %p137
        %p535 = pneg %p134
        %p536 = pneg %p158
        %p537 = pneg %p155
        %p538 = pneg %p179
        %p539 = pneg %p176
        %p540 = pneg %p200
        %p541 = pneg %p197
        %p542 = pneg %p221
        %p543 = pneg %p218
        %p544 = pneg %p242
        %p545 = pneg %p239
        %p546 = pneg %p263
        %p547 = pneg %p260
        %p548 = pneg %p284
        %p549 = pneg %p281
        %p550 = pneg %p305
        %p551 = pneg %p302
        %p552 = pneg %p326
        %p553 = pneg %p323
        %p554 = pneg %p347
        %p555 = pneg %p344
        %p556 = pneg %p368
        %p557 = pneg %p365
        %p558 = pneg %p389
        %p559 = pneg %p386
        %p560 = pneg %p410
        %p561 = pneg %p407
        %p562 = pneg %p436
        %p563 = pneg %p433
        %s564 = sand.u32 %s423, 1
        %s565 = scalar_lea.sflag [#allocation3], %s564
        %s566 = sand.u32 %s423, 1
        %s567 = smul.addr %s566, 48
        %s568 = scalar_lea.vmem [#allocation2], %s567
        %p569 = scmp.lt.s32.totalorder %s32, 1
        %s570 = scalar_select %p569, %s32, 1
        %s571 = smul.addr %s570, 2
        %s572 = smul.addr %s571, 8
        %s573 = scalar_lea.vmem %s0, %s572
        %v574 = vld [vmem:[%s573] sm:$0xff]
        %v575 = vld [vmem:[%s573 + $0x8] sm:$0xff]
        %v576 = vlaneseq
        %v577 = vand.u32 %v576, 127
        %v578 = vadd.s32 %v577, 128
        %v579 = vadd.s32 %v577, 256
        %580 = vset.pattern.permute.xlu0 0
        %581 = vperm.xlu0 %580, %v574
        %v582 = vpop.permute.xlu0 %581
        %583 = vset.pattern.permute.xlu0 0
        %584 = vperm.xlu0 %583, %v575
        %v585 = vpop.permute.xlu0 %584
        %vm586 = vcmp.eq.s32.totalorder %v577, %v582
        %vm587 = vcmp.eq.s32.totalorder %v578, %v582
        %vm588 = vcmp.eq.s32.totalorder %v579, %v582
        %vm589 = vcmp.eq.s32.totalorder %v577, %v585
        %vm590 = vcmp.eq.s32.totalorder %v578, %v585
        %vm591 = vcmp.eq.s32.totalorder %v579, %v585
        %v592 = vsel %vm586, 1, 0
        %v593 = vsel %vm587, 1, 0
        %v594 = vsel %vm588, 1, 0
        %v595 = vsel %vm589, 1, 0
        %v596 = vsel %vm590, 1, 0
        %v597 = vsel %vm591, 1, 0
        %v598 = vcvt.s32.f32 %v592
        %v599 = vcvt.s32.f32 %v593
        %v600 = vcvt.s32.f32 %v594
        %v601 = vcvt.s32.f32 %v595
        %v602 = vcvt.s32.f32 %v596
        %v603 = vcvt.s32.f32 %v597
        %v604 = vld [vmem:[%s1] sm:$0xff]
        %v605 = vld [vmem:[%s1 + $0x8] sm:$0xff]
        %v606 = vld [vmem:[%s1 + $0x10] sm:$0xff]
        %v607 = vld [vmem:[%s1 + $0x18] sm:$0xff]
        %v608 = vld [vmem:[%s1 + $0x20] sm:$0xff]
        %v609 = vld [vmem:[%s1 + $0x28] sm:$0xff]
        %v610 = vld [vmem:[%s1 + $0x30] sm:$0xff]
        %v611 = vld [vmem:[%s1 + $0x38] sm:$0xff]
        %v612 = vld [vmem:[%s1 + $0x40] sm:$0xff]
        %v613 = vld [vmem:[%s1 + $0x48] sm:$0xff]
        %v614 = vld [vmem:[%s1 + $0x50] sm:$0xff]
        %v615 = vld [vmem:[%s1 + $0x58] sm:$0xff]
        %v616 = vld [vmem:[%s1 + $0x60] sm:$0xff]
        %v617 = vld [vmem:[%s1 + $0x68] sm:$0xff]
        %v618 = vld [vmem:[%s1 + $0x70] sm:$0xff]
        %v619 = vld [vmem:[%s1 + $0x78] sm:$0xff]
        %v620 = vld [vmem:[%s1 + $0x80] sm:$0xff]
        %v621 = vld [vmem:[%s1 + $0x88] sm:$0xff]
        %v622 = vld [vmem:[%s1 + $0x90] sm:$0xff]
        %v623 = vld [vmem:[%s1 + $0x98] sm:$0xff]
        %v624 = vld [vmem:[%s1 + $0xa0] sm:$0xff]
        %v625 = vld [vmem:[%s1 + $0xa8] sm:$0xff]
        %v626 = vld [vmem:[%s1 + $0xb0] sm:$0xff]
        %v627 = vld [vmem:[%s1 + $0xb8] sm:$0xff]
        %v628 = vld [vmem:[%s1 + $0xc0] sm:$0xff]
        %v629 = vld [vmem:[%s1 + $0xc8] sm:$0xff]
        %v630 = vld [vmem:[%s1 + $0xd0] sm:$0xff]
        %v631 = vld [vmem:[%s1 + $0xd8] sm:$0xff]
        %v632 = vld [vmem:[%s1 + $0xe0] sm:$0xff]
        %v633 = vld [vmem:[%s1 + $0xe8] sm:$0xff]
        %v634 = vld [vmem:[%s1 + $0xf0] sm:$0xff]
        %v635 = vld [vmem:[%s1 + $0xf8] sm:$0xff]
        %v636 = vld [vmem:[%s1 + $0x100] sm:$0xff]
        %v637 = vld [vmem:[%s1 + $0x108] sm:$0xff]
        %v638 = vld [vmem:[%s1 + $0x110] sm:$0xff]
        %v639 = vld [vmem:[%s1 + $0x118] sm:$0xff]
        %v640 = vld [vmem:[%s1 + $0x120] sm:$0xff]
        %v641 = vld [vmem:[%s1 + $0x128] sm:$0xff]
        %v642 = vld [vmem:[%s1 + $0x130] sm:$0xff]
        %v643 = vld [vmem:[%s1 + $0x138] sm:$0xff]
        %v644 = vld [vmem:[%s2] sm:$0xff]
        %v645 = vld [vmem:[%s2 + $0x8] sm:$0xff]
        %vm646 = vcmask 523264
        %v648 = vsel %vm646, %v600, 0
        %v651 = vsel %vm646, %v603, 0
        %653 = vmatprep.subr.mxu0 0.0
        %654 = vmatpush1.msra.mxu0 %v604
        %655 = vmatprep.subr.mxu0 0.0
        %656 = vmatpush1.msra.mxu0 %v605
        %657 = vmatprep.subr.mxu0 0.0
        %658 = vmatpush1.msra.mxu0 %v606
        %659 = vmatprep.subr.mxu0 0.0
        %660 = vmatpush1.msra.mxu0 %v607
        %661 = vmatprep.subr.mxu0 0.0
        %662 = vmatpush1.msra.mxu0 %v608
        %663 = vmatprep.subr.mxu0 0.0
        %664 = vmatpush1.msra.mxu0 %v609
        %665 = vmatprep.subr.mxu0 0.0
        %666 = vmatpush1.msra.mxu0 %v610
        %667 = vmatprep.subr.mxu0 0.0
        %668 = vmatpush1.msra.mxu0 %v611
        %669 = vmatprep.subr.mxu0 0.0
        %670 = vmatpush1.msra.mxu0 %v612
        %671 = vmatprep.subr.mxu0 0.0
        %672 = vmatpush1.msra.mxu0 %v613
        %673 = vmatprep.subr.mxu0 0.0
        %674 = vmatpush1.msra.mxu0 %v614
        %675 = vmatprep.subr.mxu0 0.0
        %676 = vmatpush1.msra.mxu0 %v615
        %677 = vmatprep.subr.mxu0 0.0
        %678 = vmatpush1.msra.mxu0 %v616
        %679 = vmatprep.subr.mxu0 0.0
        %680 = vmatpush1.msra.mxu0 %v617
        %681 = vmatprep.subr.mxu0 0.0
        %682 = vmatpush1.msra.mxu0 %v618
        %683 = vmatprep.subr.mxu0 0.0
        %684 = vmatpush1.msra.mxu0 %v619
        %685 = vmatprep.subr.mxu0 0.0
        %686 = vmatpush1.msra.mxu0 %v620
        %687 = vmatprep.subr.mxu0 0.0
        %688 = vmatpush1.msra.mxu0 %v621
        %689 = vmatprep.subr.mxu0 0.0
        %690 = vmatpush1.msra.mxu0 %v622
        %691 = vmatprep.subr.mxu0 0.0
        %692 = vmatpush1.msra.mxu0 %v623
        %693 = vmatprep.subr.mxu0 0.0
        %694 = vmatpush1.msra.mxu0 %v624
        %695 = vmatprep.subr.mxu0 0.0
        %696 = vmatpush1.msra.mxu0 %v625
        %697 = vmatprep.subr.mxu0 0.0
        %698 = vmatpush1.msra.mxu0 %v626
        %699 = vmatprep.subr.mxu0 0.0
        %700 = vmatpush1.msra.mxu0 %v627
        %701 = vmatprep.subr.mxu0 0.0
        %702 = vmatpush1.msra.mxu0 %v628
        %703 = vmatprep.subr.mxu0 0.0
        %704 = vmatpush1.msra.mxu0 %v629
        %705 = vmatprep.subr.mxu0 0.0
        %706 = vmatpush1.msra.mxu0 %v630
        %707 = vmatprep.subr.mxu0 0.0
        %708 = vmatpush1.msra.mxu0 %v631
        %709 = vmatprep.subr.mxu0 0.0
        %710 = vmatpush1.msra.mxu0 %v632
        %711 = vmatprep.subr.mxu0 0.0
        %712 = vmatpush1.msra.mxu0 %v633
        %713 = vmatprep.subr.mxu0 0.0
        %714 = vmatpush1.msra.mxu0 %v634
        %715 = vmatprep.subr.mxu0 0.0
        %716 = vmatpush1.msra.mxu0 %v635
        %717 = vmatprep.mubr.f32.mxu0 %v599
        %718 = vmatmul.mubr.f32.gmra.mrb[0].mxu0 %v598
        %v719 = vpop.f32.mrb[0].mxu0
        %v720 = vadd.f32 %v644, %v719
        %v721 = vpop.f32.mrb[0].mxu0
        %722 = vmatprep.mubr.f32.mxu0 %v602
        %723 = vmatmul.mubr.f32.gmra.mrb[0].mxu0 %v601
        %v724 = vpop.f32.mrb[0].mxu0
        %v725 = vadd.f32 %v645, %v724
        %v726 = vpop.f32.mrb[0].mxu0
        %727 = vdwg.mxu0
        %728 = vmatprep.subr.mxu0 0.0
        %729 = vmatpush1.msra.mxu0 %v636
        %730 = vmatprep.subr.mxu0 0.0
        %731 = vmatpush1.msra.mxu0 %v637
        %732 = vmatprep.subr.mxu0 0.0
        %733 = vmatpush1.msra.mxu0 %v638
        %734 = vmatprep.subr.mxu0 0.0
        %735 = vmatpush1.msra.mxu0 %v639
        %736 = vmatprep.subr.mxu0 0.0
        %737 = vmatpush1.msra.mxu0 %v640
        %738 = vmatprep.subr.mxu0 0.0
        %739 = vmatpush1.msra.mxu0 %v641
        %740 = vmatprep.subr.mxu0 0.0
        %741 = vmatpush1.msra.mxu0 %v642
        %742 = vmatprep.subr.mxu0 0.0
        %743 = vmatpush1.msra.mxu0 %v643
        %744 = vmatprep.subr.mxu0 0.0
        %745 = vmatpush1.msra.mxu0 0.0
        %746 = vmatprep.subr.mxu0 0.0
        %747 = vmatpush1.msra.mxu0 0.0
        %748 = vmatprep.subr.mxu0 0.0
        %749 = vmatpush1.msra.mxu0 0.0
        %750 = vmatprep.subr.mxu0 0.0
        %751 = vmatpush1.msra.mxu0 0.0
        %752 = vmatprep.subr.mxu0 0.0
        %753 = vmatpush1.msra.mxu0 0.0
        %754 = vmatprep.subr.mxu0 0.0
        %755 = vmatpush1.msra.mxu0 0.0
        %756 = vmatprep.subr.mxu0 0.0
        %757 = vmatpush1.msra.mxu0 0.0
        %758 = vmatprep.subr.mxu0 0.0
        %759 = vmatpush1.msra.mxu0 0.0
        %760 = vmatprep.subr.mxu0 0.0
        %761 = vmatpush1.msra.mxu0 0.0
        %762 = vmatprep.subr.mxu0 0.0
        %763 = vmatpush1.msra.mxu0 0.0
        %764 = vmatprep.subr.mxu0 0.0
        %765 = vmatpush1.msra.mxu0 0.0
        %766 = vmatprep.subr.mxu0 0.0
        %767 = vmatpush1.msra.mxu0 0.0
        %768 = vmatprep.subr.mxu0 0.0
        %769 = vmatpush1.msra.mxu0 0.0
        %770 = vmatprep.subr.mxu0 0.0
        %771 = vmatpush1.msra.mxu0 0.0
        %772 = vmatprep.subr.mxu0 0.0
        %773 = vmatpush1.msra.mxu0 0.0
        %774 = vmatprep.subr.mxu0 0.0
        %775 = vmatpush1.msra.mxu0 0.0
        %776 = vmatprep.subr.mxu0 0.0
        %777 = vmatpush1.msra.mxu0 0.0
        %778 = vmatprep.subr.mxu0 0.0
        %779 = vmatpush1.msra.mxu0 0.0
        %780 = vmatprep.subr.mxu0 0.0
        %781 = vmatpush1.msra.mxu0 0.0
        %782 = vmatprep.subr.mxu0 0.0
        %783 = vmatpush1.msra.mxu0 0.0
        %784 = vmatprep.subr.mxu0 0.0
        %785 = vmatpush1.msra.mxu0 0.0
        %786 = vmatprep.subr.mxu0 0.0
        %787 = vmatpush1.msra.mxu0 0.0
        %788 = vmatprep.subr.mxu0 0.0
        %789 = vmatpush1.msra.mxu0 0.0
        %790 = vmatprep.subr.mxu0 0.0
        %791 = vmatpush1.msra.mxu0 0.0
        %792 = vmatprep.mubr.f32.mxu0 0.0
        %793 = vmatmul.mubr.f32.gmra.mrb[0].mxu0 %v648
        %v794 = vpop.f32.mrb[0].mxu0
        %v795 = vadd.f32 %v720, %v794
        %v796 = vpop.f32.mrb[0].mxu0
        %797 = vmatprep.mubr.f32.mxu0 0.0
        %798 = vmatmul.mubr.f32.gmra.mrb[0].mxu0 %v651
        %v799 = vpop.f32.mrb[0].mxu0
        %v800 = vadd.f32 %v725, %v799
        %v801 = vpop.f32.mrb[0].mxu0
        %802 = vdwg.mxu0
        %v803 = vlaneseq
        %v804 = vshrl.u32 %v803, 7
        %v805 = vadd.s32 %v804, 8
        %vm806 = vcmp.gt.s32.totalorder %v577, %v804
        %vm807 = vcmp.gt.s32.totalorder %v577, %v805
        %v808 = vsel %vm806, -1e+30, 0.0
        %v809 = vsel %vm807, -1e+30, 0.0
        %v810 = vld [vmem:[%s3] sm:$0xff]
        %v811 = vld [vmem:[%s3 + $0x8] sm:$0xff]
        %v812 = vld [vmem:[%s3 + $0x10] sm:$0xff]
        %v813 = vld [vmem:[%s3 + $0x18] sm:$0xff]
        %v814 = vld [vmem:[%s3 + $0x20] sm:$0xff]
        %v815 = vld [vmem:[%s3 + $0x28] sm:$0xff]
        %v816 = vld [vmem:[%s3 + $0x30] sm:$0xff]
        %v817 = vld [vmem:[%s3 + $0x38] sm:$0xff]
        %v818 = vld [vmem:[%s3 + $0x40] sm:$0xff]
        %v819 = vld [vmem:[%s3 + $0x48] sm:$0xff]
        %v820 = vld [vmem:[%s3 + $0x50] sm:$0xff]
        %v821 = vld [vmem:[%s3 + $0x58] sm:$0xff]
        %v822 = vld [vmem:[%s3 + $0x60] sm:$0xff]
        %v823 = vld [vmem:[%s3 + $0x68] sm:$0xff]
        %v824 = vld [vmem:[%s3 + $0x70] sm:$0xff]
        %v825 = vld [vmem:[%s3 + $0x78] sm:$0xff]
        %v826 = vld [vmem:[%s4] sm:$0x3]
        %v828 = vlaneseq
        %v829 = vshrl.u32 %v828, 7
        %v830 = vsub.s32 0, %v829
        %v831 = vrot.slane %v826, %v830
        %v832 = vlaneseq
        %v833 = vshrl.u32 %v832, 7
        %v834 = vsub.s32 1, %v833
        %v835 = vrot.slane %v826, %v834
        %v839 = vsel %vm646, %v795, 0
        %v842 = vsel %vm646, %v800, 0
        %844 = vmatprep.subr.mxu0 %v811
        %845 = vmatpush1.msra.mxu0 %v810
        %846 = vmatprep.subr.mxu0 %v813
        %847 = vmatpush1.msra.mxu0 %v812
        %848 = vmatprep.subr.mxu0 %v815
        %849 = vmatpush1.msra.mxu0 %v814
        %850 = vmatprep.subr.mxu0 %v817
        %851 = vmatpush1.msra.mxu0 %v816
        %852 = vmatprep.subr.mxu0 %v819
        %853 = vmatpush1.msra.mxu0 %v818
        %854 = vmatprep.subr.mxu0 %v821
        %855 = vmatpush1.msra.mxu0 %v820
        %856 = vmatprep.subr.mxu0 %v823
        %857 = vmatpush1.msra.mxu0 %v822
        %858 = vmatprep.subr.mxu0 %v825
        %859 = vmatpush1.msra.mxu0 %v824
        %860 = vmatprep.subr.mxu0 0.0
        %861 = vmatpush1.msra.mxu0 0.0
        %862 = vmatprep.subr.mxu0 0.0
        %863 = vmatpush1.msra.mxu0 0.0
        %864 = vmatprep.subr.mxu0 0.0
        %865 = vmatpush1.msra.mxu0 0.0
        %866 = vmatprep.subr.mxu0 0.0
        %867 = vmatpush1.msra.mxu0 0.0
        %868 = vmatprep.subr.mxu0 0.0
        %869 = vmatpush1.msra.mxu0 0.0
        %870 = vmatprep.subr.mxu0 0.0
        %871 = vmatpush1.msra.mxu0 0.0
        %872 = vmatprep.subr.mxu0 0.0
        %873 = vmatpush1.msra.mxu0 0.0
        %874 = vmatprep.subr.mxu0 0.0
        %875 = vmatpush1.msra.mxu0 0.0
        %876 = vmatprep.subr.mxu0 0.0
        %877 = vmatpush1.msra.mxu0 0.0
        %878 = vmatprep.subr.mxu0 0.0
        %879 = vmatpush1.msra.mxu0 0.0
        %880 = vmatprep.subr.mxu0 0.0
        %881 = vmatpush1.msra.mxu0 0.0
        %882 = vmatprep.subr.mxu0 0.0
        %883 = vmatpush1.msra.mxu0 0.0
        %884 = vmatprep.subr.mxu0 0.0
        %885 = vmatpush1.msra.mxu0 0.0
        %886 = vmatprep.subr.mxu0 0.0
        %887 = vmatpush1.msra.mxu0 0.0
        %888 = vmatprep.subr.mxu0 0.0
        %889 = vmatpush1.msra.mxu0 0.0
        %890 = vmatprep.subr.mxu0 0.0
        %891 = vmatpush1.msra.mxu0 0.0
        %892 = vmatprep.subr.mxu0 0.0
        %893 = vmatpush1.msra.mxu0 0.0
        %894 = vmatprep.subr.mxu0 0.0
        %895 = vmatpush1.msra.mxu0 0.0
        %896 = vmatprep.subr.mxu0 0.0
        %897 = vmatpush1.msra.mxu0 0.0
        %898 = vmatprep.subr.mxu0 0.0
        %899 = vmatpush1.msra.mxu0 0.0
        %900 = vmatprep.subr.mxu0 0.0
        %901 = vmatpush1.msra.mxu0 0.0
        %902 = vmatprep.subr.mxu0 0.0
        %903 = vmatpush1.msra.mxu0 0.0
        %904 = vmatprep.subr.mxu0 0.0
        %905 = vmatpush1.msra.mxu0 0.0
        %906 = vmatprep.subr.mxu0 0.0
        %907 = vmatpush1.msra.mxu0 0.0
        %908 = vmatprep.mubr.f32.mxu0 0.0
        %909 = vmatmul.mubr.f32.gmra.mrb[0].mxu0 %v839
        %v910 = vpop.f32.mrb[0].mxu0
        %v911 = vadd.f32 %v831, %v910
        %v912 = vpop.f32.mrb[0].mxu0
        %v913 = vadd.f32 %v835, %v912
        %914 = vmatprep.mubr.f32.mxu0 0.0
        %915 = vmatmul.mubr.f32.gmra.mrb[0].mxu0 %v842
        %v916 = vpop.f32.mrb[0].mxu0
        %v917 = vadd.f32 %v831, %v916
        %v918 = vpop.f32.mrb[0].mxu0
        %v919 = vadd.f32 %v835, %v918
        %920 = vdwg.mxu0
        %v921 = vmul.f32 %v911, 0.25
        %v922 = vmul.f32 %v917, 0.25
        %v923 = vld [vmem:[%s5] sm:$0xff]
        %v924 = vld [vmem:[%s5 + $0x8] sm:$0xff]
        %v925 = vld [vmem:[%s5 + $0x10] sm:$0xff]
        %v926 = vld [vmem:[%s5 + $0x18] sm:$0xff]
        %v927 = vld [vmem:[%s5 + $0x20] sm:$0xff]
        %v928 = vld [vmem:[%s5 + $0x28] sm:$0xff]
        %v929 = vld [vmem:[%s5 + $0x30] sm:$0xff]
        %v930 = vld [vmem:[%s5 + $0x38] sm:$0xff]
        %933 = vrot.lane.b32.xlu0 %v911, 64
        %v934 = vpop.permute.xlu0 %933
        %935 = vrot.lane.b32.xlu0 %v917, 64
        %v936 = vpop.permute.xlu0 %935
        %vm937 = vcmask 130048
        %v939 = vsel %vm937, %v921, 0
        %v942 = vsel %vm937, %v922, 0
        %v944 = vsel %vm937, %v934, 0
        %v946 = vsel %vm937, %v936, 0
        %948 = vmatprep.subr.mxu0 0.0
        %949 = vmatpush1.xpose.msra.mxu0 %v944
        %950 = vmatprep.subr.mxu0 0.0
        %951 = vmatpush1.xpose.msra.mxu0 %v946
        %952 = vmatprep.subr.mxu0 0.0
        %953 = vmatpush1.xpose.msra.mxu0 0.0
        %954 = vmatprep.subr.mxu0 0.0
        %955 = vmatpush1.xpose.msra.mxu0 0.0
        %956 = vmatprep.subr.mxu0 0.0
        %957 = vmatpush1.xpose.msra.mxu0 0.0
        %958 = vmatprep.subr.mxu0 0.0
        %959 = vmatpush1.xpose.msra.mxu0 0.0
        %960 = vmatprep.subr.mxu0 0.0
        %961 = vmatpush1.xpose.msra.mxu0 0.0
        %962 = vmatprep.subr.mxu0 0.0
        %963 = vmatpush1.xpose.msra.mxu0 0.0
        %964 = vmatprep.subr.mxu0 0.0
        %965 = vmatpush1.xpose.msra.mxu0 0.0
        %966 = vmatprep.subr.mxu0 0.0
        %967 = vmatpush1.xpose.msra.mxu0 0.0
        %968 = vmatprep.subr.mxu0 0.0
        %969 = vmatpush1.xpose.msra.mxu0 0.0
        %970 = vmatprep.subr.mxu0 0.0
        %971 = vmatpush1.xpose.msra.mxu0 0.0
        %972 = vmatprep.subr.mxu0 0.0
        %973 = vmatpush1.xpose.msra.mxu0 0.0
        %974 = vmatprep.subr.mxu0 0.0
        %975 = vmatpush1.xpose.msra.mxu0 0.0
        %976 = vmatprep.subr.mxu0 0.0
        %977 = vmatpush1.xpose.msra.mxu0 0.0
        %978 = vmatprep.subr.mxu0 0.0
        %979 = vmatpush1.xpose.msra.mxu0 0.0
        %980 = vmatprep.subr.mxu0 0.0
        %981 = vmatpush1.xpose.msra.mxu0 0.0
        %982 = vmatprep.subr.mxu0 0.0
        %983 = vmatpush1.xpose.msra.mxu0 0.0
        %984 = vmatprep.subr.mxu0 0.0
        %985 = vmatpush1.xpose.msra.mxu0 0.0
        %986 = vmatprep.subr.mxu0 0.0
        %987 = vmatpush1.xpose.msra.mxu0 0.0
        %988 = vmatprep.subr.mxu0 0.0
        %989 = vmatpush1.xpose.msra.mxu0 0.0
        %990 = vmatprep.subr.mxu0 0.0
        %991 = vmatpush1.xpose.msra.mxu0 0.0
        %992 = vmatprep.subr.mxu0 0.0
        %993 = vmatpush1.xpose.msra.mxu0 0.0
        %994 = vmatprep.subr.mxu0 0.0
        %995 = vmatpush1.xpose.msra.mxu0 0.0
        %996 = vmatprep.subr.mxu0 0.0
        %997 = vmatpush1.xpose.msra.mxu0 0.0
        %998 = vmatprep.subr.mxu0 0.0
        %999 = vmatpush1.xpose.msra.mxu0 0.0
        %1000 = vmatprep.subr.mxu0 0.0
        %1001 = vmatpush1.xpose.msra.mxu0 0.0
        %1002 = vmatprep.subr.mxu0 0.0
        %1003 = vmatpush1.xpose.msra.mxu0 0.0
        %1004 = vmatprep.subr.mxu0 0.0
        %1005 = vmatpush1.xpose.msra.mxu0 0.0
        %1006 = vmatprep.subr.mxu0 0.0
        %1007 = vmatpush1.xpose.msra.mxu0 0.0
        %1008 = vmatprep.subr.mxu0 0.0
        %1009 = vmatpush1.xpose.msra.mxu0 0.0
        %1010 = vmatprep.subr.mxu0 0.0
        %1011 = vmatpush1.xpose.msra.mxu0 0.0
        %1012 = vmatprep.mubr.f32.mxu0 0.0
        %1013 = vmatmul.mubr.f32.gmra.mrb[0].mxu0 %v939
        %v1014 = vpop.f32.mrb[0].mxu0
        %v1015 = vadd.f32 %v808, %v1014
        %v1016 = vpop.f32.mrb[0].mxu0
        %1017 = vmatprep.mubr.f32.mxu0 0.0
        %1018 = vmatmul.mubr.f32.gmra.mrb[0].mxu0 %v942
        %v1019 = vpop.f32.mrb[0].mxu0
        %v1020 = vadd.f32 %v809, %v1019
        %v1021 = vpop.f32.mrb[0].mxu0
        %1022 = vdwg.mxu0
        %v1023 = vsel %vm937, %v1015, -inf
        %1024 = vmax.xlane.f32.xlu0 %v1023
        %v1025 = vpop.xlane.xlu0 %1024
        %v1026 = vsel %vm937, %v1020, -inf
        %1027 = vmax.xlane.f32.xlu0 %v1026
        %v1028 = vpop.xlane.xlu0 %1027
        %v1029 = vsub.f32 %v1015, %v1025
        %v1030 = vsub.f32 %v1020, %v1028
        %v1031 = vmul.f32 %v1029, 1.442695
        %v1032 = vpow.pop %v1031
        %v1033 = vmul.f32 %v1030, 1.442695
        %v1034 = vpow.pop %v1033
        %v1035 = vsel %vm937, %v1032, 0.0
        %1036 = vadd.xlane.f32.xlu0 %v1035
        %v1037 = vpop.xlane.xlu0 %1036
        %v1038 = vsel %vm937, %v1034, 0.0
        %1039 = vadd.xlane.f32.xlu0 %v1038
        %v1040 = vpop.xlane.xlu0 %1039
        %v1041 = vrcp.pop %v1037
        %v1042 = vrcp.pop %v1040
        %v1043 = vmul.f32 %v1032, %v1041
        %v1044 = vmul.f32 %v1034, %v1042
        %v1046 = vsel %vm937, %v1043, 0
        %v1049 = vsel %vm937, %v1044, 0
        %1051 = vmatprep.subr.mxu0 0.0
        %1052 = vmatpush1.msra.mxu0 %v913
        %1053 = vmatprep.subr.mxu0 0.0
        %1054 = vmatpush1.msra.mxu0 %v919
        %1055 = vmatprep.subr.mxu0 0.0
        %1056 = vmatpush1.msra.mxu0 0.0
        %1057 = vmatprep.subr.mxu0 0.0
        %1058 = vmatpush1.msra.mxu0 0.0
        %1059 = vmatprep.subr.mxu0 0.0
        %1060 = vmatpush1.msra.mxu0 0.0
        %1061 = vmatprep.subr.mxu0 0.0
        %1062 = vmatpush1.msra.mxu0 0.0
        %1063 = vmatprep.subr.mxu0 0.0
        %1064 = vmatpush1.msra.mxu0 0.0
        %1065 = vmatprep.subr.mxu0 0.0
        %1066 = vmatpush1.msra.mxu0 0.0
        %1067 = vmatprep.subr.mxu0 0.0
        %1068 = vmatpush1.msra.mxu0 0.0
        %1069 = vmatprep.subr.mxu0 0.0
        %1070 = vmatpush1.msra.mxu0 0.0
        %1071 = vmatprep.subr.mxu0 0.0
        %1072 = vmatpush1.msra.mxu0 0.0
        %1073 = vmatprep.subr.mxu0 0.0
        %1074 = vmatpush1.msra.mxu0 0.0
        %1075 = vmatprep.subr.mxu0 0.0
        %1076 = vmatpush1.msra.mxu0 0.0
        %1077 = vmatprep.subr.mxu0 0.0
        %1078 = vmatpush1.msra.mxu0 0.0
        %1079 = vmatprep.subr.mxu0 0.0
        %1080 = vmatpush1.msra.mxu0 0.0
        %1081 = vmatprep.subr.mxu0 0.0
        %1082 = vmatpush1.msra.mxu0 0.0
        %1083 = vmatprep.subr.mxu0 0.0
        %1084 = vmatpush1.msra.mxu0 0.0
        %1085 = vmatprep.subr.mxu0 0.0
        %1086 = vmatpush1.msra.mxu0 0.0
        %1087 = vmatprep.subr.mxu0 0.0
        %1088 = vmatpush1.msra.mxu0 0.0
        %1089 = vmatprep.subr.mxu0 0.0
        %1090 = vmatpush1.msra.mxu0 0.0
        %1091 = vmatprep.subr.mxu0 0.0
        %1092 = vmatpush1.msra.mxu0 0.0
        %1093 = vmatprep.subr.mxu0 0.0
        %1094 = vmatpush1.msra.mxu0 0.0
        %1095 = vmatprep.subr.mxu0 0.0
        %1096 = vmatpush1.msra.mxu0 0.0
        %1097 = vmatprep.subr.mxu0 0.0
        %1098 = vmatpush1.msra.mxu0 0.0
        %1099 = vmatprep.subr.mxu0 0.0
        %1100 = vmatpush1.msra.mxu0 0.0
        %1101 = vmatprep.subr.mxu0 0.0
        %1102 = vmatpush1.msra.mxu0 0.0
        %1103 = vmatprep.subr.mxu0 0.0
        %1104 = vmatpush1.msra.mxu0 0.0
        %1105 = vmatprep.subr.mxu0 0.0
        %1106 = vmatpush1.msra.mxu0 0.0
        %1107 = vmatprep.subr.mxu0 0.0
        %1108 = vmatpush1.msra.mxu0 0.0
        %1109 = vmatprep.subr.mxu0 0.0
        %1110 = vmatpush1.msra.mxu0 0.0
        %1111 = vmatprep.subr.mxu0 0.0
        %1112 = vmatpush1.msra.mxu0 0.0
        %1113 = vmatprep.subr.mxu0 0.0
        %1114 = vmatpush1.msra.mxu0 0.0
        %1115 = vmatprep.mubr.f32.mxu0 0.0
        %1116 = vmatmul.mubr.f32.gmra.mrb[0].mxu0 %v1046
        %v1117 = vpop.f32.mrb[0].mxu0
        %v1118 = vadd.f32 0.0, %v1117
        %v1119 = vpop.f32.mrb[0].mxu0
        %1120 = vmatprep.mubr.f32.mxu0 0.0
        %1121 = vmatmul.mubr.f32.gmra.mrb[0].mxu0 %v1049
        %v1122 = vpop.f32.mrb[0].mxu0
        %v1123 = vadd.f32 0.0, %v1122
        %v1124 = vpop.f32.mrb[0].mxu0
        %1125 = vdwg.mxu0
        %1126 = vrot.lane.b32.xlu0 %v921, 112
        %v1127 = vpop.permute.xlu0 %1126
        %1128 = vrot.lane.b32.xlu0 %v922, 112
        %v1129 = vpop.permute.xlu0 %1128
        %1130 = vrot.lane.b32.xlu0 %v911, 48
        %v1131 = vpop.permute.xlu0 %1130
        %1132 = vrot.lane.b32.xlu0 %v917, 48
        %v1133 = vpop.permute.xlu0 %1132
        %v1134 = vsel %vm937, %v1127, 0
        %v1136 = vsel %vm937, %v1129, 0
        %v1138 = vsel %vm937, %v1131, 0
        %v1140 = vsel %vm937, %v1133, 0
        %1142 = vmatprep.subr.mxu0 0.0
        %1143 = vmatpush1.xpose.msra.mxu0 %v1138
        %1144 = vmatprep.subr.mxu0 0.0
        %1145 = vmatpush1.xpose.msra.mxu0 %v1140
        %1146 = vmatprep.subr.mxu0 0.0
        %1147 = vmatpush1.xpose.msra.mxu0 0.0
        %1148 = vmatprep.subr.mxu0 0.0
        %1149 = vmatpush1.xpose.msra.mxu0 0.0
        %1150 = vmatprep.subr.mxu0 0.0
        %1151 = vmatpush1.xpose.msra.mxu0 0.0
        %1152 = vmatprep.subr.mxu0 0.0
        %1153 = vmatpush1.xpose.msra.mxu0 0.0
        %1154 = vmatprep.subr.mxu0 0.0
        %1155 = vmatpush1.xpose.msra.mxu0 0.0
        %1156 = vmatprep.subr.mxu0 0.0
        %1157 = vmatpush1.xpose.msra.mxu0 0.0
        %1158 = vmatprep.subr.mxu0 0.0
        %1159 = vmatpush1.xpose.msra.mxu0 0.0
        %1160 = vmatprep.subr.mxu0 0.0
        %1161 = vmatpush1.xpose.msra.mxu0 0.0
        %1162 = vmatprep.subr.mxu0 0.0
        %1163 = vmatpush1.xpose.msra.mxu0 0.0
        %1164 = vmatprep.subr.mxu0 0.0
        %1165 = vmatpush1.xpose.msra.mxu0 0.0
        %1166 = vmatprep.subr.mxu0 0.0
        %1167 = vmatpush1.xpose.msra.mxu0 0.0
        %1168 = vmatprep.subr.mxu0 0.0
        %1169 = vmatpush1.xpose.msra.mxu0 0.0
        %1170 = vmatprep.subr.mxu0 0.0
        %1171 = vmatpush1.xpose.msra.mxu0 0.0
        %1172 = vmatprep.subr.mxu0 0.0
        %1173 = vmatpush1.xpose.msra.mxu0 0.0
        %1174 = vmatprep.subr.mxu0 0.0
        %1175 = vmatpush1.xpose.msra.mxu0 0.0
        %1176 = vmatprep.subr.mxu0 0.0
        %1177 = vmatpush1.xpose.msra.mxu0 0.0
        %1178 = vmatprep.subr.mxu0 0.0
        %1179 = vmatpush1.xpose.msra.mxu0 0.0
        %1180 = vmatprep.subr.mxu0 0.0
        %1181 = vmatpush1.xpose.msra.mxu0 0.0
        %1182 = vmatprep.subr.mxu0 0.0
        %1183 = vmatpush1.xpose.msra.mxu0 0.0
        %1184 = vmatprep.subr.mxu0 0.0
        %1185 = vmatpush1.xpose.msra.mxu0 0.0
        %1186 = vmatprep.subr.mxu0 0.0
        %1187 = vmatpush1.xpose.msra.mxu0 0.0
        %1188 = vmatprep.subr.mxu0 0.0
        %1189 = vmatpush1.xpose.msra.mxu0 0.0
        %1190 = vmatprep.subr.mxu0 0.0
        %1191 = vmatpush1.xpose.msra.mxu0 0.0
        %1192 = vmatprep.subr.mxu0 0.0
        %1193 = vmatpush1.xpose.msra.mxu0 0.0
        %1194 = vmatprep.subr.mxu0 0.0
        %1195 = vmatpush1.xpose.msra.mxu0 0.0
        %1196 = vmatprep.subr.mxu0 0.0
        %1197 = vmatpush1.xpose.msra.mxu0 0.0
        %1198 = vmatprep.subr.mxu0 0.0
        %1199 = vmatpush1.xpose.msra.mxu0 0.0
        %1200 = vmatprep.subr.mxu0 0.0
        %1201 = vmatpush1.xpose.msra.mxu0 0.0
        %1202 = vmatprep.subr.mxu0 0.0
        %1203 = vmatpush1.xpose.msra.mxu0 0.0
        %1204 = vmatprep.subr.mxu0 0.0
        %1205 = vmatpush1.xpose.msra.mxu0 0.0
        %1206 = vmatprep.mubr.f32.mxu0 0.0
        %1207 = vmatmul.mubr.f32.gmra.mrb[0].mxu0 %v1134
        %v1208 = vpop.f32.mrb[0].mxu0
        %v1209 = vadd.f32 %v808, %v1208
        %v1210 = vpop.f32.mrb[0].mxu0
        %1211 = vmatprep.mubr.f32.mxu0 0.0
        %1212 = vmatmul.mubr.f32.gmra.mrb[0].mxu0 %v1136
        %v1213 = vpop.f32.mrb[0].mxu0
        %v1214 = vadd.f32 %v809, %v1213
        %v1215 = vpop.f32.mrb[0].mxu0
        %1216 = vdwg.mxu0
        %v1217 = vsel %vm937, %v1209, -inf
        %1218 = vmax.xlane.f32.xlu0 %v1217
        %v1219 = vpop.xlane.xlu0 %1218
        %v1220 = vsel %vm937, %v1214, -inf
        %1221 = vmax.xlane.f32.xlu0 %v1220
        %v1222 = vpop.xlane.xlu0 %1221
        %v1223 = vsub.f32 %v1209, %v1219
        %v1224 = vsub.f32 %v1214, %v1222
        %v1225 = vmul.f32 %v1223, 1.442695
        %v1226 = vpow.pop %v1225
        %v1227 = vmul.f32 %v1224, 1.442695
        %v1228 = vpow.pop %v1227
        %v1229 = vsel %vm937, %v1226, 0.0
        %1230 = vadd.xlane.f32.xlu0 %v1229
        %v1231 = vpop.xlane.xlu0 %1230
        %v1232 = vsel %vm937, %v1228, 0.0
        %1233 = vadd.xlane.f32.xlu0 %v1232
        %v1234 = vpop.xlane.xlu0 %1233
        %v1235 = vrcp.pop %v1231
        %v1236 = vrcp.pop %v1234
        %v1237 = vmul.f32 %v1226, %v1235
        %v1238 = vmul.f32 %v1228, %v1236
        %1241 = vrot.lane.b32.xlu0 %v913, 112
        %v1242 = vpop.permute.xlu0 %1241
        %1243 = vrot.lane.b32.xlu0 %v919, 112
        %v1244 = vpop.permute.xlu0 %1243
        %v1248 = vsel %vm937, %v1237, 0
        %v1251 = vsel %vm937, %v1238, 0
        %1253 = vmatprep.subr.mxu0 0.0
        %1254 = vmatpush1.msra.mxu0 %v1242
        %1255 = vmatprep.subr.mxu0 0.0
        %1256 = vmatpush1.msra.mxu0 %v1244
        %1257 = vmatprep.subr.mxu0 0.0
        %1258 = vmatpush1.msra.mxu0 0.0
        %1259 = vmatprep.subr.mxu0 0.0
        %1260 = vmatpush1.msra.mxu0 0.0
        %1261 = vmatprep.subr.mxu0 0.0
        %1262 = vmatpush1.msra.mxu0 0.0
        %1263 = vmatprep.subr.mxu0 0.0
        %1264 = vmatpush1.msra.mxu0 0.0
        %1265 = vmatprep.subr.mxu0 0.0
        %1266 = vmatpush1.msra.mxu0 0.0
        %1267 = vmatprep.subr.mxu0 0.0
        %1268 = vmatpush1.msra.mxu0 0.0
        %1269 = vmatprep.subr.mxu0 0.0
        %1270 = vmatpush1.msra.mxu0 0.0
        %1271 = vmatprep.subr.mxu0 0.0
        %1272 = vmatpush1.msra.mxu0 0.0
        %1273 = vmatprep.subr.mxu0 0.0
        %1274 = vmatpush1.msra.mxu0 0.0
        %1275 = vmatprep.subr.mxu0 0.0
        %1276 = vmatpush1.msra.mxu0 0.0
        %1277 = vmatprep.subr.mxu0 0.0
        %1278 = vmatpush1.msra.mxu0 0.0
        %1279 = vmatprep.subr.mxu0 0.0
        %1280 = vmatpush1.msra.mxu0 0.0
        %1281 = vmatprep.subr.mxu0 0.0
        %1282 = vmatpush1.msra.mxu0 0.0
        %1283 = vmatprep.subr.mxu0 0.0
        %1284 = vmatpush1.msra.mxu0 0.0
        %1285 = vmatprep.subr.mxu0 0.0
        %1286 = vmatpush1.msra.mxu0 0.0
        %1287 = vmatprep.subr.mxu0 0.0
        %1288 = vmatpush1.msra.mxu0 0.0
        %1289 = vmatprep.subr.mxu0 0.0
        %1290 = vmatpush1.msra.mxu0 0.0
        %1291 = vmatprep.subr.mxu0 0.0
        %1292 = vmatpush1.msra.mxu0 0.0
        %1293 = vmatprep.subr.mxu0 0.0
        %1294 = vmatpush1.msra.mxu0 0.0
        %1295 = vmatprep.subr.mxu0 0.0
        %1296 = vmatpush1.msra.mxu0 0.0
        %1297 = vmatprep.subr.mxu0 0.0
        %1298 = vmatpush1.msra.mxu0 0.0
        %1299 = vmatprep.subr.mxu0 0.0
        %1300 = vmatpush1.msra.mxu0 0.0
        %1301 = vmatprep.subr.mxu0 0.0
        %1302 = vmatpush1.msra.mxu0 0.0
        %1303 = vmatprep.subr.mxu0 0.0
        %1304 = vmatpush1.msra.mxu0 0.0
        %1305 = vmatprep.subr.mxu0 0.0
        %1306 = vmatpush1.msra.mxu0 0.0
        %1307 = vmatprep.subr.mxu0 0.0
        %1308 = vmatpush1.msra.mxu0 0.0
        %1309 = vmatprep.subr.mxu0 0.0
        %1310 = vmatpush1.msra.mxu0 0.0
        %1311 = vmatprep.subr.mxu0 0.0
        %1312 = vmatpush1.msra.mxu0 0.0
        %1313 = vmatprep.subr.mxu0 0.0
        %1314 = vmatpush1.msra.mxu0 0.0
        %1315 = vmatprep.subr.mxu0 0.0
        %1316 = vmatpush1.msra.mxu0 0.0
        %1317 = vmatprep.mubr.f32.mxu0 0.0
        %1318 = vmatmul.mubr.f32.gmra.mrb[0].mxu0 %v1248
        %v1319 = vpop.f32.mrb[0].mxu0
        %v1320 = vadd.f32 0.0, %v1319
        %v1321 = vpop.f32.mrb[0].mxu0
        %1322 = vmatprep.mubr.f32.mxu0 0.0
        %1323 = vmatmul.mubr.f32.gmra.mrb[0].mxu0 %v1251
        %v1324 = vpop.f32.mrb[0].mxu0
        %v1325 = vadd.f32 0.0, %v1324
        %v1326 = vpop.f32.mrb[0].mxu0
        %1327 = vdwg.mxu0
        %v1329 = vsel %vm937, %v1320, 0
        %v1332 = vsel %vm937, %v1325, 0
        %1334 = vmatprep.subr.mxu0 0.0
        %1335 = vmatpush1.msra.mxu0 %v925
        %1336 = vmatprep.subr.mxu0 0.0
        %1337 = vmatpush1.msra.mxu0 %v926
        %1338 = vmatprep.subr.mxu0 0.0
        %1339 = vmatpush1.msra.mxu0 0.0
        %1340 = vmatprep.subr.mxu0 0.0
        %1341 = vmatpush1.msra.mxu0 0.0
        %1342 = vmatprep.subr.mxu0 0.0
        %1343 = vmatpush1.msra.mxu0 0.0
        %1344 = vmatprep.subr.mxu0 0.0
        %1345 = vmatpush1.msra.mxu0 0.0
        %1346 = vmatprep.subr.mxu0 0.0
        %1347 = vmatpush1.msra.mxu0 0.0
        %1348 = vmatprep.subr.mxu0 0.0
        %1349 = vmatpush1.msra.mxu0 0.0
        %1350 = vmatprep.subr.mxu0 0.0
        %1351 = vmatpush1.msra.mxu0 0.0
        %1352 = vmatprep.subr.mxu0 0.0
        %1353 = vmatpush1.msra.mxu0 0.0
        %1354 = vmatprep.subr.mxu0 0.0
        %1355 = vmatpush1.msra.mxu0 0.0
        %1356 = vmatprep.subr.mxu0 0.0
        %1357 = vmatpush1.msra.mxu0 0.0
        %1358 = vmatprep.subr.mxu0 0.0
        %1359 = vmatpush1.msra.mxu0 0.0
        %1360 = vmatprep.subr.mxu0 0.0
        %1361 = vmatpush1.msra.mxu0 0.0
        %1362 = vmatprep.subr.mxu0 0.0
        %1363 = vmatpush1.msra.mxu0 0.0
        %1364 = vmatprep.subr.mxu0 0.0
        %1365 = vmatpush1.msra.mxu0 0.0
        %1366 = vmatprep.subr.mxu0 0.0
        %1367 = vmatpush1.msra.mxu0 0.0
        %1368 = vmatprep.subr.mxu0 0.0
        %1369 = vmatpush1.msra.mxu0 0.0
        %1370 = vmatprep.subr.mxu0 0.0
        %1371 = vmatpush1.msra.mxu0 0.0
        %1372 = vmatprep.subr.mxu0 0.0
        %1373 = vmatpush1.msra.mxu0 0.0
        %1374 = vmatprep.subr.mxu0 0.0
        %1375 = vmatpush1.msra.mxu0 0.0
        %1376 = vmatprep.subr.mxu0 0.0
        %1377 = vmatpush1.msra.mxu0 0.0
        %1378 = vmatprep.subr.mxu0 0.0
        %1379 = vmatpush1.msra.mxu0 0.0
        %1380 = vmatprep.subr.mxu0 0.0
        %1381 = vmatpush1.msra.mxu0 0.0
        %1382 = vmatprep.subr.mxu0 0.0
        %1383 = vmatpush1.msra.mxu0 0.0
        %1384 = vmatprep.subr.mxu0 0.0
        %1385 = vmatpush1.msra.mxu0 0.0
        %1386 = vmatprep.subr.mxu0 0.0
        %1387 = vmatpush1.msra.mxu0 0.0
        %1388 = vmatprep.subr.mxu0 0.0
        %1389 = vmatpush1.msra.mxu0 0.0
        %1390 = vmatprep.subr.mxu0 0.0
        %1391 = vmatpush1.msra.mxu0 0.0
        %1392 = vmatprep.subr.mxu0 0.0
        %1393 = vmatpush1.msra.mxu0 0.0
        %1394 = vmatprep.subr.mxu0 0.0
        %1395 = vmatpush1.msra.mxu0 0.0
        %1396 = vmatprep.subr.mxu0 0.0
        %1397 = vmatpush1.msra.mxu0 0.0
        %1398 = vmatprep.mubr.f32.mxu0 0.0
        %1399 = vmatmul.mubr.f32.gmra.mrb[0].mxu0 %v1329
        %v1400 = vpop.f32.mrb[0].mxu0
        %v1401 = vadd.f32 0.0, %v1400
        %v1402 = vpop.f32.mrb[0].mxu0
        %1403 = vmatprep.mubr.f32.mxu0 0.0
        %1404 = vmatmul.mubr.f32.gmra.mrb[0].mxu0 %v1332
        %v1405 = vpop.f32.mrb[0].mxu0
        %v1406 = vadd.f32 0.0, %v1405
        %v1407 = vpop.f32.mrb[0].mxu0
        %1408 = vdwg.mxu0
        %v1410 = vsel %vm937, %v1118, 0
        %v1413 = vsel %vm937, %v1123, 0
        %1415 = vmatprep.subr.mxu0 0.0
        %1416 = vmatpush1.msra.mxu0 %v923
        %1417 = vmatprep.subr.mxu0 0.0
        %1418 = vmatpush1.msra.mxu0 %v924
        %1419 = vmatprep.subr.mxu0 0.0
        %1420 = vmatpush1.msra.mxu0 0.0
        %1421 = vmatprep.subr.mxu0 0.0
        %1422 = vmatpush1.msra.mxu0 0.0
        %1423 = vmatprep.subr.mxu0 0.0
        %1424 = vmatpush1.msra.mxu0 0.0
        %1425 = vmatprep.subr.mxu0 0.0
        %1426 = vmatpush1.msra.mxu0 0.0
        %1427 = vmatprep.subr.mxu0 0.0
        %1428 = vmatpush1.msra.mxu0 0.0
        %1429 = vmatprep.subr.mxu0 0.0
        %1430 = vmatpush1.msra.mxu0 0.0
        %1431 = vmatprep.subr.mxu0 0.0
        %1432 = vmatpush1.msra.mxu0 0.0
        %1433 = vmatprep.subr.mxu0 0.0
        %1434 = vmatpush1.msra.mxu0 0.0
        %1435 = vmatprep.subr.mxu0 0.0
        %1436 = vmatpush1.msra.mxu0 0.0
        %1437 = vmatprep.subr.mxu0 0.0
        %1438 = vmatpush1.msra.mxu0 0.0
        %1439 = vmatprep.subr.mxu0 0.0
        %1440 = vmatpush1.msra.mxu0 0.0
        %1441 = vmatprep.subr.mxu0 0.0
        %1442 = vmatpush1.msra.mxu0 0.0
        %1443 = vmatprep.subr.mxu0 0.0
        %1444 = vmatpush1.msra.mxu0 0.0
        %1445 = vmatprep.subr.mxu0 0.0
        %1446 = vmatpush1.msra.mxu0 0.0
        %1447 = vmatprep.subr.mxu0 0.0
        %1448 = vmatpush1.msra.mxu0 0.0
        %1449 = vmatprep.subr.mxu0 0.0
        %1450 = vmatpush1.msra.mxu0 0.0
        %1451 = vmatprep.subr.mxu0 0.0
        %1452 = vmatpush1.msra.mxu0 0.0
        %1453 = vmatprep.subr.mxu0 0.0
        %1454 = vmatpush1.msra.mxu0 0.0
        %1455 = vmatprep.subr.mxu0 0.0
        %1456 = vmatpush1.msra.mxu0 0.0
        %1457 = vmatprep.subr.mxu0 0.0
        %1458 = vmatpush1.msra.mxu0 0.0
        %1459 = vmatprep.subr.mxu0 0.0
        %1460 = vmatpush1.msra.mxu0 0.0
        %1461 = vmatprep.subr.mxu0 0.0
        %1462 = vmatpush1.msra.mxu0 0.0
        %1463 = vmatprep.subr.mxu0 0.0
        %1464 = vmatpush1.msra.mxu0 0.0
        %1465 = vmatprep.subr.mxu0 0.0
        %1466 = vmatpush1.msra.mxu0 0.0
        %1467 = vmatprep.subr.mxu0 0.0
        %1468 = vmatpush1.msra.mxu0 0.0
        %1469 = vmatprep.subr.mxu0 0.0
        %1470 = vmatpush1.msra.mxu0 0.0
        %1471 = vmatprep.subr.mxu0 0.0
        %1472 = vmatpush1.msra.mxu0 0.0
        %1473 = vmatprep.subr.mxu0 0.0
        %1474 = vmatpush1.msra.mxu0 0.0
        %1475 = vmatprep.subr.mxu0 0.0
        %1476 = vmatpush1.msra.mxu0 0.0
        %1477 = vmatprep.subr.mxu0 0.0
        %1478 = vmatpush1.msra.mxu0 0.0
        %1479 = vmatprep.mubr.f32.mxu0 0.0
        %1480 = vmatmul.mubr.f32.gmra.mrb[0].mxu0 %v1410
        %v1481 = vpop.f32.mrb[0].mxu0
        %v1482 = vadd.f32 %v1401, %v1481
        %v1483 = vpop.f32.mrb[0].mxu0
        %1484 = vmatprep.mubr.f32.mxu0 0.0
        %1485 = vmatmul.mubr.f32.gmra.mrb[0].mxu0 %v1413
        %v1486 = vpop.f32.mrb[0].mxu0
        %v1487 = vadd.f32 %v1406, %v1486
        %v1488 = vpop.f32.mrb[0].mxu0
        %1489 = vdwg.mxu0
        %1490 = vrot.lane.b32.xlu0 %v921, 96
        %v1491 = vpop.permute.xlu0 %1490
        %1492 = vrot.lane.b32.xlu0 %v922, 96
        %v1493 = vpop.permute.xlu0 %1492
        %1494 = vrot.lane.b32.xlu0 %v911, 32
        %v1495 = vpop.permute.xlu0 %1494
        %1496 = vrot.lane.b32.xlu0 %v917, 32
        %v1497 = vpop.permute.xlu0 %1496
        %v1498 = vsel %vm937, %v1491, 0
        %v1500 = vsel %vm937, %v1493, 0
        %v1502 = vsel %vm937, %v1495, 0
        %v1504 = vsel %vm937, %v1497, 0
        %1506 = vmatprep.subr.mxu0 0.0
        %1507 = vmatpush1.xpose.msra.mxu0 %v1502
        %1508 = vmatprep.subr.mxu0 0.0
        %1509 = vmatpush1.xpose.msra.mxu0 %v1504
        %1510 = vmatprep.subr.mxu0 0.0
        %1511 = vmatpush1.xpose.msra.mxu0 0.0
        %1512 = vmatprep.subr.mxu0 0.0
        %1513 = vmatpush1.xpose.msra.mxu0 0.0
        %1514 = vmatprep.subr.mxu0 0.0
        %1515 = vmatpush1.xpose.msra.mxu0 0.0
        %1516 = vmatprep.subr.mxu0 0.0
        %1517 = vmatpush1.xpose.msra.mxu0 0.0
        %1518 = vmatprep.subr.mxu0 0.0
        %1519 = vmatpush1.xpose.msra.mxu0 0.0
        %1520 = vmatprep.subr.mxu0 0.0
        %1521 = vmatpush1.xpose.msra.mxu0 0.0
        %1522 = vmatprep.subr.mxu0 0.0
        %1523 = vmatpush1.xpose.msra.mxu0 0.0
        %1524 = vmatprep.subr.mxu0 0.0
        %1525 = vmatpush1.xpose.msra.mxu0 0.0
        %1526 = vmatprep.subr.mxu0 0.0
        %1527 = vmatpush1.xpose.msra.mxu0 0.0
        %1528 = vmatprep.subr.mxu0 0.0
        %1529 = vmatpush1.xpose.msra.mxu0 0.0
        %1530 = vmatprep.subr.mxu0 0.0
        %1531 = vmatpush1.xpose.msra.mxu0 0.0
        %1532 = vmatprep.subr.mxu0 0.0
        %1533 = vmatpush1.xpose.msra.mxu0 0.0
        %1534 = vmatprep.subr.mxu0 0.0
        %1535 = vmatpush1.xpose.msra.mxu0 0.0
        %1536 = vmatprep.subr.mxu0 0.0
        %1537 = vmatpush1.xpose.msra.mxu0 0.0
        %1538 = vmatprep.subr.mxu0 0.0
        %1539 = vmatpush1.xpose.msra.mxu0 0.0
        %1540 = vmatprep.subr.mxu0 0.0
        %1541 = vmatpush1.xpose.msra.mxu0 0.0
        %1542 = vmatprep.subr.mxu0 0.0
        %1543 = vmatpush1.xpose.msra.mxu0 0.0
        %1544 = vmatprep.subr.mxu0 0.0
        %1545 = vmatpush1.xpose.msra.mxu0 0.0
        %1546 = vmatprep.subr.mxu0 0.0
        %1547 = vmatpush1.xpose.msra.mxu0 0.0
        %1548 = vmatprep.subr.mxu0 0.0
        %1549 = vmatpush1.xpose.msra.mxu0 0.0
        %1550 = vmatprep.subr.mxu0 0.0
        %1551 = vmatpush1.xpose.msra.mxu0 0.0
        %1552 = vmatprep.subr.mxu0 0.0
        %1553 = vmatpush1.xpose.msra.mxu0 0.0
        %1554 = vmatprep.subr.mxu0 0.0
        %1555 = vmatpush1.xpose.msra.mxu0 0.0
        %1556 = vmatprep.subr.mxu0 0.0
        %1557 = vmatpush1.xpose.msra.mxu0 0.0
        %1558 = vmatprep.subr.mxu0 0.0
        %1559 = vmatpush1.xpose.msra.mxu0 0.0
        %1560 = vmatprep.subr.mxu0 0.0
        %1561 = vmatpush1.xpose.msra.mxu0 0.0
        %1562 = vmatprep.subr.mxu0 0.0
        %1563 = vmatpush1.xpose.msra.mxu0 0.0
        %1564 = vmatprep.subr.mxu0 0.0
        %1565 = vmatpush1.xpose.msra.mxu0 0.0
        %1566 = vmatprep.subr.mxu0 0.0
        %1567 = vmatpush1.xpose.msra.mxu0 0.0
        %1568 = vmatprep.subr.mxu0 0.0
        %1569 = vmatpush1.xpose.msra.mxu0 0.0
        %1570 = vmatprep.mubr.f32.mxu0 0.0
        %1571 = vmatmul.mubr.f32.gmra.mrb[0].mxu0 %v1498
        %v1572 = vpop.f32.mrb[0].mxu0
        %v1573 = vadd.f32 %v808, %v1572
        %v1574 = vpop.f32.mrb[0].mxu0
        %1575 = vmatprep.mubr.f32.mxu0 0.0
        %1576 = vmatmul.mubr.f32.gmra.mrb[0].mxu0 %v1500
        %v1577 = vpop.f32.mrb[0].mxu0
        %v1578 = vadd.f32 %v809, %v1577
        %v1579 = vpop.f32.mrb[0].mxu0
        %1580 = vdwg.mxu0
        %v1581 = vsel %vm937, %v1573, -inf
        %1582 = vmax.xlane.f32.xlu0 %v1581
        %v1583 = vpop.xlane.xlu0 %1582
        %v1584 = vsel %vm937, %v1578, -inf
        %1585 = vmax.xlane.f32.xlu0 %v1584
        %v1586 = vpop.xlane.xlu0 %1585
        %v1587 = vsub.f32 %v1573, %v1583
        %v1588 = vsub.f32 %v1578, %v1586
        %v1589 = vmul.f32 %v1587, 1.442695
        %v1590 = vpow.pop %v1589
        %v1591 = vmul.f32 %v1588, 1.442695
        %v1592 = vpow.pop %v1591
        %v1593 = vsel %vm937, %v1590, 0.0
        %1594 = vadd.xlane.f32.xlu0 %v1593
        %v1595 = vpop.xlane.xlu0 %1594
        %v1596 = vsel %vm937, %v1592, 0.0
        %1597 = vadd.xlane.f32.xlu0 %v1596
        %v1598 = vpop.xlane.xlu0 %1597
        %v1599 = vrcp.pop %v1595
        %v1600 = vrcp.pop %v1598
        %v1601 = vmul.f32 %v1590, %v1599
        %v1602 = vmul.f32 %v1592, %v1600
        %1603 = vrot.lane.b32.xlu0 %v913, 96
        %v1604 = vpop.permute.xlu0 %1603
        %1605 = vrot.lane.b32.xlu0 %v919, 96
        %v1606 = vpop.permute.xlu0 %1605
        %v1610 = vsel %vm937, %v1601, 0
        %v1613 = vsel %vm937, %v1602, 0
        %1615 = vmatprep.subr.mxu0 0.0
        %1616 = vmatpush1.msra.mxu0 %v1604
        %1617 = vmatprep.subr.mxu0 0.0
        %1618 = vmatpush1.msra.mxu0 %v1606
        %1619 = vmatprep.subr.mxu0 0.0
        %1620 = vmatpush1.msra.mxu0 0.0
        %1621 = vmatprep.subr.mxu0 0.0
        %1622 = vmatpush1.msra.mxu0 0.0
        %1623 = vmatprep.subr.mxu0 0.0
        %1624 = vmatpush1.msra.mxu0 0.0
        %1625 = vmatprep.subr.mxu0 0.0
        %1626 = vmatpush1.msra.mxu0 0.0
        %1627 = vmatprep.subr.mxu0 0.0
        %1628 = vmatpush1.msra.mxu0 0.0
        %1629 = vmatprep.subr.mxu0 0.0
        %1630 = vmatpush1.msra.mxu0 0.0
        %1631 = vmatprep.subr.mxu0 0.0
        %1632 = vmatpush1.msra.mxu0 0.0
        %1633 = vmatprep.subr.mxu0 0.0
        %1634 = vmatpush1.msra.mxu0 0.0
        %1635 = vmatprep.subr.mxu0 0.0
        %1636 = vmatpush1.msra.mxu0 0.0
        %1637 = vmatprep.subr.mxu0 0.0
        %1638 = vmatpush1.msra.mxu0 0.0
        %1639 = vmatprep.subr.mxu0 0.0
        %1640 = vmatpush1.msra.mxu0 0.0
        %1641 = vmatprep.subr.mxu0 0.0
        %1642 = vmatpush1.msra.mxu0 0.0
        %1643 = vmatprep.subr.mxu0 0.0
        %1644 = vmatpush1.msra.mxu0 0.0
        %1645 = vmatprep.subr.mxu0 0.0
        %1646 = vmatpush1.msra.mxu0 0.0
        %1647 = vmatprep.subr.mxu0 0.0
        %1648 = vmatpush1.msra.mxu0 0.0
        %1649 = vmatprep.subr.mxu0 0.0
        %1650 = vmatpush1.msra.mxu0 0.0
        %1651 = vmatprep.subr.mxu0 0.0
        %1652 = vmatpush1.msra.mxu0 0.0
        %1653 = vmatprep.subr.mxu0 0.0
        %1654 = vmatpush1.msra.mxu0 0.0
        %1655 = vmatprep.subr.mxu0 0.0
        %1656 = vmatpush1.msra.mxu0 0.0
        %1657 = vmatprep.subr.mxu0 0.0
        %1658 = vmatpush1.msra.mxu0 0.0
        %1659 = vmatprep.subr.mxu0 0.0
        %1660 = vmatpush1.msra.mxu0 0.0
        %1661 = vmatprep.subr.mxu0 0.0
        %1662 = vmatpush1.msra.mxu0 0.0
        %1663 = vmatprep.subr.mxu0 0.0
        %1664 = vmatpush1.msra.mxu0 0.0
        %1665 = vmatprep.subr.mxu0 0.0
        %1666 = vmatpush1.msra.mxu0 0.0
        %1667 = vmatprep.subr.mxu0 0.0
        %1668 = vmatpush1.msra.mxu0 0.0
        %1669 = vmatprep.subr.mxu0 0.0
        %1670 = vmatpush1.msra.mxu0 0.0
        %1671 = vmatprep.subr.mxu0 0.0
        %1672 = vmatpush1.msra.mxu0 0.0
        %1673 = vmatprep.subr.mxu0 0.0
        %1674 = vmatpush1.msra.mxu0 0.0
        %1675 = vmatprep.subr.mxu0 0.0
        %1676 = vmatpush1.msra.mxu0 0.0
        %1677 = vmatprep.subr.mxu0 0.0
        %1678 = vmatpush1.msra.mxu0 0.0
        %1679 = vmatprep.mubr.f32.mxu0 0.0
        %1680 = vmatmul.mubr.f32.gmra.mrb[0].mxu0 %v1610
        %v1681 = vpop.f32.mrb[0].mxu0
        %v1682 = vadd.f32 0.0, %v1681
        %v1683 = vpop.f32.mrb[0].mxu0
        %1684 = vmatprep.mubr.f32.mxu0 0.0
        %1685 = vmatmul.mubr.f32.gmra.mrb[0].mxu0 %v1613
        %v1686 = vpop.f32.mrb[0].mxu0
        %v1687 = vadd.f32 0.0, %v1686
        %v1688 = vpop.f32.mrb[0].mxu0
        %1689 = vdwg.mxu0
        %v1691 = vsel %vm937, %v1682, 0
        %v1694 = vsel %vm937, %v1687, 0
        %1696 = vmatprep.subr.mxu0 0.0
        %1697 = vmatpush1.msra.mxu0 %v927
        %1698 = vmatprep.subr.mxu0 0.0
        %1699 = vmatpush1.msra.mxu0 %v928
        %1700 = vmatprep.subr.mxu0 0.0
        %1701 = vmatpush1.msra.mxu0 0.0
        %1702 = vmatprep.subr.mxu0 0.0
        %1703 = vmatpush1.msra.mxu0 0.0
        %1704 = vmatprep.subr.mxu0 0.0
        %1705 = vmatpush1.msra.mxu0 0.0
        %1706 = vmatprep.subr.mxu0 0.0
        %1707 = vmatpush1.msra.mxu0 0.0
        %1708 = vmatprep.subr.mxu0 0.0
        %1709 = vmatpush1.msra.mxu0 0.0
        %1710 = vmatprep.subr.mxu0 0.0
        %1711 = vmatpush1.msra.mxu0 0.0
        %1712 = vmatprep.subr.mxu0 0.0
        %1713 = vmatpush1.msra.mxu0 0.0
        %1714 = vmatprep.subr.mxu0 0.0
        %1715 = vmatpush1.msra.mxu0 0.0
        %1716 = vmatprep.subr.mxu0 0.0
        %1717 = vmatpush1.msra.mxu0 0.0
        %1718 = vmatprep.subr.mxu0 0.0
        %1719 = vmatpush1.msra.mxu0 0.0
        %1720 = vmatprep.subr.mxu0 0.0
        %1721 = vmatpush1.msra.mxu0 0.0
        %1722 = vmatprep.subr.mxu0 0.0
        %1723 = vmatpush1.msra.mxu0 0.0
        %1724 = vmatprep.subr.mxu0 0.0
        %1725 = vmatpush1.msra.mxu0 0.0
        %1726 = vmatprep.subr.mxu0 0.0
        %1727 = vmatpush1.msra.mxu0 0.0
        %1728 = vmatprep.subr.mxu0 0.0
        %1729 = vmatpush1.msra.mxu0 0.0
        %1730 = vmatprep.subr.mxu0 0.0
        %1731 = vmatpush1.msra.mxu0 0.0
        %1732 = vmatprep.subr.mxu0 0.0
        %1733 = vmatpush1.msra.mxu0 0.0
        %1734 = vmatprep.subr.mxu0 0.0
        %1735 = vmatpush1.msra.mxu0 0.0
        %1736 = vmatprep.subr.mxu0 0.0
        %1737 = vmatpush1.msra.mxu0 0.0
        %1738 = vmatprep.subr.mxu0 0.0
        %1739 = vmatpush1.msra.mxu0 0.0
        %1740 = vmatprep.subr.mxu0 0.0
        %1741 = vmatpush1.msra.mxu0 0.0
        %1742 = vmatprep.subr.mxu0 0.0
        %1743 = vmatpush1.msra.mxu0 0.0
        %1744 = vmatprep.subr.mxu0 0.0
        %1745 = vmatpush1.msra.mxu0 0.0
        %1746 = vmatprep.subr.mxu0 0.0
        %1747 = vmatpush1.msra.mxu0 0.0
        %1748 = vmatprep.subr.mxu0 0.0
        %1749 = vmatpush1.msra.mxu0 0.0
        %1750 = vmatprep.subr.mxu0 0.0
        %1751 = vmatpush1.msra.mxu0 0.0
        %1752 = vmatprep.subr.mxu0 0.0
        %1753 = vmatpush1.msra.mxu0 0.0
        %1754 = vmatprep.subr.mxu0 0.0
        %1755 = vmatpush1.msra.mxu0 0.0
        %1756 = vmatprep.subr.mxu0 0.0
        %1757 = vmatpush1.msra.mxu0 0.0
        %1758 = vmatprep.subr.mxu0 0.0
        %1759 = vmatpush1.msra.mxu0 0.0
        %1760 = vmatprep.mubr.f32.mxu0 0.0
        %1761 = vmatmul.mubr.f32.gmra.mrb[0].mxu0 %v1691
        %v1762 = vpop.f32.mrb[0].mxu0
        %v1763 = vadd.f32 0.0, %v1762
        %v1764 = vpop.f32.mrb[0].mxu0
        %1765 = vmatprep.mubr.f32.mxu0 0.0
        %1766 = vmatmul.mubr.f32.gmra.mrb[0].mxu0 %v1694
        %v1767 = vpop.f32.mrb[0].mxu0
        %v1768 = vadd.f32 0.0, %v1767
        %v1769 = vpop.f32.mrb[0].mxu0
        %1770 = vdwg.mxu0
        %v1771 = vadd.f32 %v1482, %v1763
        %v1772 = vadd.f32 %v1487, %v1768
        %1773 = vrot.lane.b32.xlu0 %v921, 80
        %v1774 = vpop.permute.xlu0 %1773
        %1775 = vrot.lane.b32.xlu0 %v922, 80
        %v1776 = vpop.permute.xlu0 %1775
        %1777 = vrot.lane.b32.xlu0 %v911, 16
        %v1778 = vpop.permute.xlu0 %1777
        %1779 = vrot.lane.b32.xlu0 %v917, 16
        %v1780 = vpop.permute.xlu0 %1779
        %v1781 = vsel %vm937, %v1774, 0
        %v1783 = vsel %vm937, %v1776, 0
        %v1785 = vsel %vm937, %v1778, 0
        %v1787 = vsel %vm937, %v1780, 0
        %1789 = vmatprep.subr.mxu0 0.0
        %1790 = vmatpush1.xpose.msra.mxu0 %v1785
        %1791 = vmatprep.subr.mxu0 0.0
        %1792 = vmatpush1.xpose.msra.mxu0 %v1787
        %1793 = vmatprep.subr.mxu0 0.0
        %1794 = vmatpush1.xpose.msra.mxu0 0.0
        %1795 = vmatprep.subr.mxu0 0.0
        %1796 = vmatpush1.xpose.msra.mxu0 0.0
        %1797 = vmatprep.subr.mxu0 0.0
        %1798 = vmatpush1.xpose.msra.mxu0 0.0
        %1799 = vmatprep.subr.mxu0 0.0
        %1800 = vmatpush1.xpose.msra.mxu0 0.0
        %1801 = vmatprep.subr.mxu0 0.0
        %1802 = vmatpush1.xpose.msra.mxu0 0.0
        %1803 = vmatprep.subr.mxu0 0.0
        %1804 = vmatpush1.xpose.msra.mxu0 0.0
        %1805 = vmatprep.subr.mxu0 0.0
        %1806 = vmatpush1.xpose.msra.mxu0 0.0
        %1807 = vmatprep.subr.mxu0 0.0
        %1808 = vmatpush1.xpose.msra.mxu0 0.0
        %1809 = vmatprep.subr.mxu0 0.0
        %1810 = vmatpush1.xpose.msra.mxu0 0.0
        %1811 = vmatprep.subr.mxu0 0.0
        %1812 = vmatpush1.xpose.msra.mxu0 0.0
        %1813 = vmatprep.subr.mxu0 0.0
        %1814 = vmatpush1.xpose.msra.mxu0 0.0
        %1815 = vmatprep.subr.mxu0 0.0
        %1816 = vmatpush1.xpose.msra.mxu0 0.0
        %1817 = vmatprep.subr.mxu0 0.0
        %1818 = vmatpush1.xpose.msra.mxu0 0.0
        %1819 = vmatprep.subr.mxu0 0.0
        %1820 = vmatpush1.xpose.msra.mxu0 0.0
        %1821 = vmatprep.subr.mxu0 0.0
        %1822 = vmatpush1.xpose.msra.mxu0 0.0
        %1823 = vmatprep.subr.mxu0 0.0
        %1824 = vmatpush1.xpose.msra.mxu0 0.0
        %1825 = vmatprep.subr.mxu0 0.0
        %1826 = vmatpush1.xpose.msra.mxu0 0.0
        %1827 = vmatprep.subr.mxu0 0.0
        %1828 = vmatpush1.xpose.msra.mxu0 0.0
        %1829 = vmatprep.subr.mxu0 0.0
        %1830 = vmatpush1.xpose.msra.mxu0 0.0
        %1831 = vmatprep.subr.mxu0 0.0
        %1832 = vmatpush1.xpose.msra.mxu0 0.0
        %1833 = vmatprep.subr.mxu0 0.0
        %1834 = vmatpush1.xpose.msra.mxu0 0.0
        %1835 = vmatprep.subr.mxu0 0.0
        %1836 = vmatpush1.xpose.msra.mxu0 0.0
        %1837 = vmatprep.subr.mxu0 0.0
        %1838 = vmatpush1.xpose.msra.mxu0 0.0
        %1839 = vmatprep.subr.mxu0 0.0
        %1840 = vmatpush1.xpose.msra.mxu0 0.0
        %1841 = vmatprep.subr.mxu0 0.0
        %1842 = vmatpush1.xpose.msra.mxu0 0.0
        %1843 = vmatprep.subr.mxu0 0.0
        %1844 = vmatpush1.xpose.msra.mxu0 0.0
        %1845 = vmatprep.subr.mxu0 0.0
        %1846 = vmatpush1.xpose.msra.mxu0 0.0
        %1847 = vmatprep.subr.mxu0 0.0
        %1848 = vmatpush1.xpose.msra.mxu0 0.0
        %1849 = vmatprep.subr.mxu0 0.0
        %1850 = vmatpush1.xpose.msra.mxu0 0.0
        %1851 = vmatprep.subr.mxu0 0.0
        %1852 = vmatpush1.xpose.msra.mxu0 0.0
        %1853 = vmatprep.mubr.f32.mxu0 0.0
        %1854 = vmatmul.mubr.f32.gmra.mrb[0].mxu0 %v1781
        %v1855 = vpop.f32.mrb[0].mxu0
        %v1856 = vadd.f32 %v808, %v1855
        %v1857 = vpop.f32.mrb[0].mxu0
        %1858 = vmatprep.mubr.f32.mxu0 0.0
        %1859 = vmatmul.mubr.f32.gmra.mrb[0].mxu0 %v1783
        %v1860 = vpop.f32.mrb[0].mxu0
        %v1861 = vadd.f32 %v809, %v1860
        %v1862 = vpop.f32.mrb[0].mxu0
        %1863 = vdwg.mxu0
        %v1864 = vsel %vm937, %v1856, -inf
        %1865 = vmax.xlane.f32.xlu0 %v1864
        %v1866 = vpop.xlane.xlu0 %1865
        %v1867 = vsel %vm937, %v1861, -inf
        %1868 = vmax.xlane.f32.xlu0 %v1867
        %v1869 = vpop.xlane.xlu0 %1868
        %v1870 = vsub.f32 %v1856, %v1866
        %v1871 = vsub.f32 %v1861, %v1869
        %v1872 = vmul.f32 %v1870, 1.442695
        %v1873 = vpow.pop %v1872
        %v1874 = vmul.f32 %v1871, 1.442695
        %v1875 = vpow.pop %v1874
        %v1876 = vsel %vm937, %v1873, 0.0
        %1877 = vadd.xlane.f32.xlu0 %v1876
        %v1878 = vpop.xlane.xlu0 %1877
        %v1879 = vsel %vm937, %v1875, 0.0
        %1880 = vadd.xlane.f32.xlu0 %v1879
        %v1881 = vpop.xlane.xlu0 %1880
        %v1882 = vrcp.pop %v1878
        %v1883 = vrcp.pop %v1881
        %v1884 = vmul.f32 %v1873, %v1882
        %v1885 = vmul.f32 %v1875, %v1883
        %1886 = vrot.lane.b32.xlu0 %v913, 80
        %v1887 = vpop.permute.xlu0 %1886
        %1888 = vrot.lane.b32.xlu0 %v919, 80
        %v1889 = vpop.permute.xlu0 %1888
        %v1893 = vsel %vm937, %v1884, 0
        %v1896 = vsel %vm937, %v1885, 0
        %1898 = vmatprep.subr.mxu0 0.0
        %1899 = vmatpush1.msra.mxu0 %v1887
        %1900 = vmatprep.subr.mxu0 0.0
        %1901 = vmatpush1.msra.mxu0 %v1889
        %1902 = vmatprep.subr.mxu0 0.0
        %1903 = vmatpush1.msra.mxu0 0.0
        %1904 = vmatprep.subr.mxu0 0.0
        %1905 = vmatpush1.msra.mxu0 0.0
        %1906 = vmatprep.subr.mxu0 0.0
        %1907 = vmatpush1.msra.mxu0 0.0
        %1908 = vmatprep.subr.mxu0 0.0
        %1909 = vmatpush1.msra.mxu0 0.0
        %1910 = vmatprep.subr.mxu0 0.0
        %1911 = vmatpush1.msra.mxu0 0.0
        %1912 = vmatprep.subr.mxu0 0.0
        %1913 = vmatpush1.msra.mxu0 0.0
        %1914 = vmatprep.subr.mxu0 0.0
        %1915 = vmatpush1.msra.mxu0 0.0
        %1916 = vmatprep.subr.mxu0 0.0
        %1917 = vmatpush1.msra.mxu0 0.0
        %1918 = vmatprep.subr.mxu0 0.0
        %1919 = vmatpush1.msra.mxu0 0.0
        %1920 = vmatprep.subr.mxu0 0.0
        %1921 = vmatpush1.msra.mxu0 0.0
        %1922 = vmatprep.subr.mxu0 0.0
        %1923 = vmatpush1.msra.mxu0 0.0
        %1924 = vmatprep.subr.mxu0 0.0
        %1925 = vmatpush1.msra.mxu0 0.0
        %1926 = vmatprep.subr.mxu0 0.0
        %1927 = vmatpush1.msra.mxu0 0.0
        %1928 = vmatprep.subr.mxu0 0.0
        %1929 = vmatpush1.msra.mxu0 0.0
        %1930 = vmatprep.subr.mxu0 0.0
        %1931 = vmatpush1.msra.mxu0 0.0
        %1932 = vmatprep.subr.mxu0 0.0
        %1933 = vmatpush1.msra.mxu0 0.0
        %1934 = vmatprep.subr.mxu0 0.0
        %1935 = vmatpush1.msra.mxu0 0.0
        %1936 = vmatprep.subr.mxu0 0.0
        %1937 = vmatpush1.msra.mxu0 0.0
        %1938 = vmatprep.subr.mxu0 0.0
        %1939 = vmatpush1.msra.mxu0 0.0
        %1940 = vmatprep.subr.mxu0 0.0
        %1941 = vmatpush1.msra.mxu0 0.0
        %1942 = vmatprep.subr.mxu0 0.0
        %1943 = vmatpush1.msra.mxu0 0.0
        %1944 = vmatprep.subr.mxu0 0.0
        %1945 = vmatpush1.msra.mxu0 0.0
        %1946 = vmatprep.subr.mxu0 0.0
        %1947 = vmatpush1.msra.mxu0 0.0
        %1948 = vmatprep.subr.mxu0 0.0
        %1949 = vmatpush1.msra.mxu0 0.0
        %1950 = vmatprep.subr.mxu0 0.0
        %1951 = vmatpush1.msra.mxu0 0.0
        %1952 = vmatprep.subr.mxu0 0.0
        %1953 = vmatpush1.msra.mxu0 0.0
        %1954 = vmatprep.subr.mxu0 0.0
        %1955 = vmatpush1.msra.mxu0 0.0
        %1956 = vmatprep.subr.mxu0 0.0
        %1957 = vmatpush1.msra.mxu0 0.0
        %1958 = vmatprep.subr.mxu0 0.0
        %1959 = vmatpush1.msra.mxu0 0.0
        %1960 = vmatprep.subr.mxu0 0.0
        %1961 = vmatpush1.msra.mxu0 0.0
        %1962 = vmatprep.mubr.f32.mxu0 0.0
        %1963 = vmatmul.mubr.f32.gmra.mrb[0].mxu0 %v1893
        %v1964 = vpop.f32.mrb[0].mxu0
        %v1965 = vadd.f32 0.0, %v1964
        %v1966 = vpop.f32.mrb[0].mxu0
        %1967 = vmatprep.mubr.f32.mxu0 0.0
        %1968 = vmatmul.mubr.f32.gmra.mrb[0].mxu0 %v1896
        %v1969 = vpop.f32.mrb[0].mxu0
        %v1970 = vadd.f32 0.0, %v1969
        %v1971 = vpop.f32.mrb[0].mxu0
        %1972 = vdwg.mxu0
        %v1974 = vsel %vm937, %v1965, 0
        %v1977 = vsel %vm937, %v1970, 0
        %1979 = vmatprep.subr.mxu0 0.0
        %1980 = vmatpush1.msra.mxu0 %v929
        %1981 = vmatprep.subr.mxu0 0.0
        %1982 = vmatpush1.msra.mxu0 %v930
        %1983 = vmatprep.subr.mxu0 0.0
        %1984 = vmatpush1.msra.mxu0 0.0
        %1985 = vmatprep.subr.mxu0 0.0
        %1986 = vmatpush1.msra.mxu0 0.0
        %1987 = vmatprep.subr.mxu0 0.0
        %1988 = vmatpush1.msra.mxu0 0.0
        %1989 = vmatprep.subr.mxu0 0.0
        %1990 = vmatpush1.msra.mxu0 0.0
        %1991 = vmatprep.subr.mxu0 0.0
        %1992 = vmatpush1.msra.mxu0 0.0
        %1993 = vmatprep.subr.mxu0 0.0
        %1994 = vmatpush1.msra.mxu0 0.0
        %1995 = vmatprep.subr.mxu0 0.0
        %1996 = vmatpush1.msra.mxu0 0.0
        %1997 = vmatprep.subr.mxu0 0.0
        %1998 = vmatpush1.msra.mxu0 0.0
        %1999 = vmatprep.subr.mxu0 0.0
        %2000 = vmatpush1.msra.mxu0 0.0
        %2001 = vmatprep.subr.mxu0 0.0
        %2002 = vmatpush1.msra.mxu0 0.0
        %2003 = vmatprep.subr.mxu0 0.0
        %2004 = vmatpush1.msra.mxu0 0.0
        %2005 = vmatprep.subr.mxu0 0.0
        %2006 = vmatpush1.msra.mxu0 0.0
        %2007 = vmatprep.subr.mxu0 0.0
        %2008 = vmatpush1.msra.mxu0 0.0
        %2009 = vmatprep.subr.mxu0 0.0
        %2010 = vmatpush1.msra.mxu0 0.0
        %2011 = vmatprep.subr.mxu0 0.0
        %2012 = vmatpush1.msra.mxu0 0.0
        %2013 = vmatprep.subr.mxu0 0.0
        %2014 = vmatpush1.msra.mxu0 0.0
        %2015 = vmatprep.subr.mxu0 0.0
        %2016 = vmatpush1.msra.mxu0 0.0
        %2017 = vmatprep.subr.mxu0 0.0
        %2018 = vmatpush1.msra.mxu0 0.0
        %2019 = vmatprep.subr.mxu0 0.0
        %2020 = vmatpush1.msra.mxu0 0.0
        %2021 = vmatprep.subr.mxu0 0.0
        %2022 = vmatpush1.msra.mxu0 0.0
        %2023 = vmatprep.subr.mxu0 0.0
        %2024 = vmatpush1.msra.mxu0 0.0
        %2025 = vmatprep.subr.mxu0 0.0
        %2026 = vmatpush1.msra.mxu0 0.0
        %2027 = vmatprep.subr.mxu0 0.0
        %2028 = vmatpush1.msra.mxu0 0.0
        %2029 = vmatprep.subr.mxu0 0.0
        %2030 = vmatpush1.msra.mxu0 0.0
        %2031 = vmatprep.subr.mxu0 0.0
        %2032 = vmatpush1.msra.mxu0 0.0
        %2033 = vmatprep.subr.mxu0 0.0
        %2034 = vmatpush1.msra.mxu0 0.0
        %2035 = vmatprep.subr.mxu0 0.0
        %2036 = vmatpush1.msra.mxu0 0.0
        %2037 = vmatprep.subr.mxu0 0.0
        %2038 = vmatpush1.msra.mxu0 0.0
        %2039 = vmatprep.subr.mxu0 0.0
        %2040 = vmatpush1.msra.mxu0 0.0
        %2041 = vmatprep.subr.mxu0 0.0
        %2042 = vmatpush1.msra.mxu0 0.0
        %2043 = vmatprep.mubr.f32.mxu0 0.0
        %2044 = vmatmul.mubr.f32.gmra.mrb[0].mxu0 %v1974
        %v2045 = vpop.f32.mrb[0].mxu0
        %v2046 = vadd.f32 0.0, %v2045
        %v2047 = vpop.f32.mrb[0].mxu0
        %2048 = vmatprep.mubr.f32.mxu0 0.0
        %2049 = vmatmul.mubr.f32.gmra.mrb[0].mxu0 %v1977
        %v2050 = vpop.f32.mrb[0].mxu0
        %v2051 = vadd.f32 0.0, %v2050
        %v2052 = vpop.f32.mrb[0].mxu0
        %2053 = vdwg.mxu0
        %v2054 = vadd.f32 %v1771, %v2046
        %v2055 = vadd.f32 %v1772, %v2051
        %v2056 = vld [vmem:[%s6] sm:$0x1]
        %v2058 = vlaneseq
        %v2059 = vshrl.u32 %v2058, 7
        %v2060 = vsub.s32 0, %v2059
        %v2061 = vrot.slane %v2056, %v2060
        %v2063 = vadd.f32 %v2054, %v2061
        %v2064 = vadd.f32 %v2055, %v2061
        %v2065 = vadd.f32 %v795, %v2063
        %v2066 = vadd.f32 %v800, %v2064
        %v2067 = vld [vmem:[%s7] sm:$0x1]
        %v2068 = vld [vmem:[%s8] sm:$0x1]
        %v2069 = vsel %vm646, %v2065, 0.0
        %2070 = vadd.xlane.f32.xlu0 %v2069
        %v2071 = vpop.xlane.xlu0 %2070
        %v2072 = vsel %vm646, %v2066, 0.0
        %2073 = vadd.xlane.f32.xlu0 %v2072
        %v2074 = vpop.xlane.xlu0 %2073
        %v2075 = vrcp.pop 64.0
        %v2076 = vmul.f32 %v2071, %v2075
        %v2077 = vmul.f32 %v2074, %v2075
        %v2078 = vsub.f32 %v2065, %v2076
        %v2079 = vsub.f32 %v2066, %v2077
        %v2080 = vmul.f32 %v2078, %v2078
        %v2081 = vmul.f32 %v2079, %v2079
        %v2082 = vsel %vm646, %v2080, 0.0
        %2083 = vadd.xlane.f32.xlu0 %v2082
        %v2084 = vpop.xlane.xlu0 %2083
        %v2085 = vsel %vm646, %v2081, 0.0
        %2086 = vadd.xlane.f32.xlu0 %v2085
        %v2087 = vpop.xlane.xlu0 %2086
        %v2088 = vmul.f32 %v2084, %v2075
        %v2089 = vmul.f32 %v2087, %v2075
        %v2090 = vadd.f32 %v2088, 1e-05
        %v2091 = vadd.f32 %v2089, 1e-05
        %v2092 = vrsqrt.pop %v2090
        %v2093 = vrsqrt.pop %v2091
        %v2094 = vmul.f32 %v2078, %v2092
        %v2095 = vmul.f32 %v2079, %v2093
        %v2097 = vlaneseq
        %v2098 = vshrl.u32 %v2097, 7
        %v2099 = vsub.s32 0, %v2098
        %v2100 = vrot.slane %v2067, %v2099
        %v2102 = vmul.f32 %v2094, %v2100
        %v2103 = vmul.f32 %v2095, %v2100
        %v2105 = vlaneseq
        %v2106 = vshrl.u32 %v2105, 7
        %v2107 = vsub.s32 0, %v2106
        %v2108 = vrot.slane %v2068, %v2107
        %v2110 = vadd.f32 %v2102, %v2108
        %v2111 = vadd.f32 %v2103, %v2108
        %v2112 = vld [vmem:[%s9] sm:$0xff]
        %v2113 = vld [vmem:[%s9 + $0x8] sm:$0xff]
        %v2114 = vld [vmem:[%s9 + $0x10] sm:$0xff]
        %v2115 = vld [vmem:[%s9 + $0x18] sm:$0xff]
        %v2116 = vld [vmem:[%s9 + $0x20] sm:$0xff]
        %v2117 = vld [vmem:[%s9 + $0x28] sm:$0xff]
        %v2118 = vld [vmem:[%s9 + $0x30] sm:$0xff]
        %v2119 = vld [vmem:[%s9 + $0x38] sm:$0xff]
        %v2120 = vld [vmem:[%s10] sm:$0x1]
        %v2122 = vlaneseq
        %v2123 = vshrl.u32 %v2122, 7
        %v2124 = vsub.s32 0, %v2123
        %v2125 = vrot.slane %v2120, %v2124
        %v2128 = vsel %vm646, %v2110, 0
        %v2131 = vsel %vm646, %v2111, 0
        %2133 = vmatprep.subr.mxu0 0.0
        %2134 = vmatpush1.msra.mxu0 %v2112
        %2135 = vmatprep.subr.mxu0 0.0
        %2136 = vmatpush1.msra.mxu0 %v2113
        %2137 = vmatprep.subr.mxu0 0.0
        %2138 = vmatpush1.msra.mxu0 %v2114
        %2139 = vmatprep.subr.mxu0 0.0
        %2140 = vmatpush1.msra.mxu0 %v2115
        %2141 = vmatprep.subr.mxu0 0.0
        %2142 = vmatpush1.msra.mxu0 %v2116
        %2143 = vmatprep.subr.mxu0 0.0
        %2144 = vmatpush1.msra.mxu0 %v2117
        %2145 = vmatprep.subr.mxu0 0.0
        %2146 = vmatpush1.msra.mxu0 %v2118
        %2147 = vmatprep.subr.mxu0 0.0
        %2148 = vmatpush1.msra.mxu0 %v2119
        %2149 = vmatprep.subr.mxu0 0.0
        %2150 = vmatpush1.msra.mxu0 0.0
        %2151 = vmatprep.subr.mxu0 0.0
        %2152 = vmatpush1.msra.mxu0 0.0
        %2153 = vmatprep.subr.mxu0 0.0
        %2154 = vmatpush1.msra.mxu0 0.0
        %2155 = vmatprep.subr.mxu0 0.0
        %2156 = vmatpush1.msra.mxu0 0.0
        %2157 = vmatprep.subr.mxu0 0.0
        %2158 = vmatpush1.msra.mxu0 0.0
        %2159 = vmatprep.subr.mxu0 0.0
        %2160 = vmatpush1.msra.mxu0 0.0
        %2161 = vmatprep.subr.mxu0 0.0
        %2162 = vmatpush1.msra.mxu0 0.0
        %2163 = vmatprep.subr.mxu0 0.0
        %2164 = vmatpush1.msra.mxu0 0.0
        %2165 = vmatprep.subr.mxu0 0.0
        %2166 = vmatpush1.msra.mxu0 0.0
        %2167 = vmatprep.subr.mxu0 0.0
        %2168 = vmatpush1.msra.mxu0 0.0
        %2169 = vmatprep.subr.mxu0 0.0
        %2170 = vmatpush1.msra.mxu0 0.0
        %2171 = vmatprep.subr.mxu0 0.0
        %2172 = vmatpush1.msra.mxu0 0.0
        %2173 = vmatprep.subr.mxu0 0.0
        %2174 = vmatpush1.msra.mxu0 0.0
        %2175 = vmatprep.subr.mxu0 0.0
        %2176 = vmatpush1.msra.mxu0 0.0
        %2177 = vmatprep.subr.mxu0 0.0
        %2178 = vmatpush1.msra.mxu0 0.0
        %2179 = vmatprep.subr.mxu0 0.0
        %2180 = vmatpush1.msra.mxu0 0.0
        %2181 = vmatprep.subr.mxu0 0.0
        %2182 = vmatpush1.msra.mxu0 0.0
        %2183 = vmatprep.subr.mxu0 0.0
        %2184 = vmatpush1.msra.mxu0 0.0
        %2185 = vmatprep.subr.mxu0 0.0
        %2186 = vmatpush1.msra.mxu0 0.0
        %2187 = vmatprep.subr.mxu0 0.0
        %2188 = vmatpush1.msra.mxu0 0.0
        %2189 = vmatprep.subr.mxu0 0.0
        %2190 = vmatpush1.msra.mxu0 0.0
        %2191 = vmatprep.subr.mxu0 0.0
        %2192 = vmatpush1.msra.mxu0 0.0
        %2193 = vmatprep.subr.mxu0 0.0
        %2194 = vmatpush1.msra.mxu0 0.0
        %2195 = vmatprep.subr.mxu0 0.0
        %2196 = vmatpush1.msra.mxu0 0.0
        %2197 = vmatprep.mubr.f32.mxu0 0.0
        %2198 = vmatmul.mubr.f32.gmra.mrb[0].mxu0 %v2128
        %v2199 = vpop.f32.mrb[0].mxu0
        %v2200 = vadd.f32 %v2125, %v2199
        %v2201 = vpop.f32.mrb[0].mxu0
        %2202 = vmatprep.mubr.f32.mxu0 0.0
        %2203 = vmatmul.mubr.f32.gmra.mrb[0].mxu0 %v2131
        %v2204 = vpop.f32.mrb[0].mxu0
        %v2205 = vadd.f32 %v2125, %v2204
        %v2206 = vpop.f32.mrb[0].mxu0
        %2207 = vdwg.mxu0
        %v2208 = vmax.f32 %v2200, 0.0
        %v2209 = vmax.f32 %v2205, 0.0
        %v2210 = vld [vmem:[%s11] sm:$0xff]
        %v2211 = vld [vmem:[%s11 + $0x8] sm:$0xff]
        %v2212 = vld [vmem:[%s11 + $0x10] sm:$0xff]
        %v2213 = vld [vmem:[%s11 + $0x18] sm:$0xff]
        %v2214 = vld [vmem:[%s11 + $0x20] sm:$0xff]
        %v2215 = vld [vmem:[%s11 + $0x28] sm:$0xff]
        %v2216 = vld [vmem:[%s11 + $0x30] sm:$0xff]
        %v2217 = vld [vmem:[%s11 + $0x38] sm:$0xff]
        %v2218 = vld [vmem:[%s11 + $0x40] sm:$0xff]
        %v2219 = vld [vmem:[%s11 + $0x48] sm:$0xff]
        %v2220 = vld [vmem:[%s11 + $0x50] sm:$0xff]
        %v2221 = vld [vmem:[%s11 + $0x58] sm:$0xff]
        %v2222 = vld [vmem:[%s11 + $0x60] sm:$0xff]
        %v2223 = vld [vmem:[%s11 + $0x68] sm:$0xff]
        %v2224 = vld [vmem:[%s11 + $0x70] sm:$0xff]
        %v2225 = vld [vmem:[%s11 + $0x78] sm:$0xff]
        %v2226 = vld [vmem:[%s12] sm:$0x1]
        %v2228 = vlaneseq
        %v2229 = vshrl.u32 %v2228, 7
        %v2230 = vsub.s32 0, %v2229
        %v2231 = vrot.slane %v2226, %v2230
        %2233 = vmatprep.subr.mxu0 0.0
        %2234 = vmatpush1.msra.mxu0 %v2210
        %2235 = vmatprep.subr.mxu0 0.0
        %2236 = vmatpush1.msra.mxu0 %v2211
        %2237 = vmatprep.subr.mxu0 0.0
        %2238 = vmatpush1.msra.mxu0 %v2212
        %2239 = vmatprep.subr.mxu0 0.0
        %2240 = vmatpush1.msra.mxu0 %v2213
        %2241 = vmatprep.subr.mxu0 0.0
        %2242 = vmatpush1.msra.mxu0 %v2214
        %2243 = vmatprep.subr.mxu0 0.0
        %2244 = vmatpush1.msra.mxu0 %v2215
        %2245 = vmatprep.subr.mxu0 0.0
        %2246 = vmatpush1.msra.mxu0 %v2216
        %2247 = vmatprep.subr.mxu0 0.0
        %2248 = vmatpush1.msra.mxu0 %v2217
        %2249 = vmatprep.subr.mxu0 0.0
        %2250 = vmatpush1.msra.mxu0 %v2218
        %2251 = vmatprep.subr.mxu0 0.0
        %2252 = vmatpush1.msra.mxu0 %v2219
        %2253 = vmatprep.subr.mxu0 0.0
        %2254 = vmatpush1.msra.mxu0 %v2220
        %2255 = vmatprep.subr.mxu0 0.0
        %2256 = vmatpush1.msra.mxu0 %v2221
        %2257 = vmatprep.subr.mxu0 0.0
        %2258 = vmatpush1.msra.mxu0 %v2222
        %2259 = vmatprep.subr.mxu0 0.0
        %2260 = vmatpush1.msra.mxu0 %v2223
        %2261 = vmatprep.subr.mxu0 0.0
        %2262 = vmatpush1.msra.mxu0 %v2224
        %2263 = vmatprep.subr.mxu0 0.0
        %2264 = vmatpush1.msra.mxu0 %v2225
        %2265 = vmatprep.subr.mxu0 0.0
        %2266 = vmatpush1.msra.mxu0 0.0
        %2267 = vmatprep.subr.mxu0 0.0
        %2268 = vmatpush1.msra.mxu0 0.0
        %2269 = vmatprep.subr.mxu0 0.0
        %2270 = vmatpush1.msra.mxu0 0.0
        %2271 = vmatprep.subr.mxu0 0.0
        %2272 = vmatpush1.msra.mxu0 0.0
        %2273 = vmatprep.subr.mxu0 0.0
        %2274 = vmatpush1.msra.mxu0 0.0
        %2275 = vmatprep.subr.mxu0 0.0
        %2276 = vmatpush1.msra.mxu0 0.0
        %2277 = vmatprep.subr.mxu0 0.0
        %2278 = vmatpush1.msra.mxu0 0.0
        %2279 = vmatprep.subr.mxu0 0.0
        %2280 = vmatpush1.msra.mxu0 0.0
        %2281 = vmatprep.subr.mxu0 0.0
        %2282 = vmatpush1.msra.mxu0 0.0
        %2283 = vmatprep.subr.mxu0 0.0
        %2284 = vmatpush1.msra.mxu0 0.0
        %2285 = vmatprep.subr.mxu0 0.0
        %2286 = vmatpush1.msra.mxu0 0.0
        %2287 = vmatprep.subr.mxu0 0.0
        %2288 = vmatpush1.msra.mxu0 0.0
        %2289 = vmatprep.subr.mxu0 0.0
        %2290 = vmatpush1.msra.mxu0 0.0
        %2291 = vmatprep.subr.mxu0 0.0
        %2292 = vmatpush1.msra.mxu0 0.0
        %2293 = vmatprep.subr.mxu0 0.0
        %2294 = vmatpush1.msra.mxu0 0.0
        %2295 = vmatprep.subr.mxu0 0.0
        %2296 = vmatpush1.msra.mxu0 0.0
        %2297 = vmatprep.mubr.f32.mxu0 0.0
        %2298 = vmatmul.mubr.f32.gmra.mrb[0].mxu0 %v2208
        %v2299 = vpop.f32.mrb[0].mxu0
        %v2300 = vadd.f32 %v2231, %v2299
        %v2301 = vpop.f32.mrb[0].mxu0
        %2302 = vmatprep.mubr.f32.mxu0 0.0
        %2303 = vmatmul.mubr.f32.gmra.mrb[0].mxu0 %v2209
        %v2304 = vpop.f32.mrb[0].mxu0
        %v2305 = vadd.f32 %v2231, %v2304
        %v2306 = vpop.f32.mrb[0].mxu0
        %2307 = vdwg.mxu0
        %v2308 = vadd.f32 %v2110, %v2300
        %v2309 = vadd.f32 %v2111, %v2305
        %v2310 = vld [vmem:[%s13] sm:$0x1]
        %v2311 = vld [vmem:[%s14] sm:$0x1]
        %v2312 = vsel %vm646, %v2308, 0.0
        %2313 = vadd.xlane.f32.xlu0 %v2312
        %v2314 = vpop.xlane.xlu0 %2313
        %v2315 = vsel %vm646, %v2309, 0.0
        %2316 = vadd.xlane.f32.xlu0 %v2315
        %v2317 = vpop.xlane.xlu0 %2316
        %v2318 = vmul.f32 %v2314, %v2075
        %v2319 = vmul.f32 %v2317, %v2075
        %v2320 = vsub.f32 %v2308, %v2318
        %v2321 = vsub.f32 %v2309, %v2319
        %v2322 = vmul.f32 %v2320, %v2320
        %v2323 = vmul.f32 %v2321, %v2321
        %v2324 = vsel %vm646, %v2322, 0.0
        %2325 = vadd.xlane.f32.xlu0 %v2324
        %v2326 = vpop.xlane.xlu0 %2325
        %v2327 = vsel %vm646, %v2323, 0.0
        %2328 = vadd.xlane.f32.xlu0 %v2327
        %v2329 = vpop.xlane.xlu0 %2328
        %v2330 = vmul.f32 %v2326, %v2075
        %v2331 = vmul.f32 %v2329, %v2075
        %v2332 = vadd.f32 %v2330, 1e-05
        %v2333 = vadd.f32 %v2331, 1e-05
        %v2334 = vrsqrt.pop %v2332
        %v2335 = vrsqrt.pop %v2333
        %v2336 = vmul.f32 %v2320, %v2334
        %v2337 = vmul.f32 %v2321, %v2335
        %v2339 = vlaneseq
        %v2340 = vshrl.u32 %v2339, 7
        %v2341 = vsub.s32 0, %v2340
        %v2342 = vrot.slane %v2310, %v2341
        %v2344 = vmul.f32 %v2336, %v2342
        %v2345 = vmul.f32 %v2337, %v2342
        %v2347 = vlaneseq
        %v2348 = vshrl.u32 %v2347, 7
        %v2349 = vsub.s32 0, %v2348
        %v2350 = vrot.slane %v2311, %v2349
        %v2352 = vadd.f32 %v2344, %v2350
        %v2353 = vadd.f32 %v2345, %v2350
        %s2354 = scalar_lea.vmem %s3, 128
        %v2355 = vld [vmem:[%s2354] sm:$0xff]
        %v2356 = vld [vmem:[%s2354 + $0x8] sm:$0xff]
        %v2357 = vld [vmem:[%s2354 + $0x10] sm:$0xff]
        %v2358 = vld [vmem:[%s2354 + $0x18] sm:$0xff]
        %v2359 = vld [vmem:[%s2354 + $0x20] sm:$0xff]
        %v2360 = vld [vmem:[%s2354 + $0x28] sm:$0xff]
        %v2361 = vld [vmem:[%s2354 + $0x30] sm:$0xff]
        %v2362 = vld [vmem:[%s2354 + $0x38] sm:$0xff]
        %v2363 = vld [vmem:[%s2354 + $0x40] sm:$0xff]
        %v2364 = vld [vmem:[%s2354 + $0x48] sm:$0xff]
        %v2365 = vld [vmem:[%s2354 + $0x50] sm:$0xff]
        %v2366 = vld [vmem:[%s2354 + $0x58] sm:$0xff]
        %v2367 = vld [vmem:[%s2354 + $0x60] sm:$0xff]
        %v2368 = vld [vmem:[%s2354 + $0x68] sm:$0xff]
        %v2369 = vld [vmem:[%s2354 + $0x70] sm:$0xff]
        %v2370 = vld [vmem:[%s2354 + $0x78] sm:$0xff]
        %s2371 = scalar_lea.vmem %s4, 2
        %v2372 = vld [vmem:[%s2371] sm:$0x3]
        %v2374 = vlaneseq
        %v2375 = vshrl.u32 %v2374, 7
        %v2376 = vsub.s32 0, %v2375
        %v2377 = vrot.slane %v2372, %v2376
        %v2378 = vlaneseq
        %v2379 = vshrl.u32 %v2378, 7
        %v2380 = vsub.s32 1, %v2379
        %v2381 = vrot.slane %v2372, %v2380
        %v2385 = vsel %vm646, %v2352, 0
        %v2388 = vsel %vm646, %v2353, 0
        %2390 = vmatprep.subr.mxu0 %v2356
        %2391 = vmatpush1.msra.mxu0 %v2355
        %2392 = vmatprep.subr.mxu0 %v2358
        %2393 = vmatpush1.msra.mxu0 %v2357
        %2394 = vmatprep.subr.mxu0 %v2360
        %2395 = vmatpush1.msra.mxu0 %v2359
        %2396 = vmatprep.subr.mxu0 %v2362
        %2397 = vmatpush1.msra.mxu0 %v2361
        %2398 = vmatprep.subr.mxu0 %v2364
        %2399 = vmatpush1.msra.mxu0 %v2363
        %2400 = vmatprep.subr.mxu0 %v2366
        %2401 = vmatpush1.msra.mxu0 %v2365
        %2402 = vmatprep.subr.mxu0 %v2368
        %2403 = vmatpush1.msra.mxu0 %v2367
        %2404 = vmatprep.subr.mxu0 %v2370
        %2405 = vmatpush1.msra.mxu0 %v2369
        %2406 = vmatprep.subr.mxu0 0.0
        %2407 = vmatpush1.msra.mxu0 0.0
        %2408 = vmatprep.subr.mxu0 0.0
        %2409 = vmatpush1.msra.mxu0 0.0
        %2410 = vmatprep.subr.mxu0 0.0
        %2411 = vmatpush1.msra.mxu0 0.0
        %2412 = vmatprep.subr.mxu0 0.0
        %2413 = vmatpush1.msra.mxu0 0.0
        %2414 = vmatprep.subr.mxu0 0.0
        %2415 = vmatpush1.msra.mxu0 0.0
        %2416 = vmatprep.subr.mxu0 0.0
        %2417 = vmatpush1.msra.mxu0 0.0
        %2418 = vmatprep.subr.mxu0 0.0
        %2419 = vmatpush1.msra.mxu0 0.0
        %2420 = vmatprep.subr.mxu0 0.0
        %2421 = vmatpush1.msra.mxu0 0.0
        %2422 = vmatprep.subr.mxu0 0.0
        %2423 = vmatpush1.msra.mxu0 0.0
        %2424 = vmatprep.subr.mxu0 0.0
        %2425 = vmatpush1.msra.mxu0 0.0
        %2426 = vmatprep.subr.mxu0 0.0
        %2427 = vmatpush1.msra.mxu0 0.0
        %2428 = vmatprep.subr.mxu0 0.0
        %2429 = vmatpush1.msra.mxu0 0.0
        %2430 = vmatprep.subr.mxu0 0.0
        %2431 = vmatpush1.msra.mxu0 0.0
        %2432 = vmatprep.subr.mxu0 0.0
        %2433 = vmatpush1.msra.mxu0 0.0
        %2434 = vmatprep.subr.mxu0 0.0
        %2435 = vmatpush1.msra.mxu0 0.0
        %2436 = vmatprep.subr.mxu0 0.0
        %2437 = vmatpush1.msra.mxu0 0.0
        %2438 = vmatprep.subr.mxu0 0.0
        %2439 = vmatpush1.msra.mxu0 0.0
        %2440 = vmatprep.subr.mxu0 0.0
        %2441 = vmatpush1.msra.mxu0 0.0
        %2442 = vmatprep.subr.mxu0 0.0
        %2443 = vmatpush1.msra.mxu0 0.0
        %2444 = vmatprep.subr.mxu0 0.0
        %2445 = vmatpush1.msra.mxu0 0.0
        %2446 = vmatprep.subr.mxu0 0.0
        %2447 = vmatpush1.msra.mxu0 0.0
        %2448 = vmatprep.subr.mxu0 0.0
        %2449 = vmatpush1.msra.mxu0 0.0
        %2450 = vmatprep.subr.mxu0 0.0
        %2451 = vmatpush1.msra.mxu0 0.0
        %2452 = vmatprep.subr.mxu0 0.0
        %2453 = vmatpush1.msra.mxu0 0.0
        %2454 = vmatprep.mubr.f32.mxu0 0.0
        %2455 = vmatmul.mubr.f32.gmra.mrb[0].mxu0 %v2385
        %v2456 = vpop.f32.mrb[0].mxu0
        %v2457 = vadd.f32 %v2377, %v2456
        %v2458 = vpop.f32.mrb[0].mxu0
        %v2459 = vadd.f32 %v2381, %v2458
        %2460 = vmatprep.mubr.f32.mxu0 0.0
        %2461 = vmatmul.mubr.f32.gmra.mrb[0].mxu0 %v2388
        %v2462 = vpop.f32.mrb[0].mxu0
        %v2463 = vadd.f32 %v2377, %v2462
        %v2464 = vpop.f32.mrb[0].mxu0
        %v2465 = vadd.f32 %v2381, %v2464
        %2466 = vdwg.mxu0
        %v2467 = vmul.f32 %v2457, 0.25
        %v2468 = vmul.f32 %v2463, 0.25
        %s2469 = scalar_lea.vmem %s5, 64
        %v2470 = vld [vmem:[%s2469] sm:$0xff]
        %v2471 = vld [vmem:[%s2469 + $0x8] sm:$0xff]
        %v2472 = vld [vmem:[%s2469 + $0x10] sm:$0xff]
        %v2473 = vld [vmem:[%s2469 + $0x18] sm:$0xff]
        %v2474 = vld [vmem:[%s2469 + $0x20] sm:$0xff]
        %v2475 = vld [vmem:[%s2469 + $0x28] sm:$0xff]
        %v2476 = vld [vmem:[%s2469 + $0x30] sm:$0xff]
        %v2477 = vld [vmem:[%s2469 + $0x38] sm:$0xff]
        %2480 = vrot.lane.b32.xlu0 %v2457, 64
        %v2481 = vpop.permute.xlu0 %2480
        %2482 = vrot.lane.b32.xlu0 %v2463, 64
        %v2483 = vpop.permute.xlu0 %2482
        %v2485 = vsel %vm937, %v2467, 0
        %v2488 = vsel %vm937, %v2468, 0
        %v2490 = vsel %vm937, %v2481, 0
        %v2492 = vsel %vm937, %v2483, 0
        %2494 = vmatprep.subr.mxu0 0.0
        %2495 = vmatpush1.xpose.msra.mxu0 %v2490
        %2496 = vmatprep.subr.mxu0 0.0
        %2497 = vmatpush1.xpose.msra.mxu0 %v2492
        %2498 = vmatprep.subr.mxu0 0.0
        %2499 = vmatpush1.xpose.msra.mxu0 0.0
        %2500 = vmatprep.subr.mxu0 0.0
        %2501 = vmatpush1.xpose.msra.mxu0 0.0
        %2502 = vmatprep.subr.mxu0 0.0
        %2503 = vmatpush1.xpose.msra.mxu0 0.0
        %2504 = vmatprep.subr.mxu0 0.0
        %2505 = vmatpush1.xpose.msra.mxu0 0.0
        %2506 = vmatprep.subr.mxu0 0.0
        %2507 = vmatpush1.xpose.msra.mxu0 0.0
        %2508 = vmatprep.subr.mxu0 0.0
        %2509 = vmatpush1.xpose.msra.mxu0 0.0
        %2510 = vmatprep.subr.mxu0 0.0
        %2511 = vmatpush1.xpose.msra.mxu0 0.0
        %2512 = vmatprep.subr.mxu0 0.0
        %2513 = vmatpush1.xpose.msra.mxu0 0.0
        %2514 = vmatprep.subr.mxu0 0.0
        %2515 = vmatpush1.xpose.msra.mxu0 0.0
        %2516 = vmatprep.subr.mxu0 0.0
        %2517 = vmatpush1.xpose.msra.mxu0 0.0
        %2518 = vmatprep.subr.mxu0 0.0
        %2519 = vmatpush1.xpose.msra.mxu0 0.0
        %2520 = vmatprep.subr.mxu0 0.0
        %2521 = vmatpush1.xpose.msra.mxu0 0.0
        %2522 = vmatprep.subr.mxu0 0.0
        %2523 = vmatpush1.xpose.msra.mxu0 0.0
        %2524 = vmatprep.subr.mxu0 0.0
        %2525 = vmatpush1.xpose.msra.mxu0 0.0
        %2526 = vmatprep.subr.mxu0 0.0
        %2527 = vmatpush1.xpose.msra.mxu0 0.0
        %2528 = vmatprep.subr.mxu0 0.0
        %2529 = vmatpush1.xpose.msra.mxu0 0.0
        %2530 = vmatprep.subr.mxu0 0.0
        %2531 = vmatpush1.xpose.msra.mxu0 0.0
        %2532 = vmatprep.subr.mxu0 0.0
        %2533 = vmatpush1.xpose.msra.mxu0 0.0
        %2534 = vmatprep.subr.mxu0 0.0
        %2535 = vmatpush1.xpose.msra.mxu0 0.0
        %2536 = vmatprep.subr.mxu0 0.0
        %2537 = vmatpush1.xpose.msra.mxu0 0.0
        %2538 = vmatprep.subr.mxu0 0.0
        %2539 = vmatpush1.xpose.msra.mxu0 0.0
        %2540 = vmatprep.subr.mxu0 0.0
        %2541 = vmatpush1.xpose.msra.mxu0 0.0
        %2542 = vmatprep.subr.mxu0 0.0
        %2543 = vmatpush1.xpose.msra.mxu0 0.0
        %2544 = vmatprep.subr.mxu0 0.0
        %2545 = vmatpush1.xpose.msra.mxu0 0.0
        %2546 = vmatprep.subr.mxu0 0.0
        %2547 = vmatpush1.xpose.msra.mxu0 0.0
        %2548 = vmatprep.subr.mxu0 0.0
        %2549 = vmatpush1.xpose.msra.mxu0 0.0
        %2550 = vmatprep.subr.mxu0 0.0
        %2551 = vmatpush1.xpose.msra.mxu0 0.0
        %2552 = vmatprep.subr.mxu0 0.0
        %2553 = vmatpush1.xpose.msra.mxu0 0.0
        %2554 = vmatprep.subr.mxu0 0.0
        %2555 = vmatpush1.xpose.msra.mxu0 0.0
        %2556 = vmatprep.subr.mxu0 0.0
        %2557 = vmatpush1.xpose.msra.mxu0 0.0
        %2558 = vmatprep.mubr.f32.mxu0 0.0
        %2559 = vmatmul.mubr.f32.gmra.mrb[0].mxu0 %v2485
        %v2560 = vpop.f32.mrb[0].mxu0
        %v2561 = vadd.f32 %v808, %v2560
        %v2562 = vpop.f32.mrb[0].mxu0
        %2563 = vmatprep.mubr.f32.mxu0 0.0
        %2564 = vmatmul.mubr.f32.gmra.mrb[0].mxu0 %v2488
        %v2565 = vpop.f32.mrb[0].mxu0
        %v2566 = vadd.f32 %v809, %v2565
        %v2567 = vpop.f32.mrb[0].mxu0
        %2568 = vdwg.mxu0
        %v2569 = vsel %vm937, %v2561, -inf
        %2570 = vmax.xlane.f32.xlu0 %v2569
        %v2571 = vpop.xlane.xlu0 %2570
        %v2572 = vsel %vm937, %v2566, -inf
        %2573 = vmax.xlane.f32.xlu0 %v2572
        %v2574 = vpop.xlane.xlu0 %2573
        %v2575 = vsub.f32 %v2561, %v2571
        %v2576 = vsub.f32 %v2566, %v2574
        %v2577 = vmul.f32 %v2575, 1.442695
        %v2578 = vpow.pop %v2577
        %v2579 = vmul.f32 %v2576, 1.442695
        %v2580 = vpow.pop %v2579
        %v2581 = vsel %vm937, %v2578, 0.0
        %2582 = vadd.xlane.f32.xlu0 %v2581
        %v2583 = vpop.xlane.xlu0 %2582
        %v2584 = vsel %vm937, %v2580, 0.0
        %2585 = vadd.xlane.f32.xlu0 %v2584
        %v2586 = vpop.xlane.xlu0 %2585
        %v2587 = vrcp.pop %v2583
        %v2588 = vrcp.pop %v2586
        %v2589 = vmul.f32 %v2578, %v2587
        %v2590 = vmul.f32 %v2580, %v2588
        %v2592 = vsel %vm937, %v2589, 0
        %v2595 = vsel %vm937, %v2590, 0
        %2597 = vmatprep.subr.mxu0 0.0
        %2598 = vmatpush1.msra.mxu0 %v2459
        %2599 = vmatprep.subr.mxu0 0.0
        %2600 = vmatpush1.msra.mxu0 %v2465
        %2601 = vmatprep.subr.mxu0 0.0
        %2602 = vmatpush1.msra.mxu0 0.0
        %2603 = vmatprep.subr.mxu0 0.0
        %2604 = vmatpush1.msra.mxu0 0.0
        %2605 = vmatprep.subr.mxu0 0.0
        %2606 = vmatpush1.msra.mxu0 0.0
        %2607 = vmatprep.subr.mxu0 0.0
        %2608 = vmatpush1.msra.mxu0 0.0
        %2609 = vmatprep.subr.mxu0 0.0
        %2610 = vmatpush1.msra.mxu0 0.0
        %2611 = vmatprep.subr.mxu0 0.0
        %2612 = vmatpush1.msra.mxu0 0.0
        %2613 = vmatprep.subr.mxu0 0.0
        %2614 = vmatpush1.msra.mxu0 0.0
        %2615 = vmatprep.subr.mxu0 0.0
        %2616 = vmatpush1.msra.mxu0 0.0
        %2617 = vmatprep.subr.mxu0 0.0
        %2618 = vmatpush1.msra.mxu0 0.0
        %2619 = vmatprep.subr.mxu0 0.0
        %2620 = vmatpush1.msra.mxu0 0.0
        %2621 = vmatprep.subr.mxu0 0.0
        %2622 = vmatpush1.msra.mxu0 0.0
        %2623 = vmatprep.subr.mxu0 0.0
        %2624 = vmatpush1.msra.mxu0 0.0
        %2625 = vmatprep.subr.mxu0 0.0
        %2626 = vmatpush1.msra.mxu0 0.0
        %2627 = vmatprep.subr.mxu0 0.0
        %2628 = vmatpush1.msra.mxu0 0.0
        %2629 = vmatprep.subr.mxu0 0.0
        %2630 = vmatpush1.msra.mxu0 0.0
        %2631 = vmatprep.subr.mxu0 0.0
        %2632 = vmatpush1.msra.mxu0 0.0
        %2633 = vmatprep.subr.mxu0 0.0
        %2634 = vmatpush1.msra.mxu0 0.0
        %2635 = vmatprep.subr.mxu0 0.0
        %2636 = vmatpush1.msra.mxu0 0.0
        %2637 = vmatprep.subr.mxu0 0.0
        %2638 = vmatpush1.msra.mxu0 0.0
        %2639 = vmatprep.subr.mxu0 0.0
        %2640 = vmatpush1.msra.mxu0 0.0
        %2641 = vmatprep.subr.mxu0 0.0
        %2642 = vmatpush1.msra.mxu0 0.0
        %2643 = vmatprep.subr.mxu0 0.0
        %2644 = vmatpush1.msra.mxu0 0.0
        %2645 = vmatprep.subr.mxu0 0.0
        %2646 = vmatpush1.msra.mxu0 0.0
        %2647 = vmatprep.subr.mxu0 0.0
        %2648 = vmatpush1.msra.mxu0 0.0
        %2649 = vmatprep.subr.mxu0 0.0
        %2650 = vmatpush1.msra.mxu0 0.0
        %2651 = vmatprep.subr.mxu0 0.0
        %2652 = vmatpush1.msra.mxu0 0.0
        %2653 = vmatprep.subr.mxu0 0.0
        %2654 = vmatpush1.msra.mxu0 0.0
        %2655 = vmatprep.subr.mxu0 0.0
        %2656 = vmatpush1.msra.mxu0 0.0
        %2657 = vmatprep.subr.mxu0 0.0
        %2658 = vmatpush1.msra.mxu0 0.0
        %2659 = vmatprep.subr.mxu0 0.0
        %2660 = vmatpush1.msra.mxu0 0.0
        %2661 = vmatprep.mubr.f32.mxu0 0.0
        %2662 = vmatmul.mubr.f32.gmra.mrb[0].mxu0 %v2592
        %v2663 = vpop.f32.mrb[0].mxu0
        %v2664 = vadd.f32 0.0, %v2663
        %v2665 = vpop.f32.mrb[0].mxu0
        %2666 = vmatprep.mubr.f32.mxu0 0.0
        %2667 = vmatmul.mubr.f32.gmra.mrb[0].mxu0 %v2595
        %v2668 = vpop.f32.mrb[0].mxu0
        %v2669 = vadd.f32 0.0, %v2668
        %v2670 = vpop.f32.mrb[0].mxu0
        %2671 = vdwg.mxu0
        %2672 = vrot.lane.b32.xlu0 %v2467, 112
        %v2673 = vpop.permute.xlu0 %2672
        %2674 = vrot.lane.b32.xlu0 %v2468, 112
        %v2675 = vpop.permute.xlu0 %2674
        %2676 = vrot.lane.b32.xlu0 %v2457, 48
        %v2677 = vpop.permute.xlu0 %2676
        %2678 = vrot.lane.b32.xlu0 %v2463, 48
        %v2679 = vpop.permute.xlu0 %2678
        %v2680 = vsel %vm937, %v2673, 0
        %v2682 = vsel %vm937, %v2675, 0
        %v2684 = vsel %vm937, %v2677, 0
        %v2686 = vsel %vm937, %v2679, 0
        %2688 = vmatprep.subr.mxu0 0.0
        %2689 = vmatpush1.xpose.msra.mxu0 %v2684
        %2690 = vmatprep.subr.mxu0 0.0
        %2691 = vmatpush1.xpose.msra.mxu0 %v2686
        %2692 = vmatprep.subr.mxu0 0.0
        %2693 = vmatpush1.xpose.msra.mxu0 0.0
        %2694 = vmatprep.subr.mxu0 0.0
        %2695 = vmatpush1.xpose.msra.mxu0 0.0
        %2696 = vmatprep.subr.mxu0 0.0
        %2697 = vmatpush1.xpose.msra.mxu0 0.0
        %2698 = vmatprep.subr.mxu0 0.0
        %2699 = vmatpush1.xpose.msra.mxu0 0.0
        %2700 = vmatprep.subr.mxu0 0.0
        %2701 = vmatpush1.xpose.msra.mxu0 0.0
        %2702 = vmatprep.subr.mxu0 0.0
        %2703 = vmatpush1.xpose.msra.mxu0 0.0
        %2704 = vmatprep.subr.mxu0 0.0
        %2705 = vmatpush1.xpose.msra.mxu0 0.0
        %2706 = vmatprep.subr.mxu0 0.0
        %2707 = vmatpush1.xpose.msra.mxu0 0.0
        %2708 = vmatprep.subr.mxu0 0.0
        %2709 = vmatpush1.xpose.msra.mxu0 0.0
        %2710 = vmatprep.subr.mxu0 0.0
        %2711 = vmatpush1.xpose.msra.mxu0 0.0
        %2712 = vmatprep.subr.mxu0 0.0
        %2713 = vmatpush1.xpose.msra.mxu0 0.0
        %2714 = vmatprep.subr.mxu0 0.0
        %2715 = vmatpush1.xpose.msra.mxu0 0.0
        %2716 = vmatprep.subr.mxu0 0.0
        %2717 = vmatpush1.xpose.msra.mxu0 0.0
        %2718 = vmatprep.subr.mxu0 0.0
        %2719 = vmatpush1.xpose.msra.mxu0 0.0
        %2720 = vmatprep.subr.mxu0 0.0
        %2721 = vmatpush1.xpose.msra.mxu0 0.0
        %2722 = vmatprep.subr.mxu0 0.0
        %2723 = vmatpush1.xpose.msra.mxu0 0.0
        %2724 = vmatprep.subr.mxu0 0.0
        %2725 = vmatpush1.xpose.msra.mxu0 0.0
        %2726 = vmatprep.subr.mxu0 0.0
        %2727 = vmatpush1.xpose.msra.mxu0 0.0
        %2728 = vmatprep.subr.mxu0 0.0
        %2729 = vmatpush1.xpose.msra.mxu0 0.0
        %2730 = vmatprep.subr.mxu0 0.0
        %2731 = vmatpush1.xpose.msra.mxu0 0.0
        %2732 = vmatprep.subr.mxu0 0.0
        %2733 = vmatpush1.xpose.msra.mxu0 0.0
        %2734 = vmatprep.subr.mxu0 0.0
        %2735 = vmatpush1.xpose.msra.mxu0 0.0
        %2736 = vmatprep.subr.mxu0 0.0
        %2737 = vmatpush1.xpose.msra.mxu0 0.0
        %2738 = vmatprep.subr.mxu0 0.0
        %2739 = vmatpush1.xpose.msra.mxu0 0.0
        %2740 = vmatprep.subr.mxu0 0.0
        %2741 = vmatpush1.xpose.msra.mxu0 0.0
        %2742 = vmatprep.subr.mxu0 0.0
        %2743 = vmatpush1.xpose.msra.mxu0 0.0
        %2744 = vmatprep.subr.mxu0 0.0
        %2745 = vmatpush1.xpose.msra.mxu0 0.0
        %2746 = vmatprep.subr.mxu0 0.0
        %2747 = vmatpush1.xpose.msra.mxu0 0.0
        %2748 = vmatprep.subr.mxu0 0.0
        %2749 = vmatpush1.xpose.msra.mxu0 0.0
        %2750 = vmatprep.subr.mxu0 0.0
        %2751 = vmatpush1.xpose.msra.mxu0 0.0
        %2752 = vmatprep.mubr.f32.mxu0 0.0
        %2753 = vmatmul.mubr.f32.gmra.mrb[0].mxu0 %v2680
        %v2754 = vpop.f32.mrb[0].mxu0
        %v2755 = vadd.f32 %v808, %v2754
        %v2756 = vpop.f32.mrb[0].mxu0
        %2757 = vmatprep.mubr.f32.mxu0 0.0
        %2758 = vmatmul.mubr.f32.gmra.mrb[0].mxu0 %v2682
        %v2759 = vpop.f32.mrb[0].mxu0
        %v2760 = vadd.f32 %v809, %v2759
        %v2761 = vpop.f32.mrb[0].mxu0
        %2762 = vdwg.mxu0
        %v2763 = vsel %vm937, %v2755, -inf
        %2764 = vmax.xlane.f32.xlu0 %v2763
        %v2765 = vpop.xlane.xlu0 %2764
        %v2766 = vsel %vm937, %v2760, -inf
        %2767 = vmax.xlane.f32.xlu0 %v2766
        %v2768 = vpop.xlane.xlu0 %2767
        %v2769 = vsub.f32 %v2755, %v2765
        %v2770 = vsub.f32 %v2760, %v2768
        %v2771 = vmul.f32 %v2769, 1.442695
        %v2772 = vpow.pop %v2771
        %v2773 = vmul.f32 %v2770, 1.442695
        %v2774 = vpow.pop %v2773
        %v2775 = vsel %vm937, %v2772, 0.0
        %2776 = vadd.xlane.f32.xlu0 %v2775
        %v2777 = vpop.xlane.xlu0 %2776
        %v2778 = vsel %vm937, %v2774, 0.0
        %2779 = vadd.xlane.f32.xlu0 %v2778
        %v2780 = vpop.xlane.xlu0 %2779
        %v2781 = vrcp.pop %v2777
        %v2782 = vrcp.pop %v2780
        %v2783 = vmul.f32 %v2772, %v2781
        %v2784 = vmul.f32 %v2774, %v2782
        %2787 = vrot.lane.b32.xlu0 %v2459, 112
        %v2788 = vpop.permute.xlu0 %2787
        %2789 = vrot.lane.b32.xlu0 %v2465, 112
        %v2790 = vpop.permute.xlu0 %2789
        %v2794 = vsel %vm937, %v2783, 0
        %v2797 = vsel %vm937, %v2784, 0
        %2799 = vmatprep.subr.mxu0 0.0
        %2800 = vmatpush1.msra.mxu0 %v2788
        %2801 = vmatprep.subr.mxu0 0.0
        %2802 = vmatpush1.msra.mxu0 %v2790
        %2803 = vmatprep.subr.mxu0 0.0
        %2804 = vmatpush1.msra.mxu0 0.0
        %2805 = vmatprep.subr.mxu0 0.0
        %2806 = vmatpush1.msra.mxu0 0.0
        %2807 = vmatprep.subr.mxu0 0.0
        %2808 = vmatpush1.msra.mxu0 0.0
        %2809 = vmatprep.subr.mxu0 0.0
        %2810 = vmatpush1.msra.mxu0 0.0
        %2811 = vmatprep.subr.mxu0 0.0
        %2812 = vmatpush1.msra.mxu0 0.0
        %2813 = vmatprep.subr.mxu0 0.0
        %2814 = vmatpush1.msra.mxu0 0.0
        %2815 = vmatprep.subr.mxu0 0.0
        %2816 = vmatpush1.msra.mxu0 0.0
        %2817 = vmatprep.subr.mxu0 0.0
        %2818 = vmatpush1.msra.mxu0 0.0
        %2819 = vmatprep.subr.mxu0 0.0
        %2820 = vmatpush1.msra.mxu0 0.0
        %2821 = vmatprep.subr.mxu0 0.0
        %2822 = vmatpush1.msra.mxu0 0.0
        %2823 = vmatprep.subr.mxu0 0.0
        %2824 = vmatpush1.msra.mxu0 0.0
        %2825 = vmatprep.subr.mxu0 0.0
        %2826 = vmatpush1.msra.mxu0 0.0
        %2827 = vmatprep.subr.mxu0 0.0
        %2828 = vmatpush1.msra.mxu0 0.0
        %2829 = vmatprep.subr.mxu0 0.0
        %2830 = vmatpush1.msra.mxu0 0.0
        %2831 = vmatprep.subr.mxu0 0.0
        %2832 = vmatpush1.msra.mxu0 0.0
        %2833 = vmatprep.subr.mxu0 0.0
        %2834 = vmatpush1.msra.mxu0 0.0
        %2835 = vmatprep.subr.mxu0 0.0
        %2836 = vmatpush1.msra.mxu0 0.0
        %2837 = vmatprep.subr.mxu0 0.0
        %2838 = vmatpush1.msra.mxu0 0.0
        %2839 = vmatprep.subr.mxu0 0.0
        %2840 = vmatpush1.msra.mxu0 0.0
        %2841 = vmatprep.subr.mxu0 0.0
        %2842 = vmatpush1.msra.mxu0 0.0
        %2843 = vmatprep.subr.mxu0 0.0
        %2844 = vmatpush1.msra.mxu0 0.0
        %2845 = vmatprep.subr.mxu0 0.0
        %2846 = vmatpush1.msra.mxu0 0.0
        %2847 = vmatprep.subr.mxu0 0.0
        %2848 = vmatpush1.msra.mxu0 0.0
        %2849 = vmatprep.subr.mxu0 0.0
        %2850 = vmatpush1.msra.mxu0 0.0
        %2851 = vmatprep.subr.mxu0 0.0
        %2852 = vmatpush1.msra.mxu0 0.0
        %2853 = vmatprep.subr.mxu0 0.0
        %2854 = vmatpush1.msra.mxu0 0.0
        %2855 = vmatprep.subr.mxu0 0.0
        %2856 = vmatpush1.msra.mxu0 0.0
        %2857 = vmatprep.subr.mxu0 0.0
        %2858 = vmatpush1.msra.mxu0 0.0
        %2859 = vmatprep.subr.mxu0 0.0
        %2860 = vmatpush1.msra.mxu0 0.0
        %2861 = vmatprep.subr.mxu0 0.0
        %2862 = vmatpush1.msra.mxu0 0.0
        %2863 = vmatprep.mubr.f32.mxu0 0.0
        %2864 = vmatmul.mubr.f32.gmra.mrb[0].mxu0 %v2794
        %v2865 = vpop.f32.mrb[0].mxu0
        %v2866 = vadd.f32 0.0, %v2865
        %v2867 = vpop.f32.mrb[0].mxu0
        %2868 = vmatprep.mubr.f32.mxu0 0.0
        %2869 = vmatmul.mubr.f32.gmra.mrb[0].mxu0 %v2797
        %v2870 = vpop.f32.mrb[0].mxu0
        %v2871 = vadd.f32 0.0, %v2870
        %v2872 = vpop.f32.mrb[0].mxu0
        %2873 = vdwg.mxu0
        %v2875 = vsel %vm937, %v2866, 0
        %v2878 = vsel %vm937, %v2871, 0
        %2880 = vmatprep.subr.mxu0 0.0
        %2881 = vmatpush1.msra.mxu0 %v2472
        %2882 = vmatprep.subr.mxu0 0.0
        %2883 = vmatpush1.msra.mxu0 %v2473
        %2884 = vmatprep.subr.mxu0 0.0
        %2885 = vmatpush1.msra.mxu0 0.0
        %2886 = vmatprep.subr.mxu0 0.0
        %2887 = vmatpush1.msra.mxu0 0.0
        %2888 = vmatprep.subr.mxu0 0.0
        %2889 = vmatpush1.msra.mxu0 0.0
        %2890 = vmatprep.subr.mxu0 0.0
        %2891 = vmatpush1.msra.mxu0 0.0
        %2892 = vmatprep.subr.mxu0 0.0
        %2893 = vmatpush1.msra.mxu0 0.0
        %2894 = vmatprep.subr.mxu0 0.0
        %2895 = vmatpush1.msra.mxu0 0.0
        %2896 = vmatprep.subr.mxu0 0.0
        %2897 = vmatpush1.msra.mxu0 0.0
        %2898 = vmatprep.subr.mxu0 0.0
        %2899 = vmatpush1.msra.mxu0 0.0
        %2900 = vmatprep.subr.mxu0 0.0
        %2901 = vmatpush1.msra.mxu0 0.0
        %2902 = vmatprep.subr.mxu0 0.0
        %2903 = vmatpush1.msra.mxu0 0.0
        %2904 = vmatprep.subr.mxu0 0.0
        %2905 = vmatpush1.msra.mxu0 0.0
        %2906 = vmatprep.subr.mxu0 0.0
        %2907 = vmatpush1.msra.mxu0 0.0
        %2908 = vmatprep.subr.mxu0 0.0
        %2909 = vmatpush1.msra.mxu0 0.0
        %2910 = vmatprep.subr.mxu0 0.0
        %2911 = vmatpush1.msra.mxu0 0.0
        %2912 = vmatprep.subr.mxu0 0.0
        %2913 = vmatpush1.msra.mxu0 0.0
        %2914 = vmatprep.subr.mxu0 0.0
        %2915 = vmatpush1.msra.mxu0 0.0
        %2916 = vmatprep.subr.mxu0 0.0
        %2917 = vmatpush1.msra.mxu0 0.0
        %2918 = vmatprep.subr.mxu0 0.0
        %2919 = vmatpush1.msra.mxu0 0.0
        %2920 = vmatprep.subr.mxu0 0.0
        %2921 = vmatpush1.msra.mxu0 0.0
        %2922 = vmatprep.subr.mxu0 0.0
        %2923 = vmatpush1.msra.mxu0 0.0
        %2924 = vmatprep.subr.mxu0 0.0
        %2925 = vmatpush1.msra.mxu0 0.0
        %2926 = vmatprep.subr.mxu0 0.0
        %2927 = vmatpush1.msra.mxu0 0.0
        %2928 = vmatprep.subr.mxu0 0.0
        %2929 = vmatpush1.msra.mxu0 0.0
        %2930 = vmatprep.subr.mxu0 0.0
        %2931 = vmatpush1.msra.mxu0 0.0
        %2932 = vmatprep.subr.mxu0 0.0
        %2933 = vmatpush1.msra.mxu0 0.0
        %2934 = vmatprep.subr.mxu0 0.0
        %2935 = vmatpush1.msra.mxu0 0.0
        %2936 = vmatprep.subr.mxu0 0.0
        %2937 = vmatpush1.msra.mxu0 0.0
        %2938 = vmatprep.subr.mxu0 0.0
        %2939 = vmatpush1.msra.mxu0 0.0
        %2940 = vmatprep.subr.mxu0 0.0
        %2941 = vmatpush1.msra.mxu0 0.0
        %2942 = vmatprep.subr.mxu0 0.0
        %2943 = vmatpush1.msra.mxu0 0.0
        %2944 = vmatprep.mubr.f32.mxu0 0.0
        %2945 = vmatmul.mubr.f32.gmra.mrb[0].mxu0 %v2875
        %v2946 = vpop.f32.mrb[0].mxu0
        %v2947 = vadd.f32 0.0, %v2946
        %v2948 = vpop.f32.mrb[0].mxu0
        %2949 = vmatprep.mubr.f32.mxu0 0.0
        %2950 = vmatmul.mubr.f32.gmra.mrb[0].mxu0 %v2878
        %v2951 = vpop.f32.mrb[0].mxu0
        %v2952 = vadd.f32 0.0, %v2951
        %v2953 = vpop.f32.mrb[0].mxu0
        %2954 = vdwg.mxu0
        %v2956 = vsel %vm937, %v2664, 0
        %v2959 = vsel %vm937, %v2669, 0
        %2961 = vmatprep.subr.mxu0 0.0
        %2962 = vmatpush1.msra.mxu0 %v2470
        %2963 = vmatprep.subr.mxu0 0.0
        %2964 = vmatpush1.msra.mxu0 %v2471
        %2965 = vmatprep.subr.mxu0 0.0
        %2966 = vmatpush1.msra.mxu0 0.0
        %2967 = vmatprep.subr.mxu0 0.0
        %2968 = vmatpush1.msra.mxu0 0.0
        %2969 = vmatprep.subr.mxu0 0.0
        %2970 = vmatpush1.msra.mxu0 0.0
        %2971 = vmatprep.subr.mxu0 0.0
        %2972 = vmatpush1.msra.mxu0 0.0
        %2973 = vmatprep.subr.mxu0 0.0
        %2974 = vmatpush1.msra.mxu0 0.0
        %2975 = vmatprep.subr.mxu0 0.0
        %2976 = vmatpush1.msra.mxu0 0.0
        %2977 = vmatprep.subr.mxu0 0.0
        %2978 = vmatpush1.msra.mxu0 0.0
        %2979 = vmatprep.subr.mxu0 0.0
        %2980 = vmatpush1.msra.mxu0 0.0
        %2981 = vmatprep.subr.mxu0 0.0
        %2982 = vmatpush1.msra.mxu0 0.0
        %2983 = vmatprep.subr.mxu0 0.0
        %2984 = vmatpush1.msra.mxu0 0.0
        %2985 = vmatprep.subr.mxu0 0.0
        %2986 = vmatpush1.msra.mxu0 0.0
        %2987 = vmatprep.subr.mxu0 0.0
        %2988 = vmatpush1.msra.mxu0 0.0
        %2989 = vmatprep.subr.mxu0 0.0
        %2990 = vmatpush1.msra.mxu0 0.0
        %2991 = vmatprep.subr.mxu0 0.0
        %2992 = vmatpush1.msra.mxu0 0.0
        %2993 = vmatprep.subr.mxu0 0.0
        %2994 = vmatpush1.msra.mxu0 0.0
        %2995 = vmatprep.subr.mxu0 0.0
        %2996 = vmatpush1.msra.mxu0 0.0
        %2997 = vmatprep.subr.mxu0 0.0
        %2998 = vmatpush1.msra.mxu0 0.0
        %2999 = vmatprep.subr.mxu0 0.0
        %3000 = vmatpush1.msra.mxu0 0.0
        %3001 = vmatprep.subr.mxu0 0.0
        %3002 = vmatpush1.msra.mxu0 0.0
        %3003 = vmatprep.subr.mxu0 0.0
        %3004 = vmatpush1.msra.mxu0 0.0
        %3005 = vmatprep.subr.mxu0 0.0
        %3006 = vmatpush1.msra.mxu0 0.0
        %3007 = vmatprep.subr.mxu0 0.0
        %3008 = vmatpush1.msra.mxu0 0.0
        %3009 = vmatprep.subr.mxu0 0.0
        %3010 = vmatpush1.msra.mxu0 0.0
        %3011 = vmatprep.subr.mxu0 0.0
        %3012 = vmatpush1.msra.mxu0 0.0
        %3013 = vmatprep.subr.mxu0 0.0
        %3014 = vmatpush1.msra.mxu0 0.0
        %3015 = vmatprep.subr.mxu0 0.0
        %3016 = vmatpush1.msra.mxu0 0.0
        %3017 = vmatprep.subr.mxu0 0.0
        %3018 = vmatpush1.msra.mxu0 0.0
        %3019 = vmatprep.subr.mxu0 0.0
        %3020 = vmatpush1.msra.mxu0 0.0
        %3021 = vmatprep.subr.mxu0 0.0
        %3022 = vmatpush1.msra.mxu0 0.0
        %3023 = vmatprep.subr.mxu0 0.0
        %3024 = vmatpush1.msra.mxu0 0.0
        %3025 = vmatprep.mubr.f32.mxu0 0.0
        %3026 = vmatmul.mubr.f32.gmra.mrb[0].mxu0 %v2956
        %v3027 = vpop.f32.mrb[0].mxu0
        %v3028 = vadd.f32 %v2947, %v3027
        %v3029 = vpop.f32.mrb[0].mxu0
        %3030 = vmatprep.mubr.f32.mxu0 0.0
        %3031 = vmatmul.mubr.f32.gmra.mrb[0].mxu0 %v2959
        %v3032 = vpop.f32.mrb[0].mxu0
        %v3033 = vadd.f32 %v2952, %v3032
        %v3034 = vpop.f32.mrb[0].mxu0
        %3035 = vdwg.mxu0
        %3036 = vrot.lane.b32.xlu0 %v2467, 96
        %v3037 = vpop.permute.xlu0 %3036
        %3038 = vrot.lane.b32.xlu0 %v2468, 96
        %v3039 = vpop.permute.xlu0 %3038
        %3040 = vrot.lane.b32.xlu0 %v2457, 32
        %v3041 = vpop.permute.xlu0 %3040
        %3042 = vrot.lane.b32.xlu0 %v2463, 32
        %v3043 = vpop.permute.xlu0 %3042
        %v3044 = vsel %vm937, %v3037, 0
        %v3046 = vsel %vm937, %v3039, 0
        %v3048 = vsel %vm937, %v3041, 0
        %v3050 = vsel %vm937, %v3043, 0
        %3052 = vmatprep.subr.mxu0 0.0
        %3053 = vmatpush1.xpose.msra.mxu0 %v3048
        %3054 = vmatprep.subr.mxu0 0.0
        %3055 = vmatpush1.xpose.msra.mxu0 %v3050
        %3056 = vmatprep.subr.mxu0 0.0
        %3057 = vmatpush1.xpose.msra.mxu0 0.0
        %3058 = vmatprep.subr.mxu0 0.0
        %3059 = vmatpush1.xpose.msra.mxu0 0.0
        %3060 = vmatprep.subr.mxu0 0.0
        %3061 = vmatpush1.xpose.msra.mxu0 0.0
        %3062 = vmatprep.subr.mxu0 0.0
        %3063 = vmatpush1.xpose.msra.mxu0 0.0
        %3064 = vmatprep.subr.mxu0 0.0
        %3065 = vmatpush1.xpose.msra.mxu0 0.0
        %3066 = vmatprep.subr.mxu0 0.0
        %3067 = vmatpush1.xpose.msra.mxu0 0.0
        %3068 = vmatprep.subr.mxu0 0.0
        %3069 = vmatpush1.xpose.msra.mxu0 0.0
        %3070 = vmatprep.subr.mxu0 0.0
        %3071 = vmatpush1.xpose.msra.mxu0 0.0
        %3072 = vmatprep.subr.mxu0 0.0
        %3073 = vmatpush1.xpose.msra.mxu0 0.0
        %3074 = vmatprep.subr.mxu0 0.0
        %3075 = vmatpush1.xpose.msra.mxu0 0.0
        %3076 = vmatprep.subr.mxu0 0.0
        %3077 = vmatpush1.xpose.msra.mxu0 0.0
        %3078 = vmatprep.subr.mxu0 0.0
        %3079 = vmatpush1.xpose.msra.mxu0 0.0
        %3080 = vmatprep.subr.mxu0 0.0
        %3081 = vmatpush1.xpose.msra.mxu0 0.0
        %3082 = vmatprep.subr.mxu0 0.0
        %3083 = vmatpush1.xpose.msra.mxu0 0.0
        %3084 = vmatprep.subr.mxu0 0.0
        %3085 = vmatpush1.xpose.msra.mxu0 0.0
        %3086 = vmatprep.subr.mxu0 0.0
        %3087 = vmatpush1.xpose.msra.mxu0 0.0
        %3088 = vmatprep.subr.mxu0 0.0
        %3089 = vmatpush1.xpose.msra.mxu0 0.0
        %3090 = vmatprep.subr.mxu0 0.0
        %3091 = vmatpush1.xpose.msra.mxu0 0.0
        %3092 = vmatprep.subr.mxu0 0.0
        %3093 = vmatpush1.xpose.msra.mxu0 0.0
        %3094 = vmatprep.subr.mxu0 0.0
        %3095 = vmatpush1.xpose.msra.mxu0 0.0
        %3096 = vmatprep.subr.mxu0 0.0
        %3097 = vmatpush1.xpose.msra.mxu0 0.0
        %3098 = vmatprep.subr.mxu0 0.0
        %3099 = vmatpush1.xpose.msra.mxu0 0.0
        %3100 = vmatprep.subr.mxu0 0.0
        %3101 = vmatpush1.xpose.msra.mxu0 0.0
        %3102 = vmatprep.subr.mxu0 0.0
        %3103 = vmatpush1.xpose.msra.mxu0 0.0
        %3104 = vmatprep.subr.mxu0 0.0
        %3105 = vmatpush1.xpose.msra.mxu0 0.0
        %3106 = vmatprep.subr.mxu0 0.0
        %3107 = vmatpush1.xpose.msra.mxu0 0.0
        %3108 = vmatprep.subr.mxu0 0.0
        %3109 = vmatpush1.xpose.msra.mxu0 0.0
        %3110 = vmatprep.subr.mxu0 0.0
        %3111 = vmatpush1.xpose.msra.mxu0 0.0
        %3112 = vmatprep.subr.mxu0 0.0
        %3113 = vmatpush1.xpose.msra.mxu0 0.0
        %3114 = vmatprep.subr.mxu0 0.0
        %3115 = vmatpush1.xpose.msra.mxu0 0.0
        %3116 = vmatprep.mubr.f32.mxu0 0.0
        %3117 = vmatmul.mubr.f32.gmra.mrb[0].mxu0 %v3044
        %v3118 = vpop.f32.mrb[0].mxu0
        %v3119 = vadd.f32 %v808, %v3118
        %v3120 = vpop.f32.mrb[0].mxu0
        %3121 = vmatprep.mubr.f32.mxu0 0.0
        %3122 = vmatmul.mubr.f32.gmra.mrb[0].mxu0 %v3046
        %v3123 = vpop.f32.mrb[0].mxu0
        %v3124 = vadd.f32 %v809, %v3123
        %v3125 = vpop.f32.mrb[0].mxu0
        %3126 = vdwg.mxu0
        %v3127 = vsel %vm937, %v3119, -inf
        %3128 = vmax.xlane.f32.xlu0 %v3127
        %v3129 = vpop.xlane.xlu0 %3128
        %v3130 = vsel %vm937, %v3124, -inf
        %3131 = vmax.xlane.f32.xlu0 %v3130
        %v3132 = vpop.xlane.xlu0 %3131
        %v3133 = vsub.f32 %v3119, %v3129
        %v3134 = vsub.f32 %v3124, %v3132
        %v3135 = vmul.f32 %v3133, 1.442695
        %v3136 = vpow.pop %v3135
        %v3137 = vmul.f32 %v3134, 1.442695
        %v3138 = vpow.pop %v3137
        %v3139 = vsel %vm937, %v3136, 0.0
        %3140 = vadd.xlane.f32.xlu0 %v3139
        %v3141 = vpop.xlane.xlu0 %3140
        %v3142 = vsel %vm937, %v3138, 0.0
        %3143 = vadd.xlane.f32.xlu0 %v3142
        %v3144 = vpop.xlane.xlu0 %3143
        %v3145 = vrcp.pop %v3141
        %v3146 = vrcp.pop %v3144
        %v3147 = vmul.f32 %v3136, %v3145
        %v3148 = vmul.f32 %v3138, %v3146
        %3149 = vrot.lane.b32.xlu0 %v2459, 96
        %v3150 = vpop.permute.xlu0 %3149
        %3151 = vrot.lane.b32.xlu0 %v2465, 96
        %v3152 = vpop.permute.xlu0 %3151
        %v3156 = vsel %vm937, %v3147, 0
        %v3159 = vsel %vm937, %v3148, 0
        %3161 = vmatprep.subr.mxu0 0.0
        %3162 = vmatpush1.msra.mxu0 %v3150
        %3163 = vmatprep.subr.mxu0 0.0
        %3164 = vmatpush1.msra.mxu0 %v3152
        %3165 = vmatprep.subr.mxu0 0.0
        %3166 = vmatpush1.msra.mxu0 0.0
        %3167 = vmatprep.subr.mxu0 0.0
        %3168 = vmatpush1.msra.mxu0 0.0
        %3169 = vmatprep.subr.mxu0 0.0
        %3170 = vmatpush1.msra.mxu0 0.0
        %3171 = vmatprep.subr.mxu0 0.0
        %3172 = vmatpush1.msra.mxu0 0.0
        %3173 = vmatprep.subr.mxu0 0.0
        %3174 = vmatpush1.msra.mxu0 0.0
        %3175 = vmatprep.subr.mxu0 0.0
        %3176 = vmatpush1.msra.mxu0 0.0
        %3177 = vmatprep.subr.mxu0 0.0
        %3178 = vmatpush1.msra.mxu0 0.0
        %3179 = vmatprep.subr.mxu0 0.0
        %3180 = vmatpush1.msra.mxu0 0.0
        %3181 = vmatprep.subr.mxu0 0.0
        %3182 = vmatpush1.msra.mxu0 0.0
        %3183 = vmatprep.subr.mxu0 0.0
        %3184 = vmatpush1.msra.mxu0 0.0
        %3185 = vmatprep.subr.mxu0 0.0
        %3186 = vmatpush1.msra.mxu0 0.0
        %3187 = vmatprep.subr.mxu0 0.0
        %3188 = vmatpush1.msra.mxu0 0.0
        %3189 = vmatprep.subr.mxu0 0.0
        %3190 = vmatpush1.msra.mxu0 0.0
        %3191 = vmatprep.subr.mxu0 0.0
        %3192 = vmatpush1.msra.mxu0 0.0
        %3193 = vmatprep.subr.mxu0 0.0
        %3194 = vmatpush1.msra.mxu0 0.0
        %3195 = vmatprep.subr.mxu0 0.0
        %3196 = vmatpush1.msra.mxu0 0.0
        %3197 = vmatprep.subr.mxu0 0.0
        %3198 = vmatpush1.msra.mxu0 0.0
        %3199 = vmatprep.subr.mxu0 0.0
        %3200 = vmatpush1.msra.mxu0 0.0
        %3201 = vmatprep.subr.mxu0 0.0
        %3202 = vmatpush1.msra.mxu0 0.0
        %3203 = vmatprep.subr.mxu0 0.0
        %3204 = vmatpush1.msra.mxu0 0.0
        %3205 = vmatprep.subr.mxu0 0.0
        %3206 = vmatpush1.msra.mxu0 0.0
        %3207 = vmatprep.subr.mxu0 0.0
        %3208 = vmatpush1.msra.mxu0 0.0
        %3209 = vmatprep.subr.mxu0 0.0
        %3210 = vmatpush1.msra.mxu0 0.0
        %3211 = vmatprep.subr.mxu0 0.0
        %3212 = vmatpush1.msra.mxu0 0.0
        %3213 = vmatprep.subr.mxu0 0.0
        %3214 = vmatpush1.msra.mxu0 0.0
        %3215 = vmatprep.subr.mxu0 0.0
        %3216 = vmatpush1.msra.mxu0 0.0
        %3217 = vmatprep.subr.mxu0 0.0
        %3218 = vmatpush1.msra.mxu0 0.0
        %3219 = vmatprep.subr.mxu0 0.0
        %3220 = vmatpush1.msra.mxu0 0.0
        %3221 = vmatprep.subr.mxu0 0.0
        %3222 = vmatpush1.msra.mxu0 0.0
        %3223 = vmatprep.subr.mxu0 0.0
        %3224 = vmatpush1.msra.mxu0 0.0
        %3225 = vmatprep.mubr.f32.mxu0 0.0
        %3226 = vmatmul.mubr.f32.gmra.mrb[0].mxu0 %v3156
        %v3227 = vpop.f32.mrb[0].mxu0
        %v3228 = vadd.f32 0.0, %v3227
        %v3229 = vpop.f32.mrb[0].mxu0
        %3230 = vmatprep.mubr.f32.mxu0 0.0
        %3231 = vmatmul.mubr.f32.gmra.mrb[0].mxu0 %v3159
        %v3232 = vpop.f32.mrb[0].mxu0
        %v3233 = vadd.f32 0.0, %v3232
        %v3234 = vpop.f32.mrb[0].mxu0
        %3235 = vdwg.mxu0
        %v3237 = vsel %vm937, %v3228, 0
        %v3240 = vsel %vm937, %v3233, 0
        %3242 = vmatprep.subr.mxu0 0.0
        %3243 = vmatpush1.msra.mxu0 %v2474
        %3244 = vmatprep.subr.mxu0 0.0
        %3245 = vmatpush1.msra.mxu0 %v2475
        %3246 = vmatprep.subr.mxu0 0.0
        %3247 = vmatpush1.msra.mxu0 0.0
        %3248 = vmatprep.subr.mxu0 0.0
        %3249 = vmatpush1.msra.mxu0 0.0
        %3250 = vmatprep.subr.mxu0 0.0
        %3251 = vmatpush1.msra.mxu0 0.0
        %3252 = vmatprep.subr.mxu0 0.0
        %3253 = vmatpush1.msra.mxu0 0.0
        %3254 = vmatprep.subr.mxu0 0.0
        %3255 = vmatpush1.msra.mxu0 0.0
        %3256 = vmatprep.subr.mxu0 0.0
        %3257 = vmatpush1.msra.mxu0 0.0
        %3258 = vmatprep.subr.mxu0 0.0
        %3259 = vmatpush1.msra.mxu0 0.0
        %3260 = vmatprep.subr.mxu0 0.0
        %3261 = vmatpush1.msra.mxu0 0.0
        %3262 = vmatprep.subr.mxu0 0.0
        %3263 = vmatpush1.msra.mxu0 0.0
        %3264 = vmatprep.subr.mxu0 0.0
        %3265 = vmatpush1.msra.mxu0 0.0
        %3266 = vmatprep.subr.mxu0 0.0
        %3267 = vmatpush1.msra.mxu0 0.0
        %3268 = vmatprep.subr.mxu0 0.0
        %3269 = vmatpush1.msra.mxu0 0.0
        %3270 = vmatprep.subr.mxu0 0.0
        %3271 = vmatpush1.msra.mxu0 0.0
        %3272 = vmatprep.subr.mxu0 0.0
        %3273 = vmatpush1.msra.mxu0 0.0
        %3274 = vmatprep.subr.mxu0 0.0
        %3275 = vmatpush1.msra.mxu0 0.0
        %3276 = vmatprep.subr.mxu0 0.0
        %3277 = vmatpush1.msra.mxu0 0.0
        %3278 = vmatprep.subr.mxu0 0.0
        %3279 = vmatpush1.msra.mxu0 0.0
        %3280 = vmatprep.subr.mxu0 0.0
        %3281 = vmatpush1.msra.mxu0 0.0
        %3282 = vmatprep.subr.mxu0 0.0
        %3283 = vmatpush1.msra.mxu0 0.0
        %3284 = vmatprep.subr.mxu0 0.0
        %3285 = vmatpush1.msra.mxu0 0.0
        %3286 = vmatprep.subr.mxu0 0.0
        %3287 = vmatpush1.msra.mxu0 0.0
        %3288 = vmatprep.subr.mxu0 0.0
        %3289 = vmatpush1.msra.mxu0 0.0
        %3290 = vmatprep.subr.mxu0 0.0
        %3291 = vmatpush1.msra.mxu0 0.0
        %3292 = vmatprep.subr.mxu0 0.0
        %3293 = vmatpush1.msra.mxu0 0.0
        %3294 = vmatprep.subr.mxu0 0.0
        %3295 = vmatpush1.msra.mxu0 0.0
        %3296 = vmatprep.subr.mxu0 0.0
        %3297 = vmatpush1.msra.mxu0 0.0
        %3298 = vmatprep.subr.mxu0 0.0
        %3299 = vmatpush1.msra.mxu0 0.0
        %3300 = vmatprep.subr.mxu0 0.0
        %3301 = vmatpush1.msra.mxu0 0.0
        %3302 = vmatprep.subr.mxu0 0.0
        %3303 = vmatpush1.msra.mxu0 0.0
        %3304 = vmatprep.subr.mxu0 0.0
        %3305 = vmatpush1.msra.mxu0 0.0
        %3306 = vmatprep.mubr.f32.mxu0 0.0
        %3307 = vmatmul.mubr.f32.gmra.mrb[0].mxu0 %v3237
        %v3308 = vpop.f32.mrb[0].mxu0
        %v3309 = vadd.f32 0.0, %v3308
        %v3310 = vpop.f32.mrb[0].mxu0
        %3311 = vmatprep.mubr.f32.mxu0 0.0
        %3312 = vmatmul.mubr.f32.gmra.mrb[0].mxu0 %v3240
        %v3313 = vpop.f32.mrb[0].mxu0
        %v3314 = vadd.f32 0.0, %v3313
        %v3315 = vpop.f32.mrb[0].mxu0
        %3316 = vdwg.mxu0
        %v3317 = vadd.f32 %v3028, %v3309
        %v3318 = vadd.f32 %v3033, %v3314
        %3319 = vrot.lane.b32.xlu0 %v2467, 80
        %v3320 = vpop.permute.xlu0 %3319
        %3321 = vrot.lane.b32.xlu0 %v2468, 80
        %v3322 = vpop.permute.xlu0 %3321
        %3323 = vrot.lane.b32.xlu0 %v2457, 16
        %v3324 = vpop.permute.xlu0 %3323
        %3325 = vrot.lane.b32.xlu0 %v2463, 16
        %v3326 = vpop.permute.xlu0 %3325
        %v3327 = vsel %vm937, %v3320, 0
        %v3329 = vsel %vm937, %v3322, 0
        %v3331 = vsel %vm937, %v3324, 0
        %v3333 = vsel %vm937, %v3326, 0
        %3335 = vmatprep.subr.mxu0 0.0
        %3336 = vmatpush1.xpose.msra.mxu0 %v3331
        %3337 = vmatprep.subr.mxu0 0.0
        %3338 = vmatpush1.xpose.msra.mxu0 %v3333
        %3339 = vmatprep.subr.mxu0 0.0
        %3340 = vmatpush1.xpose.msra.mxu0 0.0
        %3341 = vmatprep.subr.mxu0 0.0
        %3342 = vmatpush1.xpose.msra.mxu0 0.0
        %3343 = vmatprep.subr.mxu0 0.0
        %3344 = vmatpush1.xpose.msra.mxu0 0.0
        %3345 = vmatprep.subr.mxu0 0.0
        %3346 = vmatpush1.xpose.msra.mxu0 0.0
        %3347 = vmatprep.subr.mxu0 0.0
        %3348 = vmatpush1.xpose.msra.mxu0 0.0
        %3349 = vmatprep.subr.mxu0 0.0
        %3350 = vmatpush1.xpose.msra.mxu0 0.0
        %3351 = vmatprep.subr.mxu0 0.0
        %3352 = vmatpush1.xpose.msra.mxu0 0.0
        %3353 = vmatprep.subr.mxu0 0.0
        %3354 = vmatpush1.xpose.msra.mxu0 0.0
        %3355 = vmatprep.subr.mxu0 0.0
        %3356 = vmatpush1.xpose.msra.mxu0 0.0
        %3357 = vmatprep.subr.mxu0 0.0
        %3358 = vmatpush1.xpose.msra.mxu0 0.0
        %3359 = vmatprep.subr.mxu0 0.0
        %3360 = vmatpush1.xpose.msra.mxu0 0.0
        %3361 = vmatprep.subr.mxu0 0.0
        %3362 = vmatpush1.xpose.msra.mxu0 0.0
        %3363 = vmatprep.subr.mxu0 0.0
        %3364 = vmatpush1.xpose.msra.mxu0 0.0
        %3365 = vmatprep.subr.mxu0 0.0
        %3366 = vmatpush1.xpose.msra.mxu0 0.0
        %3367 = vmatprep.subr.mxu0 0.0
        %3368 = vmatpush1.xpose.msra.mxu0 0.0
        %3369 = vmatprep.subr.mxu0 0.0
        %3370 = vmatpush1.xpose.msra.mxu0 0.0
        %3371 = vmatprep.subr.mxu0 0.0
        %3372 = vmatpush1.xpose.msra.mxu0 0.0
        %3373 = vmatprep.subr.mxu0 0.0
        %3374 = vmatpush1.xpose.msra.mxu0 0.0
        %3375 = vmatprep.subr.mxu0 0.0
        %3376 = vmatpush1.xpose.msra.mxu0 0.0
        %3377 = vmatprep.subr.mxu0 0.0
        %3378 = vmatpush1.xpose.msra.mxu0 0.0
        %3379 = vmatprep.subr.mxu0 0.0
        %3380 = vmatpush1.xpose.msra.mxu0 0.0
        %3381 = vmatprep.subr.mxu0 0.0
        %3382 = vmatpush1.xpose.msra.mxu0 0.0
        %3383 = vmatprep.subr.mxu0 0.0
        %3384 = vmatpush1.xpose.msra.mxu0 0.0
        %3385 = vmatprep.subr.mxu0 0.0
        %3386 = vmatpush1.xpose.msra.mxu0 0.0
        %3387 = vmatprep.subr.mxu0 0.0
        %3388 = vmatpush1.xpose.msra.mxu0 0.0
        %3389 = vmatprep.subr.mxu0 0.0
        %3390 = vmatpush1.xpose.msra.mxu0 0.0
        %3391 = vmatprep.subr.mxu0 0.0
        %3392 = vmatpush1.xpose.msra.mxu0 0.0
        %3393 = vmatprep.subr.mxu0 0.0
        %3394 = vmatpush1.xpose.msra.mxu0 0.0
        %3395 = vmatprep.subr.mxu0 0.0
        %3396 = vmatpush1.xpose.msra.mxu0 0.0
        %3397 = vmatprep.subr.mxu0 0.0
        %3398 = vmatpush1.xpose.msra.mxu0 0.0
        %3399 = vmatprep.mubr.f32.mxu0 0.0
        %3400 = vmatmul.mubr.f32.gmra.mrb[0].mxu0 %v3327
        %v3401 = vpop.f32.mrb[0].mxu0
        %v3402 = vadd.f32 %v808, %v3401
        %v3403 = vpop.f32.mrb[0].mxu0
        %3404 = vmatprep.mubr.f32.mxu0 0.0
        %3405 = vmatmul.mubr.f32.gmra.mrb[0].mxu0 %v3329
        %v3406 = vpop.f32.mrb[0].mxu0
        %v3407 = vadd.f32 %v809, %v3406
        %v3408 = vpop.f32.mrb[0].mxu0
        %3409 = vdwg.mxu0
        %v3410 = vsel %vm937, %v3402, -inf
        %3411 = vmax.xlane.f32.xlu0 %v3410
        %v3412 = vpop.xlane.xlu0 %3411
        %v3413 = vsel %vm937, %v3407, -inf
        %3414 = vmax.xlane.f32.xlu0 %v3413
        %v3415 = vpop.xlane.xlu0 %3414
        %v3416 = vsub.f32 %v3402, %v3412
        %v3417 = vsub.f32 %v3407, %v3415
        %v3418 = vmul.f32 %v3416, 1.442695
        %v3419 = vpow.pop %v3418
        %v3420 = vmul.f32 %v3417, 1.442695
        %v3421 = vpow.pop %v3420
        %v3422 = vsel %vm937, %v3419, 0.0
        %3423 = vadd.xlane.f32.xlu0 %v3422
        %v3424 = vpop.xlane.xlu0 %3423
        %v3425 = vsel %vm937, %v3421, 0.0
        %3426 = vadd.xlane.f32.xlu0 %v3425
        %v3427 = vpop.xlane.xlu0 %3426
        %v3428 = vrcp.pop %v3424
        %v3429 = vrcp.pop %v3427
        %v3430 = vmul.f32 %v3419, %v3428
        %v3431 = vmul.f32 %v3421, %v3429
        %3432 = vrot.lane.b32.xlu0 %v2459, 80
        %v3433 = vpop.permute.xlu0 %3432
        %3434 = vrot.lane.b32.xlu0 %v2465, 80
        %v3435 = vpop.permute.xlu0 %3434
        %v3439 = vsel %vm937, %v3430, 0
        %v3442 = vsel %vm937, %v3431, 0
        %3444 = vmatprep.subr.mxu0 0.0
        %3445 = vmatpush1.msra.mxu0 %v3433
        %3446 = vmatprep.subr.mxu0 0.0
        %3447 = vmatpush1.msra.mxu0 %v3435
        %3448 = vmatprep.subr.mxu0 0.0
        %3449 = vmatpush1.msra.mxu0 0.0
        %3450 = vmatprep.subr.mxu0 0.0
        %3451 = vmatpush1.msra.mxu0 0.0
        %3452 = vmatprep.subr.mxu0 0.0
        %3453 = vmatpush1.msra.mxu0 0.0
        %3454 = vmatprep.subr.mxu0 0.0
        %3455 = vmatpush1.msra.mxu0 0.0
        %3456 = vmatprep.subr.mxu0 0.0
        %3457 = vmatpush1.msra.mxu0 0.0
        %3458 = vmatprep.subr.mxu0 0.0
        %3459 = vmatpush1.msra.mxu0 0.0
        %3460 = vmatprep.subr.mxu0 0.0
        %3461 = vmatpush1.msra.mxu0 0.0
        %3462 = vmatprep.subr.mxu0 0.0
        %3463 = vmatpush1.msra.mxu0 0.0
        %3464 = vmatprep.subr.mxu0 0.0
        %3465 = vmatpush1.msra.mxu0 0.0
        %3466 = vmatprep.subr.mxu0 0.0
        %3467 = vmatpush1.msra.mxu0 0.0
        %3468 = vmatprep.subr.mxu0 0.0
        %3469 = vmatpush1.msra.mxu0 0.0
        %3470 = vmatprep.subr.mxu0 0.0
        %3471 = vmatpush1.msra.mxu0 0.0
        %3472 = vmatprep.subr.mxu0 0.0
        %3473 = vmatpush1.msra.mxu0 0.0
        %3474 = vmatprep.subr.mxu0 0.0
        %3475 = vmatpush1.msra.mxu0 0.0
        %3476 = vmatprep.subr.mxu0 0.0
        %3477 = vmatpush1.msra.mxu0 0.0
        %3478 = vmatprep.subr.mxu0 0.0
        %3479 = vmatpush1.msra.mxu0 0.0
        %3480 = vmatprep.subr.mxu0 0.0
        %3481 = vmatpush1.msra.mxu0 0.0
        %3482 = vmatprep.subr.mxu0 0.0
        %3483 = vmatpush1.msra.mxu0 0.0
        %3484 = vmatprep.subr.mxu0 0.0
        %3485 = vmatpush1.msra.mxu0 0.0
        %3486 = vmatprep.subr.mxu0 0.0
        %3487 = vmatpush1.msra.mxu0 0.0
        %3488 = vmatprep.subr.mxu0 0.0
        %3489 = vmatpush1.msra.mxu0 0.0
        %3490 = vmatprep.subr.mxu0 0.0
        %3491 = vmatpush1.msra.mxu0 0.0
        %3492 = vmatprep.subr.mxu0 0.0
        %3493 = vmatpush1.msra.mxu0 0.0
        %3494 = vmatprep.subr.mxu0 0.0
        %3495 = vmatpush1.msra.mxu0 0.0
        %3496 = vmatprep.subr.mxu0 0.0
        %3497 = vmatpush1.msra.mxu0 0.0
        %3498 = vmatprep.subr.mxu0 0.0
        %3499 = vmatpush1.msra.mxu0 0.0
        %3500 = vmatprep.subr.mxu0 0.0
        %3501 = vmatpush1.msra.mxu0 0.0
        %3502 = vmatprep.subr.mxu0 0.0
        %3503 = vmatpush1.msra.mxu0 0.0
        %3504 = vmatprep.subr.mxu0 0.0
        %3505 = vmatpush1.msra.mxu0 0.0
        %3506 = vmatprep.subr.mxu0 0.0
        %3507 = vmatpush1.msra.mxu0 0.0
        %3508 = vmatprep.mubr.f32.mxu0 0.0
        %3509 = vmatmul.mubr.f32.gmra.mrb[0].mxu0 %v3439
        %v3510 = vpop.f32.mrb[0].mxu0
        %v3511 = vadd.f32 0.0, %v3510
        %v3512 = vpop.f32.mrb[0].mxu0
        %3513 = vmatprep.mubr.f32.mxu0 0.0
        %3514 = vmatmul.mubr.f32.gmra.mrb[0].mxu0 %v3442
        %v3515 = vpop.f32.mrb[0].mxu0
        %v3516 = vadd.f32 0.0, %v3515
        %v3517 = vpop.f32.mrb[0].mxu0
        %3518 = vdwg.mxu0
        %v3520 = vsel %vm937, %v3511, 0
        %v3523 = vsel %vm937, %v3516, 0
        %3525 = vmatprep.subr.mxu0 0.0
        %3526 = vmatpush1.msra.mxu0 %v2476
        %3527 = vmatprep.subr.mxu0 0.0
        %3528 = vmatpush1.msra.mxu0 %v2477
        %3529 = vmatprep.subr.mxu0 0.0
        %3530 = vmatpush1.msra.mxu0 0.0
        %3531 = vmatprep.subr.mxu0 0.0
        %3532 = vmatpush1.msra.mxu0 0.0
        %3533 = vmatprep.subr.mxu0 0.0
        %3534 = vmatpush1.msra.mxu0 0.0
        %3535 = vmatprep.subr.mxu0 0.0
        %3536 = vmatpush1.msra.mxu0 0.0
        %3537 = vmatprep.subr.mxu0 0.0
        %3538 = vmatpush1.msra.mxu0 0.0
        %3539 = vmatprep.subr.mxu0 0.0
        %3540 = vmatpush1.msra.mxu0 0.0
        %3541 = vmatprep.subr.mxu0 0.0
        %3542 = vmatpush1.msra.mxu0 0.0
        %3543 = vmatprep.subr.mxu0 0.0
        %3544 = vmatpush1.msra.mxu0 0.0
        %3545 = vmatprep.subr.mxu0 0.0
        %3546 = vmatpush1.msra.mxu0 0.0
        %3547 = vmatprep.subr.mxu0 0.0
        %3548 = vmatpush1.msra.mxu0 0.0
        %3549 = vmatprep.subr.mxu0 0.0
        %3550 = vmatpush1.msra.mxu0 0.0
        %3551 = vmatprep.subr.mxu0 0.0
        %3552 = vmatpush1.msra.mxu0 0.0
        %3553 = vmatprep.subr.mxu0 0.0
        %3554 = vmatpush1.msra.mxu0 0.0
        %3555 = vmatprep.subr.mxu0 0.0
        %3556 = vmatpush1.msra.mxu0 0.0
        %3557 = vmatprep.subr.mxu0 0.0
        %3558 = vmatpush1.msra.mxu0 0.0
        %3559 = vmatprep.subr.mxu0 0.0
        %3560 = vmatpush1.msra.mxu0 0.0
        %3561 = vmatprep.subr.mxu0 0.0
        %3562 = vmatpush1.msra.mxu0 0.0
        %3563 = vmatprep.subr.mxu0 0.0
        %3564 = vmatpush1.msra.mxu0 0.0
        %3565 = vmatprep.subr.mxu0 0.0
        %3566 = vmatpush1.msra.mxu0 0.0
        %3567 = vmatprep.subr.mxu0 0.0
        %3568 = vmatpush1.msra.mxu0 0.0
        %3569 = vmatprep.subr.mxu0 0.0
        %3570 = vmatpush1.msra.mxu0 0.0
        %3571 = vmatprep.subr.mxu0 0.0
        %3572 = vmatpush1.msra.mxu0 0.0
        %3573 = vmatprep.subr.mxu0 0.0
        %3574 = vmatpush1.msra.mxu0 0.0
        %3575 = vmatprep.subr.mxu0 0.0
        %3576 = vmatpush1.msra.mxu0 0.0
        %3577 = vmatprep.subr.mxu0 0.0
        %3578 = vmatpush1.msra.mxu0 0.0
        %3579 = vmatprep.subr.mxu0 0.0
        %3580 = vmatpush1.msra.mxu0 0.0
        %3581 = vmatprep.subr.mxu0 0.0
        %3582 = vmatpush1.msra.mxu0 0.0
        %3583 = vmatprep.subr.mxu0 0.0
        %3584 = vmatpush1.msra.mxu0 0.0
        %3585 = vmatprep.subr.mxu0 0.0
        %3586 = vmatpush1.msra.mxu0 0.0
        %3587 = vmatprep.subr.mxu0 0.0
        %3588 = vmatpush1.msra.mxu0 0.0
        %3589 = vmatprep.mubr.f32.mxu0 0.0
        %3590 = vmatmul.mubr.f32.gmra.mrb[0].mxu0 %v3520
        %v3591 = vpop.f32.mrb[0].mxu0
        %v3592 = vadd.f32 0.0, %v3591
        %v3593 = vpop.f32.mrb[0].mxu0
        %3594 = vmatprep.mubr.f32.mxu0 0.0
        %3595 = vmatmul.mubr.f32.gmra.mrb[0].mxu0 %v3523
        %v3596 = vpop.f32.mrb[0].mxu0
        %v3597 = vadd.f32 0.0, %v3596
        %v3598 = vpop.f32.mrb[0].mxu0
        %3599 = vdwg.mxu0
        %v3600 = vadd.f32 %v3317, %v3592
        %v3601 = vadd.f32 %v3318, %v3597
        %s3602 = scalar_lea.vmem %s6, 1
        %v3603 = vld [vmem:[%s3602] sm:$0x1]
        %v3605 = vlaneseq
        %v3606 = vshrl.u32 %v3605, 7
        %v3607 = vsub.s32 0, %v3606
        %v3608 = vrot.slane %v3603, %v3607
        %v3610 = vadd.f32 %v3600, %v3608
        %v3611 = vadd.f32 %v3601, %v3608
        %v3612 = vadd.f32 %v2352, %v3610
        %v3613 = vadd.f32 %v2353, %v3611
        %s3614 = scalar_lea.vmem %s7, 1
        %v3615 = vld [vmem:[%s3614] sm:$0x1]
        %s3616 = scalar_lea.vmem %s8, 1
        %v3617 = vld [vmem:[%s3616] sm:$0x1]
        %v3618 = vsel %vm646, %v3612, 0.0
        %3619 = vadd.xlane.f32.xlu0 %v3618
        %v3620 = vpop.xlane.xlu0 %3619
        %v3621 = vsel %vm646, %v3613, 0.0
        %3622 = vadd.xlane.f32.xlu0 %v3621
        %v3623 = vpop.xlane.xlu0 %3622
        %v3624 = vmul.f32 %v3620, %v2075
        %v3625 = vmul.f32 %v3623, %v2075
        %v3626 = vsub.f32 %v3612, %v3624
        %v3627 = vsub.f32 %v3613, %v3625
        %v3628 = vmul.f32 %v3626, %v3626
        %v3629 = vmul.f32 %v3627, %v3627
        %v3630 = vsel %vm646, %v3628, 0.0
        %3631 = vadd.xlane.f32.xlu0 %v3630
        %v3632 = vpop.xlane.xlu0 %3631
        %v3633 = vsel %vm646, %v3629, 0.0
        %3634 = vadd.xlane.f32.xlu0 %v3633
        %v3635 = vpop.xlane.xlu0 %3634
        %v3636 = vmul.f32 %v3632, %v2075
        %v3637 = vmul.f32 %v3635, %v2075
        %v3638 = vadd.f32 %v3636, 1e-05
        %v3639 = vadd.f32 %v3637, 1e-05
        %v3640 = vrsqrt.pop %v3638
        %v3641 = vrsqrt.pop %v3639
        %v3642 = vmul.f32 %v3626, %v3640
        %v3643 = vmul.f32 %v3627, %v3641
        %v3645 = vlaneseq
        %v3646 = vshrl.u32 %v3645, 7
        %v3647 = vsub.s32 0, %v3646
        %v3648 = vrot.slane %v3615, %v3647
        %v3650 = vmul.f32 %v3642, %v3648
        %v3651 = vmul.f32 %v3643, %v3648
        %v3653 = vlaneseq
        %v3654 = vshrl.u32 %v3653, 7
        %v3655 = vsub.s32 0, %v3654
        %v3656 = vrot.slane %v3617, %v3655
        %v3658 = vadd.f32 %v3650, %v3656
        %v3659 = vadd.f32 %v3651, %v3656
        %s3660 = scalar_lea.vmem %s9, 64
        %v3661 = vld [vmem:[%s3660] sm:$0xff]
        %v3662 = vld [vmem:[%s3660 + $0x8] sm:$0xff]
        %v3663 = vld [vmem:[%s3660 + $0x10] sm:$0xff]
        %v3664 = vld [vmem:[%s3660 + $0x18] sm:$0xff]
        %v3665 = vld [vmem:[%s3660 + $0x20] sm:$0xff]
        %v3666 = vld [vmem:[%s3660 + $0x28] sm:$0xff]
        %v3667 = vld [vmem:[%s3660 + $0x30] sm:$0xff]
        %v3668 = vld [vmem:[%s3660 + $0x38] sm:$0xff]
        %s3669 = scalar_lea.vmem %s10, 1
        %v3670 = vld [vmem:[%s3669] sm:$0x1]
        %v3672 = vlaneseq
        %v3673 = vshrl.u32 %v3672, 7
        %v3674 = vsub.s32 0, %v3673
        %v3675 = vrot.slane %v3670, %v3674
        %v3678 = vsel %vm646, %v3658, 0
        %v3681 = vsel %vm646, %v3659, 0
        %3683 = vmatprep.subr.mxu0 0.0
        %3684 = vmatpush1.msra.mxu0 %v3661
        %3685 = vmatprep.subr.mxu0 0.0
        %3686 = vmatpush1.msra.mxu0 %v3662
        %3687 = vmatprep.subr.mxu0 0.0
        %3688 = vmatpush1.msra.mxu0 %v3663
        %3689 = vmatprep.subr.mxu0 0.0
        %3690 = vmatpush1.msra.mxu0 %v3664
        %3691 = vmatprep.subr.mxu0 0.0
        %3692 = vmatpush1.msra.mxu0 %v3665
        %3693 = vmatprep.subr.mxu0 0.0
        %3694 = vmatpush1.msra.mxu0 %v3666
        %3695 = vmatprep.subr.mxu0 0.0
        %3696 = vmatpush1.msra.mxu0 %v3667
        %3697 = vmatprep.subr.mxu0 0.0
        %3698 = vmatpush1.msra.mxu0 %v3668
        %3699 = vmatprep.subr.mxu0 0.0
        %3700 = vmatpush1.msra.mxu0 0.0
        %3701 = vmatprep.subr.mxu0 0.0
        %3702 = vmatpush1.msra.mxu0 0.0
        %3703 = vmatprep.subr.mxu0 0.0
        %3704 = vmatpush1.msra.mxu0 0.0
        %3705 = vmatprep.subr.mxu0 0.0
        %3706 = vmatpush1.msra.mxu0 0.0
        %3707 = vmatprep.subr.mxu0 0.0
        %3708 = vmatpush1.msra.mxu0 0.0
        %3709 = vmatprep.subr.mxu0 0.0
        %3710 = vmatpush1.msra.mxu0 0.0
        %3711 = vmatprep.subr.mxu0 0.0
        %3712 = vmatpush1.msra.mxu0 0.0
        %3713 = vmatprep.subr.mxu0 0.0
        %3714 = vmatpush1.msra.mxu0 0.0
        %3715 = vmatprep.subr.mxu0 0.0
        %3716 = vmatpush1.msra.mxu0 0.0
        %3717 = vmatprep.subr.mxu0 0.0
        %3718 = vmatpush1.msra.mxu0 0.0
        %3719 = vmatprep.subr.mxu0 0.0
        %3720 = vmatpush1.msra.mxu0 0.0
        %3721 = vmatprep.subr.mxu0 0.0
        %3722 = vmatpush1.msra.mxu0 0.0
        %3723 = vmatprep.subr.mxu0 0.0
        %3724 = vmatpush1.msra.mxu0 0.0
        %3725 = vmatprep.subr.mxu0 0.0
        %3726 = vmatpush1.msra.mxu0 0.0
        %3727 = vmatprep.subr.mxu0 0.0
        %3728 = vmatpush1.msra.mxu0 0.0
        %3729 = vmatprep.subr.mxu0 0.0
        %3730 = vmatpush1.msra.mxu0 0.0
        %3731 = vmatprep.subr.mxu0 0.0
        %3732 = vmatpush1.msra.mxu0 0.0
        %3733 = vmatprep.subr.mxu0 0.0
        %3734 = vmatpush1.msra.mxu0 0.0
        %3735 = vmatprep.subr.mxu0 0.0
        %3736 = vmatpush1.msra.mxu0 0.0
        %3737 = vmatprep.subr.mxu0 0.0
        %3738 = vmatpush1.msra.mxu0 0.0
        %3739 = vmatprep.subr.mxu0 0.0
        %3740 = vmatpush1.msra.mxu0 0.0
        %3741 = vmatprep.subr.mxu0 0.0
        %3742 = vmatpush1.msra.mxu0 0.0
        %3743 = vmatprep.subr.mxu0 0.0
        %3744 = vmatpush1.msra.mxu0 0.0
        %3745 = vmatprep.subr.mxu0 0.0
        %3746 = vmatpush1.msra.mxu0 0.0
        %3747 = vmatprep.mubr.f32.mxu0 0.0
        %3748 = vmatmul.mubr.f32.gmra.mrb[0].mxu0 %v3678
        %v3749 = vpop.f32.mrb[0].mxu0
        %v3750 = vadd.f32 %v3675, %v3749
        %v3751 = vpop.f32.mrb[0].mxu0
        %3752 = vmatprep.mubr.f32.mxu0 0.0
        %3753 = vmatmul.mubr.f32.gmra.mrb[0].mxu0 %v3681
        %v3754 = vpop.f32.mrb[0].mxu0
        %v3755 = vadd.f32 %v3675, %v3754
        %v3756 = vpop.f32.mrb[0].mxu0
        %3757 = vdwg.mxu0
        %v3758 = vmax.f32 %v3750, 0.0
        %v3759 = vmax.f32 %v3755, 0.0
        %s3760 = scalar_lea.vmem %s11, 128
        %v3761 = vld [vmem:[%s3760] sm:$0xff]
        %v3762 = vld [vmem:[%s3760 + $0x8] sm:$0xff]
        %v3763 = vld [vmem:[%s3760 + $0x10] sm:$0xff]
        %v3764 = vld [vmem:[%s3760 + $0x18] sm:$0xff]
        %v3765 = vld [vmem:[%s3760 + $0x20] sm:$0xff]
        %v3766 = vld [vmem:[%s3760 + $0x28] sm:$0xff]
        %v3767 = vld [vmem:[%s3760 + $0x30] sm:$0xff]
        %v3768 = vld [vmem:[%s3760 + $0x38] sm:$0xff]
        %v3769 = vld [vmem:[%s3760 + $0x40] sm:$0xff]
        %v3770 = vld [vmem:[%s3760 + $0x48] sm:$0xff]
        %v3771 = vld [vmem:[%s3760 + $0x50] sm:$0xff]
        %v3772 = vld [vmem:[%s3760 + $0x58] sm:$0xff]
        %v3773 = vld [vmem:[%s3760 + $0x60] sm:$0xff]
        %v3774 = vld [vmem:[%s3760 + $0x68] sm:$0xff]
        %v3775 = vld [vmem:[%s3760 + $0x70] sm:$0xff]
        %v3776 = vld [vmem:[%s3760 + $0x78] sm:$0xff]
        %s3777 = scalar_lea.vmem %s12, 1
        %v3778 = vld [vmem:[%s3777] sm:$0x1]
        %v3780 = vlaneseq
        %v3781 = vshrl.u32 %v3780, 7
        %v3782 = vsub.s32 0, %v3781
        %v3783 = vrot.slane %v3778, %v3782
        %3785 = vmatprep.subr.mxu0 0.0
        %3786 = vmatpush1.msra.mxu0 %v3761
        %3787 = vmatprep.subr.mxu0 0.0
        %3788 = vmatpush1.msra.mxu0 %v3762
        %3789 = vmatprep.subr.mxu0 0.0
        %3790 = vmatpush1.msra.mxu0 %v3763
        %3791 = vmatprep.subr.mxu0 0.0
        %3792 = vmatpush1.msra.mxu0 %v3764
        %3793 = vmatprep.subr.mxu0 0.0
        %3794 = vmatpush1.msra.mxu0 %v3765
        %3795 = vmatprep.subr.mxu0 0.0
        %3796 = vmatpush1.msra.mxu0 %v3766
        %3797 = vmatprep.subr.mxu0 0.0
        %3798 = vmatpush1.msra.mxu0 %v3767
        %3799 = vmatprep.subr.mxu0 0.0
        %3800 = vmatpush1.msra.mxu0 %v3768
        %3801 = vmatprep.subr.mxu0 0.0
        %3802 = vmatpush1.msra.mxu0 %v3769
        %3803 = vmatprep.subr.mxu0 0.0
        %3804 = vmatpush1.msra.mxu0 %v3770
        %3805 = vmatprep.subr.mxu0 0.0
        %3806 = vmatpush1.msra.mxu0 %v3771
        %3807 = vmatprep.subr.mxu0 0.0
        %3808 = vmatpush1.msra.mxu0 %v3772
        %3809 = vmatprep.subr.mxu0 0.0
        %3810 = vmatpush1.msra.mxu0 %v3773
        %3811 = vmatprep.subr.mxu0 0.0
        %3812 = vmatpush1.msra.mxu0 %v3774
        %3813 = vmatprep.subr.mxu0 0.0
        %3814 = vmatpush1.msra.mxu0 %v3775
        %3815 = vmatprep.subr.mxu0 0.0
        %3816 = vmatpush1.msra.mxu0 %v3776
        %3817 = vmatprep.subr.mxu0 0.0
        %3818 = vmatpush1.msra.mxu0 0.0
        %3819 = vmatprep.subr.mxu0 0.0
        %3820 = vmatpush1.msra.mxu0 0.0
        %3821 = vmatprep.subr.mxu0 0.0
        %3822 = vmatpush1.msra.mxu0 0.0
        %3823 = vmatprep.subr.mxu0 0.0
        %3824 = vmatpush1.msra.mxu0 0.0
        %3825 = vmatprep.subr.mxu0 0.0
        %3826 = vmatpush1.msra.mxu0 0.0
        %3827 = vmatprep.subr.mxu0 0.0
        %3828 = vmatpush1.msra.mxu0 0.0
        %3829 = vmatprep.subr.mxu0 0.0
        %3830 = vmatpush1.msra.mxu0 0.0
        %3831 = vmatprep.subr.mxu0 0.0
        %3832 = vmatpush1.msra.mxu0 0.0
        %3833 = vmatprep.subr.mxu0 0.0
        %3834 = vmatpush1.msra.mxu0 0.0
        %3835 = vmatprep.subr.mxu0 0.0
        %3836 = vmatpush1.msra.mxu0 0.0
        %3837 = vmatprep.subr.mxu0 0.0
        %3838 = vmatpush1.msra.mxu0 0.0
        %3839 = vmatprep.subr.mxu0 0.0
        %3840 = vmatpush1.msra.mxu0 0.0
        %3841 = vmatprep.subr.mxu0 0.0
        %3842 = vmatpush1.msra.mxu0 0.0
        %3843 = vmatprep.subr.mxu0 0.0
        %3844 = vmatpush1.msra.mxu0 0.0
        %3845 = vmatprep.subr.mxu0 0.0
        %3846 = vmatpush1.msra.mxu0 0.0
        %3847 = vmatprep.subr.mxu0 0.0
        %3848 = vmatpush1.msra.mxu0 0.0
        %3849 = vmatprep.mubr.f32.mxu0 0.0
        %3850 = vmatmul.mubr.f32.gmra.mrb[0].mxu0 %v3758
        %v3851 = vpop.f32.mrb[0].mxu0
        %v3852 = vadd.f32 %v3783, %v3851
        %v3853 = vpop.f32.mrb[0].mxu0
        %3854 = vmatprep.mubr.f32.mxu0 0.0
        %3855 = vmatmul.mubr.f32.gmra.mrb[0].mxu0 %v3759
        %v3856 = vpop.f32.mrb[0].mxu0
        %v3857 = vadd.f32 %v3783, %v3856
        %v3858 = vpop.f32.mrb[0].mxu0
        %3859 = vdwg.mxu0
        %v3860 = vadd.f32 %v3658, %v3852
        %v3861 = vadd.f32 %v3659, %v3857
        %s3862 = scalar_lea.vmem %s13, 1
        %v3863 = vld [vmem:[%s3862] sm:$0x1]
        %s3864 = scalar_lea.vmem %s14, 1
        %v3865 = vld [vmem:[%s3864] sm:$0x1]
        %v3866 = vsel %vm646, %v3860, 0.0
        %3867 = vadd.xlane.f32.xlu0 %v3866
        %v3868 = vpop.xlane.xlu0 %3867
        %v3869 = vsel %vm646, %v3861, 0.0
        %3870 = vadd.xlane.f32.xlu0 %v3869
        %v3871 = vpop.xlane.xlu0 %3870
        %v3872 = vmul.f32 %v3868, %v2075
        %v3873 = vmul.f32 %v3871, %v2075
        %v3874 = vsub.f32 %v3860, %v3872
        %v3875 = vsub.f32 %v3861, %v3873
        %v3876 = vmul.f32 %v3874, %v3874
        %v3877 = vmul.f32 %v3875, %v3875
        %v3878 = vsel %vm646, %v3876, 0.0
        %3879 = vadd.xlane.f32.xlu0 %v3878
        %v3880 = vpop.xlane.xlu0 %3879
        %v3881 = vsel %vm646, %v3877, 0.0
        %3882 = vadd.xlane.f32.xlu0 %v3881
        %v3883 = vpop.xlane.xlu0 %3882
        %v3884 = vmul.f32 %v3880, %v2075
        %v3885 = vmul.f32 %v3883, %v2075
        %v3886 = vadd.f32 %v3884, 1e-05
        %v3887 = vadd.f32 %v3885, 1e-05
        %v3888 = vrsqrt.pop %v3886
        %v3889 = vrsqrt.pop %v3887
        %v3890 = vmul.f32 %v3874, %v3888
        %v3891 = vmul.f32 %v3875, %v3889
        %v3893 = vlaneseq
        %v3894 = vshrl.u32 %v3893, 7
        %v3895 = vsub.s32 0, %v3894
        %v3896 = vrot.slane %v3863, %v3895
        %v3898 = vmul.f32 %v3890, %v3896
        %v3899 = vmul.f32 %v3891, %v3896
        %v3901 = vlaneseq
        %v3902 = vshrl.u32 %v3901, 7
        %v3903 = vsub.s32 0, %v3902
        %v3904 = vrot.slane %v3865, %v3903
        %v3906 = vadd.f32 %v3898, %v3904
        %v3907 = vadd.f32 %v3899, %v3904
        %v3908 = vld [vmem:[%s15] sm:$0x1]
        %v3909 = vld [vmem:[%s16] sm:$0x1]
        %v3910 = vsel %vm646, %v3906, 0.0
        %3911 = vadd.xlane.f32.xlu0 %v3910
        %v3912 = vpop.xlane.xlu0 %3911
        %v3913 = vsel %vm646, %v3907, 0.0
        %3914 = vadd.xlane.f32.xlu0 %v3913
        %v3915 = vpop.xlane.xlu0 %3914
        %v3916 = vmul.f32 %v3912, %v2075
        %v3917 = vmul.f32 %v3915, %v2075
        %v3918 = vsub.f32 %v3906, %v3916
        %v3919 = vsub.f32 %v3907, %v3917
        %v3920 = vmul.f32 %v3918, %v3918
        %v3921 = vmul.f32 %v3919, %v3919
        %v3922 = vsel %vm646, %v3920, 0.0
        %3923 = vadd.xlane.f32.xlu0 %v3922
        %v3924 = vpop.xlane.xlu0 %3923
        %v3925 = vsel %vm646, %v3921, 0.0
        %3926 = vadd.xlane.f32.xlu0 %v3925
        %v3927 = vpop.xlane.xlu0 %3926
        %v3928 = vmul.f32 %v3924, %v2075
        %v3929 = vmul.f32 %v3927, %v2075
        %v3930 = vadd.f32 %v3928, 1e-05
        %v3931 = vadd.f32 %v3929, 1e-05
        %v3932 = vrsqrt.pop %v3930
        %v3933 = vrsqrt.pop %v3931
        %v3934 = vmul.f32 %v3918, %v3932
        %v3935 = vmul.f32 %v3919, %v3933
        %v3937 = vlaneseq
        %v3938 = vshrl.u32 %v3937, 7
        %v3939 = vsub.s32 0, %v3938
        %v3940 = vrot.slane %v3908, %v3939
        %v3942 = vmul.f32 %v3934, %v3940
        %v3943 = vmul.f32 %v3935, %v3940
        %v3945 = vlaneseq
        %v3946 = vshrl.u32 %v3945, 7
        %v3947 = vsub.s32 0, %v3946
        %v3948 = vrot.slane %v3909, %v3947
        %v3950 = vadd.f32 %v3942, %v3948
        %v3951 = vadd.f32 %v3943, %v3948
        %v3952 = vld [vmem:[%s17] sm:$0xff]
        %v3953 = vld [vmem:[%s17 + $0x8] sm:$0xff]
        %v3954 = vld [vmem:[%s17 + $0x10] sm:$0xff]
        %v3955 = vld [vmem:[%s17 + $0x18] sm:$0xff]
        %v3956 = vld [vmem:[%s17 + $0x20] sm:$0xff]
        %v3957 = vld [vmem:[%s17 + $0x28] sm:$0xff]
        %v3958 = vld [vmem:[%s17 + $0x30] sm:$0xff]
        %v3959 = vld [vmem:[%s17 + $0x38] sm:$0xff]
        %v3960 = vld [vmem:[%s17 + $0x40] sm:$0xff]
        %v3961 = vld [vmem:[%s17 + $0x48] sm:$0xff]
        %v3962 = vld [vmem:[%s17 + $0x50] sm:$0xff]
        %v3963 = vld [vmem:[%s17 + $0x58] sm:$0xff]
        %v3964 = vld [vmem:[%s17 + $0x60] sm:$0xff]
        %v3965 = vld [vmem:[%s17 + $0x68] sm:$0xff]
        %v3966 = vld [vmem:[%s17 + $0x70] sm:$0xff]
        %v3967 = vld [vmem:[%s17 + $0x78] sm:$0xff]
        %v3968 = vld [vmem:[%s17 + $0x80] sm:$0xff]
        %v3969 = vld [vmem:[%s17 + $0x88] sm:$0xff]
        %v3970 = vld [vmem:[%s17 + $0x90] sm:$0xff]
        %v3971 = vld [vmem:[%s17 + $0x98] sm:$0xff]
        %v3972 = vld [vmem:[%s17 + $0xa0] sm:$0xff]
        %v3973 = vld [vmem:[%s17 + $0xa8] sm:$0xff]
        %v3974 = vld [vmem:[%s17 + $0xb0] sm:$0xff]
        %v3975 = vld [vmem:[%s17 + $0xb8] sm:$0xff]
        %v3977 = vsel %vm646, %v3950, 0
        %v3980 = vsel %vm646, %v3951, 0
        %3982 = vmatprep.subr.mxu0 %v3953
        %3983 = vmatpush1.msra.mxu0 %v3952
        %3984 = vmatprep.subr.mxu0 %v3956
        %3985 = vmatpush1.msra.mxu0 %v3955
        %3986 = vmatprep.subr.mxu0 %v3959
        %3987 = vmatpush1.msra.mxu0 %v3958
        %3988 = vmatprep.subr.mxu0 %v3962
        %3989 = vmatpush1.msra.mxu0 %v3961
        %3990 = vmatprep.subr.mxu0 %v3965
        %3991 = vmatpush1.msra.mxu0 %v3964
        %3992 = vmatprep.subr.mxu0 %v3968
        %3993 = vmatpush1.msra.mxu0 %v3967
        %3994 = vmatprep.subr.mxu0 %v3971
        %3995 = vmatpush1.msra.mxu0 %v3970
        %3996 = vmatprep.subr.mxu0 %v3974
        %3997 = vmatpush1.msra.mxu0 %v3973
        %3998 = vmatprep.subr.mxu0 0.0
        %3999 = vmatpush1.msra.mxu0 0.0
        %4000 = vmatprep.subr.mxu0 0.0
        %4001 = vmatpush1.msra.mxu0 0.0
        %4002 = vmatprep.subr.mxu0 0.0
        %4003 = vmatpush1.msra.mxu0 0.0
        %4004 = vmatprep.subr.mxu0 0.0
        %4005 = vmatpush1.msra.mxu0 0.0
        %4006 = vmatprep.subr.mxu0 0.0
        %4007 = vmatpush1.msra.mxu0 0.0
        %4008 = vmatprep.subr.mxu0 0.0
        %4009 = vmatpush1.msra.mxu0 0.0
        %4010 = vmatprep.subr.mxu0 0.0
        %4011 = vmatpush1.msra.mxu0 0.0
        %4012 = vmatprep.subr.mxu0 0.0
        %4013 = vmatpush1.msra.mxu0 0.0
        %4014 = vmatprep.subr.mxu0 0.0
        %4015 = vmatpush1.msra.mxu0 0.0
        %4016 = vmatprep.subr.mxu0 0.0
        %4017 = vmatpush1.msra.mxu0 0.0
        %4018 = vmatprep.subr.mxu0 0.0
        %4019 = vmatpush1.msra.mxu0 0.0
        %4020 = vmatprep.subr.mxu0 0.0
        %4021 = vmatpush1.msra.mxu0 0.0
        %4022 = vmatprep.subr.mxu0 0.0
        %4023 = vmatpush1.msra.mxu0 0.0
        %4024 = vmatprep.subr.mxu0 0.0
        %4025 = vmatpush1.msra.mxu0 0.0
        %4026 = vmatprep.subr.mxu0 0.0
        %4027 = vmatpush1.msra.mxu0 0.0
        %4028 = vmatprep.subr.mxu0 0.0
        %4029 = vmatpush1.msra.mxu0 0.0
        %4030 = vmatprep.subr.mxu0 0.0
        %4031 = vmatpush1.msra.mxu0 0.0
        %4032 = vmatprep.subr.mxu0 0.0
        %4033 = vmatpush1.msra.mxu0 0.0
        %4034 = vmatprep.subr.mxu0 0.0
        %4035 = vmatpush1.msra.mxu0 0.0
        %4036 = vmatprep.subr.mxu0 0.0
        %4037 = vmatpush1.msra.mxu0 0.0
        %4038 = vmatprep.subr.mxu0 0.0
        %4039 = vmatpush1.msra.mxu0 0.0
        %4040 = vmatprep.subr.mxu0 0.0
        %4041 = vmatpush1.msra.mxu0 0.0
        %4042 = vmatprep.subr.mxu0 0.0
        %4043 = vmatpush1.msra.mxu0 0.0
        %4044 = vmatprep.subr.mxu0 0.0
        %4045 = vmatpush1.msra.mxu0 0.0
        %4046 = vmatprep.mubr.f32.mxu0 0.0
        %4047 = vmatmul.mubr.f32.gmra.mrb[0].mxu0 %v3977
        %v4048 = vpop.f32.mrb[0].mxu0
        %v4049 = vadd.f32 0.0, %v4048
        %v4050 = vpop.f32.mrb[0].mxu0
        %v4051 = vadd.f32 0.0, %v4050
        %4052 = vmatprep.mubr.f32.mxu0 0.0
        %4053 = vmatmul.mubr.f32.gmra.mrb[0].mxu0 %v3980
        %v4054 = vpop.f32.mrb[0].mxu0
        %v4055 = vadd.f32 0.0, %v4054
        %v4056 = vpop.f32.mrb[0].mxu0
        %v4057 = vadd.f32 0.0, %v4056
        %4058 = vdwg.mxu0
        %4059 = vmatprep.subr.mxu0 0.0
        %4060 = vmatpush1.msra.mxu0 %v3954
        %4061 = vmatprep.subr.mxu0 0.0
        %4062 = vmatpush1.msra.mxu0 %v3957
        %4063 = vmatprep.subr.mxu0 0.0
        %4064 = vmatpush1.msra.mxu0 %v3960
        %4065 = vmatprep.subr.mxu0 0.0
        %4066 = vmatpush1.msra.mxu0 %v3963
        %4067 = vmatprep.subr.mxu0 0.0
        %4068 = vmatpush1.msra.mxu0 %v3966
        %4069 = vmatprep.subr.mxu0 0.0
        %4070 = vmatpush1.msra.mxu0 %v3969
        %4071 = vmatprep.subr.mxu0 0.0
        %4072 = vmatpush1.msra.mxu0 %v3972
        %4073 = vmatprep.subr.mxu0 0.0
        %4074 = vmatpush1.msra.mxu0 %v3975
        %4075 = vmatprep.subr.mxu0 0.0
        %4076 = vmatpush1.msra.mxu0 0.0
        %4077 = vmatprep.subr.mxu0 0.0
        %4078 = vmatpush1.msra.mxu0 0.0
        %4079 = vmatprep.subr.mxu0 0.0
        %4080 = vmatpush1.msra.mxu0 0.0
        %4081 = vmatprep.subr.mxu0 0.0
        %4082 = vmatpush1.msra.mxu0 0.0
        %4083 = vmatprep.subr.mxu0 0.0
        %4084 = vmatpush1.msra.mxu0 0.0
        %4085 = vmatprep.subr.mxu0 0.0
        %4086 = vmatpush1.msra.mxu0 0.0
        %4087 = vmatprep.subr.mxu0 0.0
        %4088 = vmatpush1.msra.mxu0 0.0
        %4089 = vmatprep.subr.mxu0 0.0
        %4090 = vmatpush1.msra.mxu0 0.0
        %4091 = vmatprep.subr.mxu0 0.0
        %4092 = vmatpush1.msra.mxu0 0.0
        %4093 = vmatprep.subr.mxu0 0.0
        %4094 = vmatpush1.msra.mxu0 0.0
        %4095 = vmatprep.subr.mxu0 0.0
        %4096 = vmatpush1.msra.mxu0 0.0
        %4097 = vmatprep.subr.mxu0 0.0
        %4098 = vmatpush1.msra.mxu0 0.0
        %4099 = vmatprep.subr.mxu0 0.0
        %4100 = vmatpush1.msra.mxu0 0.0
        %4101 = vmatprep.subr.mxu0 0.0
        %4102 = vmatpush1.msra.mxu0 0.0
        %4103 = vmatprep.subr.mxu0 0.0
        %4104 = vmatpush1.msra.mxu0 0.0
        %4105 = vmatprep.subr.mxu0 0.0
        %4106 = vmatpush1.msra.mxu0 0.0
        %4107 = vmatprep.subr.mxu0 0.0
        %4108 = vmatpush1.msra.mxu0 0.0
        %4109 = vmatprep.subr.mxu0 0.0
        %4110 = vmatpush1.msra.mxu0 0.0
        %4111 = vmatprep.subr.mxu0 0.0
        %4112 = vmatpush1.msra.mxu0 0.0
        %4113 = vmatprep.subr.mxu0 0.0
        %4114 = vmatpush1.msra.mxu0 0.0
        %4115 = vmatprep.subr.mxu0 0.0
        %4116 = vmatpush1.msra.mxu0 0.0
        %4117 = vmatprep.subr.mxu0 0.0
        %4118 = vmatpush1.msra.mxu0 0.0
        %4119 = vmatprep.subr.mxu0 0.0
        %4120 = vmatpush1.msra.mxu0 0.0
        %4121 = vmatprep.subr.mxu0 0.0
        %4122 = vmatpush1.msra.mxu0 0.0
        %4123 = vmatprep.mubr.f32.mxu0 0.0
        %4124 = vmatmul.mubr.f32.gmra.mrb[0].mxu0 %v3977
        %v4125 = vpop.f32.mrb[0].mxu0
        %v4126 = vadd.f32 0.0, %v4125
        %v4127 = vpop.f32.mrb[0].mxu0
        %4128 = vmatprep.mubr.f32.mxu0 0.0
        %4129 = vmatmul.mubr.f32.gmra.mrb[0].mxu0 %v3980
        %v4130 = vpop.f32.mrb[0].mxu0
        %v4131 = vadd.f32 0.0, %v4130
        %v4132 = vpop.f32.mrb[0].mxu0
        %4133 = vdwg.mxu0
        %4134 = vst [vmem:[%s568] sm:$0xff] %v4049
        %4135 = vst [vmem:[%s568 + $0x8] sm:$0xff] %v4051
        %4136 = vst [vmem:[%s568 + $0x10] sm:$0xff] %v4126
        %4137 = vst [vmem:[%s568 + $0x18] sm:$0xff] %v4055
        %4138 = vst [vmem:[%s568 + $0x20] sm:$0xff] %v4057
        %4139 = vst [vmem:[%s568 + $0x28] sm:$0xff] %v4131
        %s4140 = sand.u32 %s423, 1
        %s4141 = scalar_lea.sflag [#allocation3], %s4140
        %s4142 = sand.u32 %s423, 1
        %s4143 = smul.addr %s4142, 48
        %s4144 = scalar_lea.vmem [#allocation2], %s4143
        // Predicated region
        $region93: #{gpt2_thinking_forward.1} parent=91 // pred_check
          %p4145 = pneg %p433
        $region94: #{gpt2_thinking_forward.1} parent=91 // pred_check_branch
          %4147 = sbr.rel (%p4145) target = $region96
        $region95: #{gpt2_thinking_forward.1} parent=91 // pred_region
          %s4149 = ssub.s32 768, 768
          %4150 = vsyncadd %s4141, %s4149
          %s4151 = smul.addr %s32, 6
          %s4152 = smul.addr %s4151, 128
          %s4153 = scalar_lea.hbm %s18, %s4152
          %s4154 = sshll.u32 %s4144, 4
          %s4155 = int_to_ptr.vmem [resolvable:$true] %s4154
          %4160 = dma.vmem_to_hbm [thread:$0]  %s4155, 768, %s4153, %s4141, 384, 384, 24
        $region96: #{gpt2_thinking_forward.1} parent=91 // pred_fallthru
          _
      $region92: #{gpt2_thinking_forward.1} parent=5 // pred_fallthru
        _
      %p4161 = scmp.le.s32.totalorder 2, %s27
      // Predicated region
      $region97: #{gpt2_thinking_forward.1} parent=5 // pred_check
        %p4162 = pneg %p4161
      $region98: #{gpt2_thinking_forward.1} parent=5 // pred_check_branch
        %4164 = sbr.rel (%p4162) target = $region100
      $region99: #{gpt2_thinking_forward.1} parent=5 // pred_region
        %s4165 = ssub.s32 %s27, 2
        // Predicated region
        $region101: #{gpt2_thinking_forward.1} parent=99 // pred_check
          %p4166 = pneg %p439
        $region102: #{gpt2_thinking_forward.1} parent=99 // pred_check_branch
          %4168 = sbr.rel (%p4166) target = $region104
        $region103: #{gpt2_thinking_forward.1} parent=99 // pred_region
          %s4169 = sand.u32 %s424, 1
          %s4170 = scalar_lea.sflag [#allocation3], %s4169
          %s4171 = sand.u32 %s424, 1
          %s4172 = smul.addr %s4171, 48
          %s4173 = scalar_lea.vmem [#allocation2], %s4172
          %4174 = dma.done %s4170, 768
        $region104: #{gpt2_thinking_forward.1} parent=99 // pred_fallthru
          _
      $region100: #{gpt2_thinking_forward.1} parent=5 // pred_fallthru
        _
    $region6: #{gpt2_thinking_forward.1} parent=1 // loop_footer
      %s31 = sadd.s32 1, %s27
    $region7: #{gpt2_thinking_forward.1} parent=1 // loop_footer_branch
      %26 = sbr.rel target = $region3
    $region8: #{gpt2_thinking_forward.1} parent=1 // loop_exit
      _
    %4175 = vsyncpa [#allocation3], 1
    %s4176 = scalar_lea.sflag [#allocation3], 1
    %4177 = vsyncpa %s4176, 1

</llo_original>
